<compile_context>
chip_gen: v7x
topology: tpu7x:2x2x1
jax: 0.10.0
libtpu: 0.0.40
codegen_flags: <defaults>
</compile_context>

<pallas_src>
import functools
import math

import jax
import jax.numpy as jnp
from jax.experimental import pallas as pl
from jax.experimental.pallas import tpu as pltpu


_LAYER_PARAM_ORDER = (
    "wqkv_s", "bqkv_s", "wo_s", "bo_s",
    "wq_c", "bq_c", "wkv_c", "bkv_c", "wo_c", "bo_c",
    "ln1g", "ln1b", "ln2g", "ln2b", "ln3g", "ln3b",
    "w1", "b1", "w2", "b2",
)


# ---------------------------------------------------------------------------
# In-kernel helpers (operate on traced VMEM-resident values)
# ---------------------------------------------------------------------------
def _layer_norm(x, g, b, eps=1e-5):
    mu = jnp.mean(x, axis=-1, keepdims=True)
    var = jnp.mean(jnp.square(x - mu), axis=-1, keepdims=True)
    return (x - mu) * jax.lax.rsqrt(var + eps) * g + b


def _mha(q, k, v, mask, num_heads, head_dim):
    """Multi-head attention for one batch element (the batch is a grid axis).

    q       : (Sq, H*Dh)  f32, 1/sqrt(Dh) already folded into Wq.
    k, v    : (Skv, H*Dh) f32.
    mask    : additive (Sq, Skv) f32 or None (specialized away).
    returns : (Sq, H*Dh)  f32.
    """
    # TODO(synk): for head_dim >= 128 this head loop should be one head-batched
    # lax.dot_general; at Dh=8 the lane-splitting reshape/relayout it would need
    # costs more than the tiny per-head dots, so keep lane-sliced heads here.
    heads = []
    for h in range(num_heads):
        sl = slice(h * head_dim, (h + 1) * head_dim)
        qh = q[:, sl].astype(jnp.bfloat16)
        kh = k[:, sl].astype(jnp.bfloat16)
        vh = v[:, sl].astype(jnp.bfloat16)
        # q @ k^T without materializing the transpose; f32 accumulation.
        s = jax.lax.dot_general(qh, kh, (((1,), (1,)), ((), ())),
                                preferred_element_type=jnp.float32)
        if mask is not None:
            s = s + mask
        s = s - jnp.max(s, axis=-1, keepdims=True)
        p = jnp.exp(s)
        p = p * pl.reciprocal(jnp.sum(p, axis=-1, keepdims=True), approx=True)
        heads.append(jnp.dot(p.astype(jnp.bfloat16), vh,
                             preferred_element_type=jnp.float32))
    return jnp.concatenate(heads, axis=-1)


# ---------------------------------------------------------------------------
# One grid step = one (batch element, decoder layer)
# ---------------------------------------------------------------------------
def _decoder_kernel(*refs, num_heads, embed_dim, use_tgt_mask, use_memory_mask):
    refs = list(refs)
    x_sc = refs.pop()                      # VMEM scratch: residual stream (S, D) f32
    logits_ref = refs.pop()                # output block (1, S, Vp)
    it = iter(refs)
    x_ref = next(it)                       # (1, S, D) f32
    enc_ref = next(it)                     # (1, S_enc, D) f32
    tgt_ref = next(it) if use_tgt_mask else None
    mem_ref = next(it) if use_memory_mask else None
    (wqkv_s, bqkv_s, wo_s, bo_s,
     wq_c, bq_c, wkv_c, bkv_c, wo_c, bo_c,
     ln1g, ln1b, ln2g, ln2b, ln3g, ln3b,
     w1, b1, w2, b2, outw, outb) = it

    D = embed_dim
    H = num_heads
    Dh = D // H
    layer = pl.program_id(1)
    last_layer = pl.num_programs(1) - 1

    @pl.when(layer == 0)
    def _():                               # new batch element: load embedded input
        x_sc[...] = x_ref[0]

    x = x_sc[...]                          # (S, D) f32 residual stream
    enc = enc_ref[0]                       # (S_enc, D) f32
    tgt_mask = tgt_ref[...] if use_tgt_mask else None
    mem_mask = mem_ref[...] if use_memory_mask else None

    def dense(a, w_ref, b_ref):
        # bf16 MXU operands, f32 accumulation, f32 bias add.
        return jnp.dot(a.astype(jnp.bfloat16), w_ref[0],
                       preferred_element_type=jnp.float32) + b_ref[0]

    # ---- masked self-attention (fused QKV projection) ----
    qkv = dense(x, wqkv_s, bqkv_s)                         # (S, 3D)
    a = _mha(qkv[:, :D], qkv[:, D:2 * D], qkv[:, 2 * D:], tgt_mask, H, Dh)
    a = dense(a, wo_s, bo_s)
    x = _layer_norm(x + a, ln1g[0], ln1b[0])

    # ---- cross-attention over encoder output (fused KV projection) ----
    q = dense(x, wq_c, bq_c)                               # (S, D)
    kv = dense(enc, wkv_c, bkv_c)                          # (S_enc, 2D)
    a = _mha(q, kv[:, :D], kv[:, D:], mem_mask, H, Dh)
    a = dense(a, wo_c, bo_c)
    x = _layer_norm(x + a, ln2g[0], ln2b[0])

    # ---- feed-forward (hidden_dim == embed_dim per the module) ----
    ff = jnp.maximum(dense(x, w1, b1), 0.0)
    ff = dense(ff, w2, b2)
    x = _layer_norm(x + ff, ln3g[0], ln3b[0])

    x_sc[...] = x                                          # carry to next layer

    @pl.when(layer == last_layer)
    def _():                                               # lane-dense vocab proj
        logits_ref[0] = (jnp.dot(x.astype(jnp.bfloat16), outw[...],
                                 preferred_element_type=jnp.float32)
                         + outb[...]).astype(logits_ref.dtype)


# ---------------------------------------------------------------------------
# Wrapper: weight packing + pallas_call with (batch, layer) grid
# ---------------------------------------------------------------------------
def _nbytes(shape, dtype):
    n = 1
    for s in shape:
        n *= int(s)
    return n * jnp.dtype(dtype).itemsize


def pack_params(params, num_heads):
    """Stack per-layer weights (leading layer axis), fuse QKV / KV, fold
    1/sqrt(Dh) into Wq, cast matmul weights to bf16, pad vocab to 128*k."""
    D = params["out_w"].shape[0]
    V = params["out_w"].shape[1]
    Dh = D // num_heads
    scale = 1.0 / math.sqrt(Dh)
    layers = params["layers"]
    wdt = jnp.bfloat16

    def stack_w(fn):
        return jnp.stack([fn(lp) for lp in layers], axis=0).astype(wdt)

    def stack_f(fn):
        return jnp.stack([fn(lp) for lp in layers], axis=0).astype(jnp.float32)

    Vp = (V + 127) // 128 * 128
    out_w = jnp.zeros((D, Vp), jnp.float32).at[:, :V].set(params["out_w"]).astype(wdt)
    out_b = jnp.zeros((1, Vp), jnp.float32).at[0, :V].set(params["out_b"])

    return {
        "wqkv_s": stack_w(lambda lp: jnp.concatenate(
            [lp["self_attn"]["wq"] * scale, lp["self_attn"]["wk"],
             lp["self_attn"]["wv"]], axis=1)),
        "bqkv_s": stack_f(lambda lp: jnp.concatenate(
            [lp["self_attn"]["bq"] * scale, lp["self_attn"]["bk"],
             lp["self_attn"]["bv"]])[None, :]),
        "wo_s": stack_w(lambda lp: lp["self_attn"]["wo"]),
        "bo_s": stack_f(lambda lp: lp["self_attn"]["bo"][None, :]),
        "wq_c": stack_w(lambda lp: lp["cross_attn"]["wq"] * scale),
        "bq_c": stack_f(lambda lp: (lp["cross_attn"]["bq"] * scale)[None, :]),
        "wkv_c": stack_w(lambda lp: jnp.concatenate(
            [lp["cross_attn"]["wk"], lp["cross_attn"]["wv"]], axis=1)),
        "bkv_c": stack_f(lambda lp: jnp.concatenate(
            [lp["cross_attn"]["bk"], lp["cross_attn"]["bv"]])[None, :]),
        "wo_c": stack_w(lambda lp: lp["cross_attn"]["wo"]),
        "bo_c": stack_f(lambda lp: lp["cross_attn"]["bo"][None, :]),
        "ln1g": stack_f(lambda lp: lp["ln1_g"][None, :]),
        "ln1b": stack_f(lambda lp: lp["ln1_b"][None, :]),
        "ln2g": stack_f(lambda lp: lp["ln2_g"][None, :]),
        "ln2b": stack_f(lambda lp: lp["ln2_b"][None, :]),
        "ln3g": stack_f(lambda lp: lp["ln3_g"][None, :]),
        "ln3b": stack_f(lambda lp: lp["ln3_b"][None, :]),
        "w1": stack_w(lambda lp: lp["w1"]),
        "b1": stack_f(lambda lp: lp["b1"][None, :]),
        "w2": stack_w(lambda lp: lp["w2"]),
        "b2": stack_f(lambda lp: lp["b2"][None, :]),
        "out_w": out_w,
        "out_b": out_b,
        "embedding": params["embedding"],
        "pos_enc": params["pos_enc"],
    }


@functools.partial(jax.jit, static_argnames=("num_heads", "num_layers", "vocab_size"))
def decoder_forward(tokens, enc_out, packed, *, num_heads, num_layers, vocab_size,
                    tgt_mask=None, memory_mask=None):
    B, S = tokens.shape
    S_enc = enc_out.shape[1]
    D = packed["embedding"].shape[1]
    Vp = packed["out_w"].shape[1]

    # TODO(synk): the nn.Embedding gather + sinusoidal PE add stay in plain JAX
    # (XLA gather); everything after it runs inside the fused Pallas kernel.
    x = (jnp.take(packed["embedding"], tokens, axis=0)
         + packed["pos_enc"][:S][None, :, :]).astype(jnp.float32)
    enc = enc_out.astype(jnp.float32)

    use_tgt = tgt_mask is not None
    use_mem = memory_mask is not None

    in_specs = [pl.BlockSpec((1, S, D), lambda b, l: (b, 0, 0)),
                pl.BlockSpec((1, S_enc, D), lambda b, l: (b, 0, 0))]
    args = [x, enc]
    vmem_need = 2 * (_nbytes((1, S, D), jnp.float32)
                     + _nbytes((1, S_enc, D), jnp.float32))

    if use_tgt:
        in_specs.append(pl.BlockSpec((S, S), lambda b, l: (0, 0)))
        args.append(tgt_mask.astype(jnp.float32))
        vmem_need += 2 * _nbytes((S, S), jnp.float32)
    if use_mem:
        in_specs.append(pl.BlockSpec((S, S_enc), lambda b, l: (0, 0)))
        args.append(memory_mask.astype(jnp.float32))
        vmem_need += 2 * _nbytes((S, S_enc), jnp.float32)

    # Per-layer weight slabs streamed HBM -> VMEM one layer at a time
    # (double-buffered by the Pallas pipeline, overlapped with compute).
    for name in _LAYER_PARAM_ORDER:
        arr = packed[name]
        blk = (1,) + tuple(arr.shape[1:])
        in_specs.append(pl.BlockSpec(blk, lambda b, l: (l, 0, 0)))
        args.append(arr)
        vmem_need += 2 * _nbytes(blk, arr.dtype)

    # Vocab projection weights: constant block index -> fetched once per core.
    in_specs.append(pl.BlockSpec(tuple(packed["out_w"].shape), lambda b, l: (0, 0)))
    args.append(packed["out_w"])
    in_specs.append(pl.BlockSpec(tuple(packed["out_b"].shape), lambda b, l: (0, 0)))
    args.append(packed["out_b"])
    vmem_need += 2 * (_nbytes(packed["out_w"].shape, packed["out_w"].dtype)
                      + _nbytes(packed["out_b"].shape, packed["out_b"].dtype))

    out_spec = pl.BlockSpec((1, S, Vp), lambda b, l: (b, 0, 0))
    vmem_need += 2 * _nbytes((1, S, Vp), jnp.float32)
    vmem_need += _nbytes((S, D), jnp.float32)              # residual-stream scratch

    # Derived VMEM budget (headroom for compiler scratch), capped for v7x (64 MiB).
    vmem_limit = int(min(64 * 1024 * 1024, 2 * vmem_need + 8 * 1024 * 1024))

    H = num_heads
    flops_layer = (2 * S * D * 3 * D + 4 * S * S * D + 2 * S * D * D      # self-attn
                   + 2 * S * D * D + 2 * S_enc * D * 2 * D
                   + 4 * S * S_enc * D + 2 * S * D * D                    # cross-attn
                   + 4 * S * D * D)                                       # FFN
    weight_bytes = sum(_nbytes(packed[n].shape, packed[n].dtype)
                       for n in _LAYER_PARAM_ORDER)
    cost = pl.CostEstimate(
        flops=int(B * (num_layers * flops_layer + 2 * S * D * Vp)),
        transcendentals=int(B * num_layers * H * (S * S + S * S_enc)),
        bytes_accessed=int(B * weight_bytes
                           + _nbytes((B, S, D), jnp.float32)
                           + _nbytes((B, S_enc, D), jnp.float32)
                           + _nbytes((B, S, Vp), jnp.float32)),
    )

    kernel = functools.partial(_decoder_kernel, num_heads=num_heads, embed_dim=D,
                               use_tgt_mask=use_tgt, use_memory_mask=use_mem)

    logits = pl.pallas_call(
        kernel,
        grid=(B, num_layers),
        in_specs=in_specs,
        out_specs=out_spec,
        out_shape=jax.ShapeDtypeStruct((B, S, Vp), jnp.float32),
        scratch_shapes=[pltpu.VMEM((S, D), jnp.float32)],
        compiler_params=pltpu.CompilerParams(
            dimension_semantics=("parallel", "arbitrary"),
            vmem_limit_bytes=vmem_limit),
        cost_estimate=cost,
    )(*args)
    return logits[:, :, :vocab_size]                       # drop vocab padding


# ---------------------------------------------------------------------------
# Pure-JAX reference (same math, f32 weights) for correctness checking
# ---------------------------------------------------------------------------
def reference_forward(tokens, enc_out, params, num_heads, tgt_mask, memory_mask):
    B, S = tokens.shape
    D = params["embedding"].shape[1]
    H = num_heads
    Dh = D // H
    x = jnp.take(params["embedding"], tokens, axis=0) + params["pos_enc"][:S][None, :, :]

    def mha(xq, xkv, p, mask):
        Bq, Sq, _ = xq.shape
        Skv = xkv.shape[1]
        q = xq @ p["wq"] + p["bq"]
        k = xkv @ p["wk"] + p["bk"]
        v = xkv @ p["wv"] + p["bv"]
        q = q.reshape(Bq, Sq, H, Dh).transpose(0, 2, 1, 3)
        k = k.reshape(Bq, Skv, H, Dh).transpose(0, 2, 1, 3)
        v = v.reshape(Bq, Skv, H, Dh).transpose(0, 2, 1, 3)
        s = jnp.einsum("bhqd,bhkd->bhqk", q, k) / math.sqrt(Dh)
        if mask is not None:
            s = s + mask
        a = jax.nn.softmax(s, axis=-1)
        o = jnp.einsum("bhqk,bhkd->bhqd", a, v)
        o = o.transpose(0, 2, 1, 3).reshape(Bq, Sq, D)
        return o @ p["wo"] + p["bo"]

    def ln(y, g, b):
        mu = y.mean(-1, keepdims=True)
        var = ((y - mu) ** 2).mean(-1, keepdims=True)
        return (y - mu) / jnp.sqrt(var + 1e-5) * g + b

    for lp in params["layers"]:
        x = ln(x + mha(x, x, lp["self_attn"], tgt_mask), lp["ln1_g"], lp["ln1_b"])
        x = ln(x + mha(x, enc_out, lp["cross_attn"], memory_mask), lp["ln2_g"], lp["ln2_b"])
        h = jnp.maximum(x @ lp["w1"] + lp["b1"], 0.0) @ lp["w2"] + lp["b2"]
        x = ln(x + h, lp["ln3_g"], lp["ln3_b"])
    return x @ params["out_w"] + params["out_b"]


# ---------------------------------------------------------------------------
# Deterministic parameter init (synthetic weights; no checkpoint load)
# ---------------------------------------------------------------------------
def sinusoidal_pos_encoding(max_len, d):
    pos = jnp.arange(max_len, dtype=jnp.float32)[:, None]
    div = jnp.exp(jnp.arange(0, d, 2, dtype=jnp.float32) * (-jnp.log(10000.0) / d))
    pe = jnp.zeros((max_len, d), dtype=jnp.float32)
    pe = pe.at[:, 0::2].set(jnp.sin(pos * div))
    pe = pe.at[:, 1::2].set(jnp.cos(pos * div))
    return pe


def _dense_init(key, shape, scale=0.02):
    return scale * jax.random.normal(key, shape, dtype=jnp.float32)


def init_attn_params(key, D):
    ks = jax.random.split(key, 4)
    return {
        "wq": _dense_init(ks[0], (D, D)), "bq": jnp.zeros((D,), jnp.float32),
        "wk": _dense_init(ks[1], (D, D)), "bk": jnp.zeros((D,), jnp.float32),
        "wv": _dense_init(ks[2], (D, D)), "bv": jnp.zeros((D,), jnp.float32),
        "wo": _dense_init(ks[3], (D, D)), "bo": jnp.zeros((D,), jnp.float32),
    }


def init_layer_params(key, D, hidden):
    ks = jax.random.split(key, 4)
    return {
        "self_attn": init_attn_params(ks[0], D),
        "cross_attn": init_attn_params(ks[1], D),
        "ln1_g": jnp.ones((D,), jnp.float32), "ln1_b": jnp.zeros((D,), jnp.float32),
        "ln2_g": jnp.ones((D,), jnp.float32), "ln2_b": jnp.zeros((D,), jnp.float32),
        "ln3_g": jnp.ones((D,), jnp.float32), "ln3_b": jnp.zeros((D,), jnp.float32),
        "w1": _dense_init(ks[2], (D, hidden)), "b1": jnp.zeros((hidden,), jnp.float32),
        "w2": _dense_init(ks[3], (hidden, D)), "b2": jnp.zeros((D,), jnp.float32),
    }


def init_params(key, num_layers, D, vocab, max_len):
    ks = jax.random.split(key, num_layers + 2)
    return {
        "embedding": _dense_init(ks[0], (vocab, D), scale=1.0),
        "pos_enc": sinusoidal_pos_encoding(max_len, D),
        "layers": [init_layer_params(ks[1 + i], D, D) for i in range(num_layers)],
        "out_w": _dense_init(ks[-1], (D, vocab)),
        "out_b": jnp.zeros((vocab,), jnp.float32),
    }


# ---------------------------------------------------------------------------
if __name__ == "__main__":
    # config: num_layers=2, embed_dim=32, num_heads=4, hidden_dim=32,
    #         vocab_size=64, max_seq_length=16, dropout=0.1 (eval -> identity)
    B, S, S_ENC = 2, 8, 8
    D, H, V, L, MAXLEN = 32, 4, 64, 2, 16

    key = jax.random.PRNGKey(0)
    k_tok, k_enc, k_par = jax.random.split(key, 3)

    tokens = jax.random.randint(k_tok, (B, S), 0, V, dtype=jnp.int32)
    enc_out = jax.random.normal(k_enc, (B, S_ENC, D), dtype=jnp.float32)
    params = init_params(k_par, L, D, V, MAXLEN)
    packed = pack_params(params, H)

    # tgt_mask: causal additive mask; memory_mask: None (specialized away).
    causal = jnp.triu(jnp.ones((S, S), dtype=bool), k=1)
    tgt_mask = jnp.where(causal, -1e9, 0.0).astype(jnp.float32)

    logits = decoder_forward(tokens, enc_out, packed,
                             num_heads=H, num_layers=L, vocab_size=V,
                             tgt_mask=tgt_mask, memory_mask=None)
    logits = jax.block_until_ready(logits)

    assert logits.shape == (B, S, V), logits.shape
    assert bool(jnp.all(jnp.isfinite(logits)))

    # Correctness vs pure-f32 JAX reference (loose tolerance: bf16 MXU operands
    # + EUP approx reciprocal in the softmax denominator).
    ref = reference_forward(tokens, enc_out, params, H, tgt_mask, None)
    err = float(jnp.max(jnp.abs(logits - ref)))
    assert err < 5e-2, f"max abs err {err}"

    print("KERNEL_OK")
</pallas_src>

<mosaic_0001>
module attributes {stable_mosaic.version = 11 : i64} {
  func.func @_decoder_kernel(%arg0: i32, %arg1: i32, %arg2: memref<1x8x32xf32, #tpu.memory_space<vmem>>, %arg3: memref<1x8x32xf32, #tpu.memory_space<vmem>>, %arg4: memref<8x8xf32, #tpu.memory_space<vmem>>, %arg5: memref<1x32x96xbf16, #tpu.memory_space<vmem>>, %arg6: memref<1x1x96xf32, #tpu.memory_space<vmem>>, %arg7: memref<1x32x32xbf16, #tpu.memory_space<vmem>>, %arg8: memref<1x1x32xf32, #tpu.memory_space<vmem>>, %arg9: memref<1x32x32xbf16, #tpu.memory_space<vmem>>, %arg10: memref<1x1x32xf32, #tpu.memory_space<vmem>>, %arg11: memref<1x32x64xbf16, #tpu.memory_space<vmem>>, %arg12: memref<1x1x64xf32, #tpu.memory_space<vmem>>, %arg13: memref<1x32x32xbf16, #tpu.memory_space<vmem>>, %arg14: memref<1x1x32xf32, #tpu.memory_space<vmem>>, %arg15: memref<1x1x32xf32, #tpu.memory_space<vmem>>, %arg16: memref<1x1x32xf32, #tpu.memory_space<vmem>>, %arg17: memref<1x1x32xf32, #tpu.memory_space<vmem>>, %arg18: memref<1x1x32xf32, #tpu.memory_space<vmem>>, %arg19: memref<1x1x32xf32, #tpu.memory_space<vmem>>, %arg20: memref<1x1x32xf32, #tpu.memory_space<vmem>>, %arg21: memref<1x32x32xbf16, #tpu.memory_space<vmem>>, %arg22: memref<1x1x32xf32, #tpu.memory_space<vmem>>, %arg23: memref<1x32x32xbf16, #tpu.memory_space<vmem>>, %arg24: memref<1x1x32xf32, #tpu.memory_space<vmem>>, %arg25: memref<32x128xbf16, #tpu.memory_space<vmem>>, %arg26: memref<1x128xf32, #tpu.memory_space<vmem>>, %arg27: memref<1x8x128xf32, #tpu.memory_space<vmem>>, %arg28: memref<8x32xf32, #tpu.memory_space<vmem>>) attributes {dimension_semantics = [#tpu.dimension_semantics<parallel>, #tpu.dimension_semantics<arbitrary>], iteration_bounds = array<i64: 2, 2>, scalar_prefetch = 0 : i64, scratch_operands = 1 : i64, tpu.core_type = #tpu.core_type<tc>, window_params = [{transform_indices = @transform_0, window_bounds = array<i64: 1, 8, 32>}, {transform_indices = @transform_1, window_bounds = array<i64: 1, 8, 32>}, {pipeline_mode = #tpu.pipeline_mode<synchronous>, transform_indices = @transform_2, window_bounds = array<i64: 8, 8>}, {transform_indices = @transform_3, window_bounds = array<i64: 1, 32, 96>}, {transform_indices = @transform_4, window_bounds = array<i64: 1, 1, 96>}, {transform_indices = @transform_5, window_bounds = array<i64: 1, 32, 32>}, {transform_indices = @transform_6, window_bounds = array<i64: 1, 1, 32>}, {transform_indices = @transform_7, window_bounds = array<i64: 1, 32, 32>}, {transform_indices = @transform_8, window_bounds = array<i64: 1, 1, 32>}, {transform_indices = @transform_9, window_bounds = array<i64: 1, 32, 64>}, {transform_indices = @transform_10, window_bounds = array<i64: 1, 1, 64>}, {transform_indices = @transform_11, window_bounds = array<i64: 1, 32, 32>}, {transform_indices = @transform_12, window_bounds = array<i64: 1, 1, 32>}, {transform_indices = @transform_13, window_bounds = array<i64: 1, 1, 32>}, {transform_indices = @transform_14, window_bounds = array<i64: 1, 1, 32>}, {transform_indices = @transform_15, window_bounds = array<i64: 1, 1, 32>}, {transform_indices = @transform_16, window_bounds = array<i64: 1, 1, 32>}, {transform_indices = @transform_17, window_bounds = array<i64: 1, 1, 32>}, {transform_indices = @transform_18, window_bounds = array<i64: 1, 1, 32>}, {transform_indices = @transform_19, window_bounds = array<i64: 1, 32, 32>}, {transform_indices = @transform_20, window_bounds = array<i64: 1, 1, 32>}, {transform_indices = @transform_21, window_bounds = array<i64: 1, 32, 32>}, {transform_indices = @transform_22, window_bounds = array<i64: 1, 1, 32>}, {pipeline_mode = #tpu.pipeline_mode<synchronous>, transform_indices = @transform_23, window_bounds = array<i64: 32, 128>}, {pipeline_mode = #tpu.pipeline_mode<synchronous>, transform_indices = @transform_24, window_bounds = array<i64: 1, 128>}, {transform_indices = @transform_25, window_bounds = array<i64: 1, 8, 128>}]} {
    %c0_i32 = arith.constant 0 : i32
    %0 = arith.cmpi eq, %arg1, %c0_i32 : i32
    %1 = arith.extui %0 : i1 to i32
    %c0_i32_0 = arith.constant 0 : i32
    %2 = arith.cmpi ne, %1, %c0_i32_0 : i32
    scf.if %2 {
      %c0_124 = arith.constant 0 : index
      %c0_125 = arith.constant 0 : index
      %c0_126 = arith.constant 0 : index
      %313 = vector.load %arg2[%c0_124, %c0_125, %c0_126] : memref<1x8x32xf32, #tpu.memory_space<vmem>>, vector<1x8x32xf32>
      %314 = vector.shape_cast %313 : vector<1x8x32xf32> to vector<8x32xf32>
      %c0_127 = arith.constant 0 : index
      %c0_128 = arith.constant 0 : index
      %315 = vector.load %arg28[%c0_127, %c0_128] : memref<8x32xf32, #tpu.memory_space<vmem>>, vector<8x32xf32>
      tpu.vector_store %arg28[%c0_127, %c0_128], %314 {strides = array<i32>} : memref<8x32xf32, #tpu.memory_space<vmem>>, vector<8x32xf32>,
    } else {
    }
    %c0 = arith.constant 0 : index
    %c0_1 = arith.constant 0 : index
    %3 = vector.load %arg28[%c0, %c0_1] : memref<8x32xf32, #tpu.memory_space<vmem>>, vector<8x32xf32>
    %c0_2 = arith.constant 0 : index
    %c0_3 = arith.constant 0 : index
    %c0_4 = arith.constant 0 : index
    %4 = vector.load %arg3[%c0_2, %c0_3, %c0_4] : memref<1x8x32xf32, #tpu.memory_space<vmem>>, vector<1x8x32xf32>
    %5 = vector.shape_cast %4 : vector<1x8x32xf32> to vector<8x32xf32>
    %c0_5 = arith.constant 0 : index
    %c0_6 = arith.constant 0 : index
    %6 = vector.load %arg4[%c0_5, %c0_6] : memref<8x8xf32, #tpu.memory_space<vmem>>, vector<8x8xf32>
    %7 = arith.truncf %3 : vector<8x32xf32> to vector<8x32xbf16>
    %c0_7 = arith.constant 0 : index
    %c0_8 = arith.constant 0 : index
    %c0_9 = arith.constant 0 : index
    %8 = vector.load %arg5[%c0_7, %c0_8, %c0_9] : memref<1x32x96xbf16, #tpu.memory_space<vmem>>, vector<1x32x96xbf16>
    %9 = vector.shape_cast %8 : vector<1x32x96xbf16> to vector<32x96xbf16>
    %cst = arith.constant dense<0.000000e+00> : vector<8x96xf32>
    %10 = tpu.matmul %7, %9, %cst {dimension_numbers = #tpu.dot_dimension_numbers<[1], [0], [0], [1], [0, 0, 1, 1], [], []>} : vector<8x32xbf16>, vector<32x96xbf16>, vector<8x96xf32> -> vector<8x96xf32>
    %c0_10 = arith.constant 0 : index
    %c0_11 = arith.constant 0 : index
    %c0_12 = arith.constant 0 : index
    %11 = vector.load %arg6[%c0_10, %c0_11, %c0_12] : memref<1x1x96xf32, #tpu.memory_space<vmem>>, vector<1x1x96xf32>
    %12 = vector.shape_cast %11 : vector<1x1x96xf32> to vector<1x96xf32>
    %13 = vector.broadcast %12 : vector<1x96xf32> to vector<8x96xf32>
    %14 = arith.addf %10, %13 : vector<8x96xf32>
    %15 = vector.extract_strided_slice %14 {offsets = [0, 0], sizes = [8, 32], strides = [1, 1]} : vector<8x96xf32> to vector<8x32xf32>
    %16 = vector.extract_strided_slice %14 {offsets = [0, 32], sizes = [8, 32], strides = [1, 1]} : vector<8x96xf32> to vector<8x32xf32>
    %17 = vector.extract_strided_slice %14 {offsets = [0, 64], sizes = [8, 32], strides = [1, 1]} : vector<8x96xf32> to vector<8x32xf32>
    %18 = vector.extract_strided_slice %15 {offsets = [0, 0], sizes = [8, 8], strides = [1, 1]} : vector<8x32xf32> to vector<8x8xf32>
    %19 = arith.truncf %18 : vector<8x8xf32> to vector<8x8xbf16>
    %20 = vector.extract_strided_slice %16 {offsets = [0, 0], sizes = [8, 8], strides = [1, 1]} : vector<8x32xf32> to vector<8x8xf32>
    %21 = arith.truncf %20 : vector<8x8xf32> to vector<8x8xbf16>
    %22 = vector.extract_strided_slice %17 {offsets = [0, 0], sizes = [8, 8], strides = [1, 1]} : vector<8x32xf32> to vector<8x8xf32>
    %23 = arith.truncf %22 : vector<8x8xf32> to vector<8x8xbf16>
    %cst_13 = arith.constant dense<0.000000e+00> : vector<8x8xf32>
    %24 = tpu.matmul %19, %21, %cst_13 {dimension_numbers = #tpu.dot_dimension_numbers<[1], [1], [0], [0], [0, 0, 1, 0], [], []>} : vector<8x8xbf16>, vector<8x8xbf16>, vector<8x8xf32> -> vector<8x8xf32>
    %25 = arith.addf %24, %6 : vector<8x8xf32>
    %cst_14 = arith.constant dense<0xFF800000> : vector<8xf32>
    %26 = vector.multi_reduction <maximumf>, %25, %cst_14 [1] : vector<8x8xf32> to vector<8xf32>
    %27 = vector.shape_cast %26 : vector<8xf32> to vector<8x1xf32>
    %28 = vector.broadcast %27 : vector<8x1xf32> to vector<8x8xf32>
    %29 = arith.subf %25, %28 : vector<8x8xf32>
    %30 = math.exp %29 : vector<8x8xf32>
    %cst_15 = arith.constant dense<0.000000e+00> : vector<8xf32>
    %31 = vector.multi_reduction <add>, %30, %cst_15 [1] : vector<8x8xf32> to vector<8xf32>
    %32 = vector.shape_cast %31 : vector<8xf32> to vector<8x1xf32>
    %33 = tpu.reciprocal %32 {approx = true} : vector<8x1xf32> -> vector<8x1xf32>
    %34 = vector.broadcast %33 : vector<8x1xf32> to vector<8x8xf32>
    %35 = arith.mulf %30, %34 : vector<8x8xf32>
    %36 = arith.truncf %35 : vector<8x8xf32> to vector<8x8xbf16>
    %cst_16 = arith.constant dense<0.000000e+00> : vector<8x8xf32>
    %37 = tpu.matmul %36, %23, %cst_16 {dimension_numbers = #tpu.dot_dimension_numbers<[1], [0], [0], [1], [0, 0, 1, 1], [], []>} : vector<8x8xbf16>, vector<8x8xbf16>, vector<8x8xf32> -> vector<8x8xf32>
    %38 = vector.extract_strided_slice %15 {offsets = [0, 8], sizes = [8, 8], strides = [1, 1]} : vector<8x32xf32> to vector<8x8xf32>
    %39 = arith.truncf %38 : vector<8x8xf32> to vector<8x8xbf16>
    %40 = vector.extract_strided_slice %16 {offsets = [0, 8], sizes = [8, 8], strides = [1, 1]} : vector<8x32xf32> to vector<8x8xf32>
    %41 = arith.truncf %40 : vector<8x8xf32> to vector<8x8xbf16>
    %42 = vector.extract_strided_slice %17 {offsets = [0, 8], sizes = [8, 8], strides = [1, 1]} : vector<8x32xf32> to vector<8x8xf32>
    %43 = arith.truncf %42 : vector<8x8xf32> to vector<8x8xbf16>
    %cst_17 = arith.constant dense<0.000000e+00> : vector<8x8xf32>
    %44 = tpu.matmul %39, %41, %cst_17 {dimension_numbers = #tpu.dot_dimension_numbers<[1], [1], [0], [0], [0, 0, 1, 0], [], []>} : vector<8x8xbf16>, vector<8x8xbf16>, vector<8x8xf32> -> vector<8x8xf32>
    %45 = arith.addf %44, %6 : vector<8x8xf32>
    %cst_18 = arith.constant dense<0xFF800000> : vector<8xf32>
    %46 = vector.multi_reduction <maximumf>, %45, %cst_18 [1] : vector<8x8xf32> to vector<8xf32>
    %47 = vector.shape_cast %46 : vector<8xf32> to vector<8x1xf32>
    %48 = vector.broadcast %47 : vector<8x1xf32> to vector<8x8xf32>
    %49 = arith.subf %45, %48 : vector<8x8xf32>
    %50 = math.exp %49 : vector<8x8xf32>
    %cst_19 = arith.constant dense<0.000000e+00> : vector<8xf32>
    %51 = vector.multi_reduction <add>, %50, %cst_19 [1] : vector<8x8xf32> to vector<8xf32>
    %52 = vector.shape_cast %51 : vector<8xf32> to vector<8x1xf32>
    %53 = tpu.reciprocal %52 {approx = true} : vector<8x1xf32> -> vector<8x1xf32>
    %54 = vector.broadcast %53 : vector<8x1xf32> to vector<8x8xf32>
    %55 = arith.mulf %50, %54 : vector<8x8xf32>
    %56 = arith.truncf %55 : vector<8x8xf32> to vector<8x8xbf16>
    %cst_20 = arith.constant dense<0.000000e+00> : vector<8x8xf32>
    %57 = tpu.matmul %56, %43, %cst_20 {dimension_numbers = #tpu.dot_dimension_numbers<[1], [0], [0], [1], [0, 0, 1, 1], [], []>} : vector<8x8xbf16>, vector<8x8xbf16>, vector<8x8xf32> -> vector<8x8xf32>
    %58 = vector.extract_strided_slice %15 {offsets = [0, 16], sizes = [8, 8], strides = [1, 1]} : vector<8x32xf32> to vector<8x8xf32>
    %59 = arith.truncf %58 : vector<8x8xf32> to vector<8x8xbf16>
    %60 = vector.extract_strided_slice %16 {offsets = [0, 16], sizes = [8, 8], strides = [1, 1]} : vector<8x32xf32> to vector<8x8xf32>
    %61 = arith.truncf %60 : vector<8x8xf32> to vector<8x8xbf16>
    %62 = vector.extract_strided_slice %17 {offsets = [0, 16], sizes = [8, 8], strides = [1, 1]} : vector<8x32xf32> to vector<8x8xf32>
    %63 = arith.truncf %62 : vector<8x8xf32> to vector<8x8xbf16>
    %cst_21 = arith.constant dense<0.000000e+00> : vector<8x8xf32>
    %64 = tpu.matmul %59, %61, %cst_21 {dimension_numbers = #tpu.dot_dimension_numbers<[1], [1], [0], [0], [0, 0, 1, 0], [], []>} : vector<8x8xbf16>, vector<8x8xbf16>, vector<8x8xf32> -> vector<8x8xf32>
    %65 = arith.addf %64, %6 : vector<8x8xf32>
    %cst_22 = arith.constant dense<0xFF800000> : vector<8xf32>
    %66 = vector.multi_reduction <maximumf>, %65, %cst_22 [1] : vector<8x8xf32> to vector<8xf32>
    %67 = vector.shape_cast %66 : vector<8xf32> to vector<8x1xf32>
    %68 = vector.broadcast %67 : vector<8x1xf32> to vector<8x8xf32>
    %69 = arith.subf %65, %68 : vector<8x8xf32>
    %70 = math.exp %69 : vector<8x8xf32>
    %cst_23 = arith.constant dense<0.000000e+00> : vector<8xf32>
    %71 = vector.multi_reduction <add>, %70, %cst_23 [1] : vector<8x8xf32> to vector<8xf32>
    %72 = vector.shape_cast %71 : vector<8xf32> to vector<8x1xf32>
    %73 = tpu.reciprocal %72 {approx = true} : vector<8x1xf32> -> vector<8x1xf32>
    %74 = vector.broadcast %73 : vector<8x1xf32> to vector<8x8xf32>
    %75 = arith.mulf %70, %74 : vector<8x8xf32>
    %76 = arith.truncf %75 : vector<8x8xf32> to vector<8x8xbf16>
    %cst_24 = arith.constant dense<0.000000e+00> : vector<8x8xf32>
    %77 = tpu.matmul %76, %63, %cst_24 {dimension_numbers = #tpu.dot_dimension_numbers<[1], [0], [0], [1], [0, 0, 1, 1], [], []>} : vector<8x8xbf16>, vector<8x8xbf16>, vector<8x8xf32> -> vector<8x8xf32>
    %78 = vector.extract_strided_slice %15 {offsets = [0, 24], sizes = [8, 8], strides = [1, 1]} : vector<8x32xf32> to vector<8x8xf32>
    %79 = arith.truncf %78 : vector<8x8xf32> to vector<8x8xbf16>
    %80 = vector.extract_strided_slice %16 {offsets = [0, 24], sizes = [8, 8], strides = [1, 1]} : vector<8x32xf32> to vector<8x8xf32>
    %81 = arith.truncf %80 : vector<8x8xf32> to vector<8x8xbf16>
    %82 = vector.extract_strided_slice %17 {offsets = [0, 24], sizes = [8, 8], strides = [1, 1]} : vector<8x32xf32> to vector<8x8xf32>
    %83 = arith.truncf %82 : vector<8x8xf32> to vector<8x8xbf16>
    %cst_25 = arith.constant dense<0.000000e+00> : vector<8x8xf32>
    %84 = tpu.matmul %79, %81, %cst_25 {dimension_numbers = #tpu.dot_dimension_numbers<[1], [1], [0], [0], [0, 0, 1, 0], [], []>} : vector<8x8xbf16>, vector<8x8xbf16>, vector<8x8xf32> -> vector<8x8xf32>
    %85 = arith.addf %84, %6 : vector<8x8xf32>
    %cst_26 = arith.constant dense<0xFF800000> : vector<8xf32>
    %86 = vector.multi_reduction <maximumf>, %85, %cst_26 [1] : vector<8x8xf32> to vector<8xf32>
    %87 = vector.shape_cast %86 : vector<8xf32> to vector<8x1xf32>
    %88 = vector.broadcast %87 : vector<8x1xf32> to vector<8x8xf32>
    %89 = arith.subf %85, %88 : vector<8x8xf32>
    %90 = math.exp %89 : vector<8x8xf32>
    %cst_27 = arith.constant dense<0.000000e+00> : vector<8xf32>
    %91 = vector.multi_reduction <add>, %90, %cst_27 [1] : vector<8x8xf32> to vector<8xf32>
    %92 = vector.shape_cast %91 : vector<8xf32> to vector<8x1xf32>
    %93 = tpu.reciprocal %92 {approx = true} : vector<8x1xf32> -> vector<8x1xf32>
    %94 = vector.broadcast %93 : vector<8x1xf32> to vector<8x8xf32>
    %95 = arith.mulf %90, %94 : vector<8x8xf32>
    %96 = arith.truncf %95 : vector<8x8xf32> to vector<8x8xbf16>
    %cst_28 = arith.constant dense<0.000000e+00> : vector<8x8xf32>
    %97 = tpu.matmul %96, %83, %cst_28 {dimension_numbers = #tpu.dot_dimension_numbers<[1], [0], [0], [1], [0, 0, 1, 1], [], []>} : vector<8x8xbf16>, vector<8x8xbf16>, vector<8x8xf32> -> vector<8x8xf32>
    %98 = tpu.concatenate %37, %57, %77, %97 in 1 : vector<8x8xf32>, vector<8x8xf32>, vector<8x8xf32>, vector<8x8xf32> -> vector<8x32xf32>
    %99 = arith.truncf %98 : vector<8x32xf32> to vector<8x32xbf16>
    %c0_29 = arith.constant 0 : index
    %c0_30 = arith.constant 0 : index
    %c0_31 = arith.constant 0 : index
    %100 = vector.load %arg7[%c0_29, %c0_30, %c0_31] : memref<1x32x32xbf16, #tpu.memory_space<vmem>>, vector<1x32x32xbf16>
    %101 = vector.shape_cast %100 : vector<1x32x32xbf16> to vector<32x32xbf16>
    %cst_32 = arith.constant dense<0.000000e+00> : vector<8x32xf32>
    %102 = tpu.matmul %99, %101, %cst_32 {dimension_numbers = #tpu.dot_dimension_numbers<[1], [0], [0], [1], [0, 0, 1, 1], [], []>} : vector<8x32xbf16>, vector<32x32xbf16>, vector<8x32xf32> -> vector<8x32xf32>
    %c0_33 = arith.constant 0 : index
    %c0_34 = arith.constant 0 : index
    %c0_35 = arith.constant 0 : index
    %103 = vector.load %arg8[%c0_33, %c0_34, %c0_35] : memref<1x1x32xf32, #tpu.memory_space<vmem>>, vector<1x1x32xf32>
    %104 = vector.shape_cast %103 : vector<1x1x32xf32> to vector<1x32xf32>
    %105 = vector.broadcast %104 : vector<1x32xf32> to vector<8x32xf32>
    %106 = arith.addf %102, %105 : vector<8x32xf32>
    %107 = arith.addf %3, %106 : vector<8x32xf32>
    %c0_36 = arith.constant 0 : index
    %c0_37 = arith.constant 0 : index
    %c0_38 = arith.constant 0 : index
    %108 = vector.load %arg15[%c0_36, %c0_37, %c0_38] : memref<1x1x32xf32, #tpu.memory_space<vmem>>, vector<1x1x32xf32>
    %109 = vector.shape_cast %108 : vector<1x1x32xf32> to vector<1x32xf32>
    %c0_39 = arith.constant 0 : index
    %c0_40 = arith.constant 0 : index
    %c0_41 = arith.constant 0 : index
    %110 = vector.load %arg16[%c0_39, %c0_40, %c0_41] : memref<1x1x32xf32, #tpu.memory_space<vmem>>, vector<1x1x32xf32>
    %111 = vector.shape_cast %110 : vector<1x1x32xf32> to vector<1x32xf32>
    %cst_42 = arith.constant dense<0.000000e+00> : vector<8xf32>
    %112 = vector.multi_reduction <add>, %107, %cst_42 [1] : vector<8x32xf32> to vector<8xf32>
    %113 = vector.shape_cast %112 : vector<8xf32> to vector<8x1xf32>
    %cst_43 = arith.constant 3.200000e+01 : f32
    %114 = vector.broadcast %cst_43 : f32 to vector<8x1xf32>
    %115 = arith.divf %113, %114 : vector<8x1xf32>
    %116 = vector.broadcast %115 : vector<8x1xf32> to vector<8x32xf32>
    %117 = arith.subf %107, %116 : vector<8x32xf32>
    %118 = arith.mulf %117, %117 : vector<8x32xf32>
    %cst_44 = arith.constant dense<0.000000e+00> : vector<8xf32>
    %119 = vector.multi_reduction <add>, %118, %cst_44 [1] : vector<8x32xf32> to vector<8xf32>
    %120 = vector.shape_cast %119 : vector<8xf32> to vector<8x1xf32>
    %cst_45 = arith.constant 3.200000e+01 : f32
    %121 = vector.broadcast %cst_45 : f32 to vector<8x1xf32>
    %122 = arith.divf %120, %121 : vector<8x1xf32>
    %123 = vector.broadcast %115 : vector<8x1xf32> to vector<8x32xf32>
    %124 = arith.subf %107, %123 : vector<8x32xf32>
    %cst_46 = arith.constant 9.99999974E-6 : f32
    %125 = vector.broadcast %cst_46 : f32 to vector<8x1xf32>
    %126 = arith.addf %122, %125 : vector<8x1xf32>
    %127 = math.rsqrt %126 : vector<8x1xf32>
    %128 = vector.broadcast %127 : vector<8x1xf32> to vector<8x32xf32>
    %129 = arith.mulf %124, %128 : vector<8x32xf32>
    %130 = vector.broadcast %109 : vector<1x32xf32> to vector<8x32xf32>
    %131 = arith.mulf %129, %130 : vector<8x32xf32>
    %132 = vector.broadcast %111 : vector<1x32xf32> to vector<8x32xf32>
    %133 = arith.addf %131, %132 : vector<8x32xf32>
    %134 = arith.truncf %133 : vector<8x32xf32> to vector<8x32xbf16>
    %c0_47 = arith.constant 0 : index
    %c0_48 = arith.constant 0 : index
    %c0_49 = arith.constant 0 : index
    %135 = vector.load %arg9[%c0_47, %c0_48, %c0_49] : memref<1x32x32xbf16, #tpu.memory_space<vmem>>, vector<1x32x32xbf16>
    %136 = vector.shape_cast %135 : vector<1x32x32xbf16> to vector<32x32xbf16>
    %cst_50 = arith.constant dense<0.000000e+00> : vector<8x32xf32>
    %137 = tpu.matmul %134, %136, %cst_50 {dimension_numbers = #tpu.dot_dimension_numbers<[1], [0], [0], [1], [0, 0, 1, 1], [], []>} : vector<8x32xbf16>, vector<32x32xbf16>, vector<8x32xf32> -> vector<8x32xf32>
    %c0_51 = arith.constant 0 : index
    %c0_52 = arith.constant 0 : index
    %c0_53 = arith.constant 0 : index
    %138 = vector.load %arg10[%c0_51, %c0_52, %c0_53] : memref<1x1x32xf32, #tpu.memory_space<vmem>>, vector<1x1x32xf32>
    %139 = vector.shape_cast %138 : vector<1x1x32xf32> to vector<1x32xf32>
    %140 = vector.broadcast %139 : vector<1x32xf32> to vector<8x32xf32>
    %141 = arith.addf %137, %140 : vector<8x32xf32>
    %142 = arith.truncf %5 : vector<8x32xf32> to vector<8x32xbf16>
    %c0_54 = arith.constant 0 : index
    %c0_55 = arith.constant 0 : index
    %c0_56 = arith.constant 0 : index
    %143 = vector.load %arg11[%c0_54, %c0_55, %c0_56] : memref<1x32x64xbf16, #tpu.memory_space<vmem>>, vector<1x32x64xbf16>
    %144 = vector.shape_cast %143 : vector<1x32x64xbf16> to vector<32x64xbf16>
    %cst_57 = arith.constant dense<0.000000e+00> : vector<8x64xf32>
    %145 = tpu.matmul %142, %144, %cst_57 {dimension_numbers = #tpu.dot_dimension_numbers<[1], [0], [0], [1], [0, 0, 1, 1], [], []>} : vector<8x32xbf16>, vector<32x64xbf16>, vector<8x64xf32> -> vector<8x64xf32>
    %c0_58 = arith.constant 0 : index
    %c0_59 = arith.constant 0 : index
    %c0_60 = arith.constant 0 : index
    %146 = vector.load %arg12[%c0_58, %c0_59, %c0_60] : memref<1x1x64xf32, #tpu.memory_space<vmem>>, vector<1x1x64xf32>
    %147 = vector.shape_cast %146 : vector<1x1x64xf32> to vector<1x64xf32>
    %148 = vector.broadcast %147 : vector<1x64xf32> to vector<8x64xf32>
    %149 = arith.addf %145, %148 : vector<8x64xf32>
    %150 = vector.extract_strided_slice %149 {offsets = [0, 0], sizes = [8, 32], strides = [1, 1]} : vector<8x64xf32> to vector<8x32xf32>
    %151 = vector.extract_strided_slice %149 {offsets = [0, 32], sizes = [8, 32], strides = [1, 1]} : vector<8x64xf32> to vector<8x32xf32>
    %152 = vector.extract_strided_slice %141 {offsets = [0, 0], sizes = [8, 8], strides = [1, 1]} : vector<8x32xf32> to vector<8x8xf32>
    %153 = arith.truncf %152 : vector<8x8xf32> to vector<8x8xbf16>
    %154 = vector.extract_strided_slice %150 {offsets = [0, 0], sizes = [8, 8], strides = [1, 1]} : vector<8x32xf32> to vector<8x8xf32>
    %155 = arith.truncf %154 : vector<8x8xf32> to vector<8x8xbf16>
    %156 = vector.extract_strided_slice %151 {offsets = [0, 0], sizes = [8, 8], strides = [1, 1]} : vector<8x32xf32> to vector<8x8xf32>
    %157 = arith.truncf %156 : vector<8x8xf32> to vector<8x8xbf16>
    %cst_61 = arith.constant dense<0.000000e+00> : vector<8x8xf32>
    %158 = tpu.matmul %153, %155, %cst_61 {dimension_numbers = #tpu.dot_dimension_numbers<[1], [1], [0], [0], [0, 0, 1, 0], [], []>} : vector<8x8xbf16>, vector<8x8xbf16>, vector<8x8xf32> -> vector<8x8xf32>
    %cst_62 = arith.constant dense<0xFF800000> : vector<8xf32>
    %159 = vector.multi_reduction <maximumf>, %158, %cst_62 [1] : vector<8x8xf32> to vector<8xf32>
    %160 = vector.shape_cast %159 : vector<8xf32> to vector<8x1xf32>
    %161 = vector.broadcast %160 : vector<8x1xf32> to vector<8x8xf32>
    %162 = arith.subf %158, %161 : vector<8x8xf32>
    %163 = math.exp %162 : vector<8x8xf32>
    %cst_63 = arith.constant dense<0.000000e+00> : vector<8xf32>
    %164 = vector.multi_reduction <add>, %163, %cst_63 [1] : vector<8x8xf32> to vector<8xf32>
    %165 = vector.shape_cast %164 : vector<8xf32> to vector<8x1xf32>
    %166 = tpu.reciprocal %165 {approx = true} : vector<8x1xf32> -> vector<8x1xf32>
    %167 = vector.broadcast %166 : vector<8x1xf32> to vector<8x8xf32>
    %168 = arith.mulf %163, %167 : vector<8x8xf32>
    %169 = arith.truncf %168 : vector<8x8xf32> to vector<8x8xbf16>
    %cst_64 = arith.constant dense<0.000000e+00> : vector<8x8xf32>
    %170 = tpu.matmul %169, %157, %cst_64 {dimension_numbers = #tpu.dot_dimension_numbers<[1], [0], [0], [1], [0, 0, 1, 1], [], []>} : vector<8x8xbf16>, vector<8x8xbf16>, vector<8x8xf32> -> vector<8x8xf32>
    %171 = vector.extract_strided_slice %141 {offsets = [0, 8], sizes = [8, 8], strides = [1, 1]} : vector<8x32xf32> to vector<8x8xf32>
    %172 = arith.truncf %171 : vector<8x8xf32> to vector<8x8xbf16>
    %173 = vector.extract_strided_slice %150 {offsets = [0, 8], sizes = [8, 8], strides = [1, 1]} : vector<8x32xf32> to vector<8x8xf32>
    %174 = arith.truncf %173 : vector<8x8xf32> to vector<8x8xbf16>
    %175 = vector.extract_strided_slice %151 {offsets = [0, 8], sizes = [8, 8], strides = [1, 1]} : vector<8x32xf32> to vector<8x8xf32>
    %176 = arith.truncf %175 : vector<8x8xf32> to vector<8x8xbf16>
    %cst_65 = arith.constant dense<0.000000e+00> : vector<8x8xf32>
    %177 = tpu.matmul %172, %174, %cst_65 {dimension_numbers = #tpu.dot_dimension_numbers<[1], [1], [0], [0], [0, 0, 1, 0], [], []>} : vector<8x8xbf16>, vector<8x8xbf16>, vector<8x8xf32> -> vector<8x8xf32>
    %cst_66 = arith.constant dense<0xFF800000> : vector<8xf32>
    %178 = vector.multi_reduction <maximumf>, %177, %cst_66 [1] : vector<8x8xf32> to vector<8xf32>
    %179 = vector.shape_cast %178 : vector<8xf32> to vector<8x1xf32>
    %180 = vector.broadcast %179 : vector<8x1xf32> to vector<8x8xf32>
    %181 = arith.subf %177, %180 : vector<8x8xf32>
    %182 = math.exp %181 : vector<8x8xf32>
    %cst_67 = arith.constant dense<0.000000e+00> : vector<8xf32>
    %183 = vector.multi_reduction <add>, %182, %cst_67 [1] : vector<8x8xf32> to vector<8xf32>
    %184 = vector.shape_cast %183 : vector<8xf32> to vector<8x1xf32>
    %185 = tpu.reciprocal %184 {approx = true} : vector<8x1xf32> -> vector<8x1xf32>
    %186 = vector.broadcast %185 : vector<8x1xf32> to vector<8x8xf32>
    %187 = arith.mulf %182, %186 : vector<8x8xf32>
    %188 = arith.truncf %187 : vector<8x8xf32> to vector<8x8xbf16>
    %cst_68 = arith.constant dense<0.000000e+00> : vector<8x8xf32>
    %189 = tpu.matmul %188, %176, %cst_68 {dimension_numbers = #tpu.dot_dimension_numbers<[1], [0], [0], [1], [0, 0, 1, 1], [], []>} : vector<8x8xbf16>, vector<8x8xbf16>, vector<8x8xf32> -> vector<8x8xf32>
    %190 = vector.extract_strided_slice %141 {offsets = [0, 16], sizes = [8, 8], strides = [1, 1]} : vector<8x32xf32> to vector<8x8xf32>
    %191 = arith.truncf %190 : vector<8x8xf32> to vector<8x8xbf16>
    %192 = vector.extract_strided_slice %150 {offsets = [0, 16], sizes = [8, 8], strides = [1, 1]} : vector<8x32xf32> to vector<8x8xf32>
    %193 = arith.truncf %192 : vector<8x8xf32> to vector<8x8xbf16>
    %194 = vector.extract_strided_slice %151 {offsets = [0, 16], sizes = [8, 8], strides = [1, 1]} : vector<8x32xf32> to vector<8x8xf32>
    %195 = arith.truncf %194 : vector<8x8xf32> to vector<8x8xbf16>
    %cst_69 = arith.constant dense<0.000000e+00> : vector<8x8xf32>
    %196 = tpu.matmul %191, %193, %cst_69 {dimension_numbers = #tpu.dot_dimension_numbers<[1], [1], [0], [0], [0, 0, 1, 0], [], []>} : vector<8x8xbf16>, vector<8x8xbf16>, vector<8x8xf32> -> vector<8x8xf32>
    %cst_70 = arith.constant dense<0xFF800000> : vector<8xf32>
    %197 = vector.multi_reduction <maximumf>, %196, %cst_70 [1] : vector<8x8xf32> to vector<8xf32>
    %198 = vector.shape_cast %197 : vector<8xf32> to vector<8x1xf32>
    %199 = vector.broadcast %198 : vector<8x1xf32> to vector<8x8xf32>
    %200 = arith.subf %196, %199 : vector<8x8xf32>
    %201 = math.exp %200 : vector<8x8xf32>
    %cst_71 = arith.constant dense<0.000000e+00> : vector<8xf32>
    %202 = vector.multi_reduction <add>, %201, %cst_71 [1] : vector<8x8xf32> to vector<8xf32>
    %203 = vector.shape_cast %202 : vector<8xf32> to vector<8x1xf32>
    %204 = tpu.reciprocal %203 {approx = true} : vector<8x1xf32> -> vector<8x1xf32>
    %205 = vector.broadcast %204 : vector<8x1xf32> to vector<8x8xf32>
    %206 = arith.mulf %201, %205 : vector<8x8xf32>
    %207 = arith.truncf %206 : vector<8x8xf32> to vector<8x8xbf16>
    %cst_72 = arith.constant dense<0.000000e+00> : vector<8x8xf32>
    %208 = tpu.matmul %207, %195, %cst_72 {dimension_numbers = #tpu.dot_dimension_numbers<[1], [0], [0], [1], [0, 0, 1, 1], [], []>} : vector<8x8xbf16>, vector<8x8xbf16>, vector<8x8xf32> -> vector<8x8xf32>
    %209 = vector.extract_strided_slice %141 {offsets = [0, 24], sizes = [8, 8], strides = [1, 1]} : vector<8x32xf32> to vector<8x8xf32>
    %210 = arith.truncf %209 : vector<8x8xf32> to vector<8x8xbf16>
    %211 = vector.extract_strided_slice %150 {offsets = [0, 24], sizes = [8, 8], strides = [1, 1]} : vector<8x32xf32> to vector<8x8xf32>
    %212 = arith.truncf %211 : vector<8x8xf32> to vector<8x8xbf16>
    %213 = vector.extract_strided_slice %151 {offsets = [0, 24], sizes = [8, 8], strides = [1, 1]} : vector<8x32xf32> to vector<8x8xf32>
    %214 = arith.truncf %213 : vector<8x8xf32> to vector<8x8xbf16>
    %cst_73 = arith.constant dense<0.000000e+00> : vector<8x8xf32>
    %215 = tpu.matmul %210, %212, %cst_73 {dimension_numbers = #tpu.dot_dimension_numbers<[1], [1], [0], [0], [0, 0, 1, 0], [], []>} : vector<8x8xbf16>, vector<8x8xbf16>, vector<8x8xf32> -> vector<8x8xf32>
    %cst_74 = arith.constant dense<0xFF800000> : vector<8xf32>
    %216 = vector.multi_reduction <maximumf>, %215, %cst_74 [1] : vector<8x8xf32> to vector<8xf32>
    %217 = vector.shape_cast %216 : vector<8xf32> to vector<8x1xf32>
    %218 = vector.broadcast %217 : vector<8x1xf32> to vector<8x8xf32>
    %219 = arith.subf %215, %218 : vector<8x8xf32>
    %220 = math.exp %219 : vector<8x8xf32>
    %cst_75 = arith.constant dense<0.000000e+00> : vector<8xf32>
    %221 = vector.multi_reduction <add>, %220, %cst_75 [1] : vector<8x8xf32> to vector<8xf32>
    %222 = vector.shape_cast %221 : vector<8xf32> to vector<8x1xf32>
    %223 = tpu.reciprocal %222 {approx = true} : vector<8x1xf32> -> vector<8x1xf32>
    %224 = vector.broadcast %223 : vector<8x1xf32> to vector<8x8xf32>
    %225 = arith.mulf %220, %224 : vector<8x8xf32>
    %226 = arith.truncf %225 : vector<8x8xf32> to vector<8x8xbf16>
    %cst_76 = arith.constant dense<0.000000e+00> : vector<8x8xf32>
    %227 = tpu.matmul %226, %214, %cst_76 {dimension_numbers = #tpu.dot_dimension_numbers<[1], [0], [0], [1], [0, 0, 1, 1], [], []>} : vector<8x8xbf16>, vector<8x8xbf16>, vector<8x8xf32> -> vector<8x8xf32>
    %228 = tpu.concatenate %170, %189, %208, %227 in 1 : vector<8x8xf32>, vector<8x8xf32>, vector<8x8xf32>, vector<8x8xf32> -> vector<8x32xf32>
    %229 = arith.truncf %228 : vector<8x32xf32> to vector<8x32xbf16>
    %c0_77 = arith.constant 0 : index
    %c0_78 = arith.constant 0 : index
    %c0_79 = arith.constant 0 : index
    %230 = vector.load %arg13[%c0_77, %c0_78, %c0_79] : memref<1x32x32xbf16, #tpu.memory_space<vmem>>, vector<1x32x32xbf16>
    %231 = vector.shape_cast %230 : vector<1x32x32xbf16> to vector<32x32xbf16>
    %cst_80 = arith.constant dense<0.000000e+00> : vector<8x32xf32>
    %232 = tpu.matmul %229, %231, %cst_80 {dimension_numbers = #tpu.dot_dimension_numbers<[1], [0], [0], [1], [0, 0, 1, 1], [], []>} : vector<8x32xbf16>, vector<32x32xbf16>, vector<8x32xf32> -> vector<8x32xf32>
    %c0_81 = arith.constant 0 : index
    %c0_82 = arith.constant 0 : index
    %c0_83 = arith.constant 0 : index
    %233 = vector.load %arg14[%c0_81, %c0_82, %c0_83] : memref<1x1x32xf32, #tpu.memory_space<vmem>>, vector<1x1x32xf32>
    %234 = vector.shape_cast %233 : vector<1x1x32xf32> to vector<1x32xf32>
    %235 = vector.broadcast %234 : vector<1x32xf32> to vector<8x32xf32>
    %236 = arith.addf %232, %235 : vector<8x32xf32>
    %237 = arith.addf %133, %236 : vector<8x32xf32>
    %c0_84 = arith.constant 0 : index
    %c0_85 = arith.constant 0 : index
    %c0_86 = arith.constant 0 : index
    %238 = vector.load %arg17[%c0_84, %c0_85, %c0_86] : memref<1x1x32xf32, #tpu.memory_space<vmem>>, vector<1x1x32xf32>
    %239 = vector.shape_cast %238 : vector<1x1x32xf32> to vector<1x32xf32>
    %c0_87 = arith.constant 0 : index
    %c0_88 = arith.constant 0 : index
    %c0_89 = arith.constant 0 : index
    %240 = vector.load %arg18[%c0_87, %c0_88, %c0_89] : memref<1x1x32xf32, #tpu.memory_space<vmem>>, vector<1x1x32xf32>
    %241 = vector.shape_cast %240 : vector<1x1x32xf32> to vector<1x32xf32>
    %cst_90 = arith.constant dense<0.000000e+00> : vector<8xf32>
    %242 = vector.multi_reduction <add>, %237, %cst_90 [1] : vector<8x32xf32> to vector<8xf32>
    %243 = vector.shape_cast %242 : vector<8xf32> to vector<8x1xf32>
    %cst_91 = arith.constant 3.200000e+01 : f32
    %244 = vector.broadcast %cst_91 : f32 to vector<8x1xf32>
    %245 = arith.divf %243, %244 : vector<8x1xf32>
    %246 = vector.broadcast %245 : vector<8x1xf32> to vector<8x32xf32>
    %247 = arith.subf %237, %246 : vector<8x32xf32>
    %248 = arith.mulf %247, %247 : vector<8x32xf32>
    %cst_92 = arith.constant dense<0.000000e+00> : vector<8xf32>
    %249 = vector.multi_reduction <add>, %248, %cst_92 [1] : vector<8x32xf32> to vector<8xf32>
    %250 = vector.shape_cast %249 : vector<8xf32> to vector<8x1xf32>
    %cst_93 = arith.constant 3.200000e+01 : f32
    %251 = vector.broadcast %cst_93 : f32 to vector<8x1xf32>
    %252 = arith.divf %250, %251 : vector<8x1xf32>
    %253 = vector.broadcast %245 : vector<8x1xf32> to vector<8x32xf32>
    %254 = arith.subf %237, %253 : vector<8x32xf32>
    %cst_94 = arith.constant 9.99999974E-6 : f32
    %255 = vector.broadcast %cst_94 : f32 to vector<8x1xf32>
    %256 = arith.addf %252, %255 : vector<8x1xf32>
    %257 = math.rsqrt %256 : vector<8x1xf32>
    %258 = vector.broadcast %257 : vector<8x1xf32> to vector<8x32xf32>
    %259 = arith.mulf %254, %258 : vector<8x32xf32>
    %260 = vector.broadcast %239 : vector<1x32xf32> to vector<8x32xf32>
    %261 = arith.mulf %259, %260 : vector<8x32xf32>
    %262 = vector.broadcast %241 : vector<1x32xf32> to vector<8x32xf32>
    %263 = arith.addf %261, %262 : vector<8x32xf32>
    %264 = arith.truncf %263 : vector<8x32xf32> to vector<8x32xbf16>
    %c0_95 = arith.constant 0 : index
    %c0_96 = arith.constant 0 : index
    %c0_97 = arith.constant 0 : index
    %265 = vector.load %arg21[%c0_95, %c0_96, %c0_97] : memref<1x32x32xbf16, #tpu.memory_space<vmem>>, vector<1x32x32xbf16>
    %266 = vector.shape_cast %265 : vector<1x32x32xbf16> to vector<32x32xbf16>
    %cst_98 = arith.constant dense<0.000000e+00> : vector<8x32xf32>
    %267 = tpu.matmul %264, %266, %cst_98 {dimension_numbers = #tpu.dot_dimension_numbers<[1], [0], [0], [1], [0, 0, 1, 1], [], []>} : vector<8x32xbf16>, vector<32x32xbf16>, vector<8x32xf32> -> vector<8x32xf32>
    %c0_99 = arith.constant 0 : index
    %c0_100 = arith.constant 0 : index
    %c0_101 = arith.constant 0 : index
    %268 = vector.load %arg22[%c0_99, %c0_100, %c0_101] : memref<1x1x32xf32, #tpu.memory_space<vmem>>, vector<1x1x32xf32>
    %269 = vector.shape_cast %268 : vector<1x1x32xf32> to vector<1x32xf32>
    %270 = vector.broadcast %269 : vector<1x32xf32> to vector<8x32xf32>
    %271 = arith.addf %267, %270 : vector<8x32xf32>
    %cst_102 = arith.constant 0.000000e+00 : f32
    %272 = vector.broadcast %cst_102 : f32 to vector<8x32xf32>
    %273 = arith.maximumf %271, %272 : vector<8x32xf32>
    %274 = arith.truncf %273 : vector<8x32xf32> to vector<8x32xbf16>
    %c0_103 = arith.constant 0 : index
    %c0_104 = arith.constant 0 : index
    %c0_105 = arith.constant 0 : index
    %275 = vector.load %arg23[%c0_103, %c0_104, %c0_105] : memref<1x32x32xbf16, #tpu.memory_space<vmem>>, vector<1x32x32xbf16>
    %276 = vector.shape_cast %275 : vector<1x32x32xbf16> to vector<32x32xbf16>
    %cst_106 = arith.constant dense<0.000000e+00> : vector<8x32xf32>
    %277 = tpu.matmul %274, %276, %cst_106 {dimension_numbers = #tpu.dot_dimension_numbers<[1], [0], [0], [1], [0, 0, 1, 1], [], []>} : vector<8x32xbf16>, vector<32x32xbf16>, vector<8x32xf32> -> vector<8x32xf32>
    %c0_107 = arith.constant 0 : index
    %c0_108 = arith.constant 0 : index
    %c0_109 = arith.constant 0 : index
    %278 = vector.load %arg24[%c0_107, %c0_108, %c0_109] : memref<1x1x32xf32, #tpu.memory_space<vmem>>, vector<1x1x32xf32>
    %279 = vector.shape_cast %278 : vector<1x1x32xf32> to vector<1x32xf32>
    %280 = vector.broadcast %279 : vector<1x32xf32> to vector<8x32xf32>
    %281 = arith.addf %277, %280 : vector<8x32xf32>
    %282 = arith.addf %263, %281 : vector<8x32xf32>
    %c0_110 = arith.constant 0 : index
    %c0_111 = arith.constant 0 : index
    %c0_112 = arith.constant 0 : index
    %283 = vector.load %arg19[%c0_110, %c0_111, %c0_112] : memref<1x1x32xf32, #tpu.memory_space<vmem>>, vector<1x1x32xf32>
    %284 = vector.shape_cast %283 : vector<1x1x32xf32> to vector<1x32xf32>
    %c0_113 = arith.constant 0 : index
    %c0_114 = arith.constant 0 : index
    %c0_115 = arith.constant 0 : index
    %285 = vector.load %arg20[%c0_113, %c0_114, %c0_115] : memref<1x1x32xf32, #tpu.memory_space<vmem>>, vector<1x1x32xf32>
    %286 = vector.shape_cast %285 : vector<1x1x32xf32> to vector<1x32xf32>
    %cst_116 = arith.constant dense<0.000000e+00> : vector<8xf32>
    %287 = vector.multi_reduction <add>, %282, %cst_116 [1] : vector<8x32xf32> to vector<8xf32>
    %288 = vector.shape_cast %287 : vector<8xf32> to vector<8x1xf32>
    %cst_117 = arith.constant 3.200000e+01 : f32
    %289 = vector.broadcast %cst_117 : f32 to vector<8x1xf32>
    %290 = arith.divf %288, %289 : vector<8x1xf32>
    %291 = vector.broadcast %290 : vector<8x1xf32> to vector<8x32xf32>
    %292 = arith.subf %282, %291 : vector<8x32xf32>
    %293 = arith.mulf %292, %292 : vector<8x32xf32>
    %cst_118 = arith.constant dense<0.000000e+00> : vector<8xf32>
    %294 = vector.multi_reduction <add>, %293, %cst_118 [1] : vector<8x32xf32> to vector<8xf32>
    %295 = vector.shape_cast %294 : vector<8xf32> to vector<8x1xf32>
    %cst_119 = arith.constant 3.200000e+01 : f32
    %296 = vector.broadcast %cst_119 : f32 to vector<8x1xf32>
    %297 = arith.divf %295, %296 : vector<8x1xf32>
    %298 = vector.broadcast %290 : vector<8x1xf32> to vector<8x32xf32>
    %299 = arith.subf %282, %298 : vector<8x32xf32>
    %cst_120 = arith.constant 9.99999974E-6 : f32
    %300 = vector.broadcast %cst_120 : f32 to vector<8x1xf32>
    %301 = arith.addf %297, %300 : vector<8x1xf32>
    %302 = math.rsqrt %301 : vector<8x1xf32>
    %303 = vector.broadcast %302 : vector<8x1xf32> to vector<8x32xf32>
    %304 = arith.mulf %299, %303 : vector<8x32xf32>
    %305 = vector.broadcast %284 : vector<1x32xf32> to vector<8x32xf32>
    %306 = arith.mulf %304, %305 : vector<8x32xf32>
    %307 = vector.broadcast %286 : vector<1x32xf32> to vector<8x32xf32>
    %308 = arith.addf %306, %307 : vector<8x32xf32>
    %c0_121 = arith.constant 0 : index
    %c0_122 = arith.constant 0 : index
    %309 = vector.load %arg28[%c0_121, %c0_122] : memref<8x32xf32, #tpu.memory_space<vmem>>, vector<8x32xf32>
    tpu.vector_store %arg28[%c0_121, %c0_122], %308 {strides = array<i32>} : memref<8x32xf32, #tpu.memory_space<vmem>>, vector<8x32xf32>,
    %c1_i32 = arith.constant 1 : i32
    %310 = arith.cmpi eq, %arg1, %c1_i32 : i32
    %311 = arith.extui %310 : i1 to i32
    %c0_i32_123 = arith.constant 0 : i32
    %312 = arith.cmpi ne, %311, %c0_i32_123 : i32
    scf.if %312 {
      %313 = arith.truncf %308 : vector<8x32xf32> to vector<8x32xbf16>
      %c0_124 = arith.constant 0 : index
      %c0_125 = arith.constant 0 : index
      %314 = vector.load %arg25[%c0_124, %c0_125] : memref<32x128xbf16, #tpu.memory_space<vmem>>, vector<32x128xbf16>
      %cst_126 = arith.constant dense<0.000000e+00> : vector<8x128xf32>
      %315 = tpu.matmul %313, %314, %cst_126 {dimension_numbers = #tpu.dot_dimension_numbers<[1], [0], [0], [1], [0, 0, 1, 1], [], []>} : vector<8x32xbf16>, vector<32x128xbf16>, vector<8x128xf32> -> vector<8x128xf32>
      %c0_127 = arith.constant 0 : index
      %c0_128 = arith.constant 0 : index
      %316 = vector.load %arg26[%c0_127, %c0_128] : memref<1x128xf32, #tpu.memory_space<vmem>>, vector<1x128xf32>
      %317 = vector.broadcast %316 : vector<1x128xf32> to vector<8x128xf32>
      %318 = arith.addf %315, %317 : vector<8x128xf32>
      %c0_129 = arith.constant 0 : index
      %c0_130 = arith.constant 0 : index
      %c0_131 = arith.constant 0 : index
      %319 = vector.load %arg27[%c0_129, %c0_130, %c0_131] : memref<1x8x128xf32, #tpu.memory_space<vmem>>, vector<1x8x128xf32>
      %320 = vector.shape_cast %319 : vector<1x8x128xf32> to vector<8x128xf32>
      %321 = vector.shape_cast %318 : vector<8x128xf32> to vector<1x8x128xf32>
      tpu.vector_store %arg27[%c0_129, %c0_130, %c0_131], %321 {strides = array<i32>} : memref<1x8x128xf32, #tpu.memory_space<vmem>>, vector<1x8x128xf32>,
    } else {
    }
    return
  }
  func.func @transform_0(%arg0: i32, %arg1: i32) -> (i32, i32, i32) {
    %c0_i32 = arith.constant 0 : i32
    %c0_i32_0 = arith.constant 0 : i32
    %c0_i32_1 = arith.constant 0 : i32
    return %arg0, %c0_i32, %c0_i32_0 : i32, i32, i32
  }
  func.func @transform_1(%arg0: i32, %arg1: i32) -> (i32, i32, i32) {
    %c0_i32 = arith.constant 0 : i32
    %c0_i32_0 = arith.constant 0 : i32
    %c0_i32_1 = arith.constant 0 : i32
    return %arg0, %c0_i32, %c0_i32_0 : i32, i32, i32
  }
  func.func @transform_2(%arg0: i32, %arg1: i32) -> (i32, i32) {
    %c0_i32 = arith.constant 0 : i32
    %c0_i32_0 = arith.constant 0 : i32
    %c0_i32_1 = arith.constant 0 : i32
    return %c0_i32, %c0_i32_0 : i32, i32
  }
  func.func @transform_3(%arg0: i32, %arg1: i32) -> (i32, i32, i32) {
    %c0_i32 = arith.constant 0 : i32
    %c0_i32_0 = arith.constant 0 : i32
    %c0_i32_1 = arith.constant 0 : i32
    return %arg1, %c0_i32, %c0_i32_0 : i32, i32, i32
  }
  func.func @transform_4(%arg0: i32, %arg1: i32) -> (i32, i32, i32) {
    %c0_i32 = arith.constant 0 : i32
    %c0_i32_0 = arith.constant 0 : i32
    %c0_i32_1 = arith.constant 0 : i32
    return %arg1, %c0_i32, %c0_i32_0 : i32, i32, i32
  }
  func.func @transform_5(%arg0: i32, %arg1: i32) -> (i32, i32, i32) {
    %c0_i32 = arith.constant 0 : i32
    %c0_i32_0 = arith.constant 0 : i32
    %c0_i32_1 = arith.constant 0 : i32
    return %arg1, %c0_i32, %c0_i32_0 : i32, i32, i32
  }
  func.func @transform_6(%arg0: i32, %arg1: i32) -> (i32, i32, i32) {
    %c0_i32 = arith.constant 0 : i32
    %c0_i32_0 = arith.constant 0 : i32
    %c0_i32_1 = arith.constant 0 : i32
    return %arg1, %c0_i32, %c0_i32_0 : i32, i32, i32
  }
  func.func @transform_7(%arg0: i32, %arg1: i32) -> (i32, i32, i32) {
    %c0_i32 = arith.constant 0 : i32
    %c0_i32_0 = arith.constant 0 : i32
    %c0_i32_1 = arith.constant 0 : i32
    return %arg1, %c0_i32, %c0_i32_0 : i32, i32, i32
  }
  func.func @transform_8(%arg0: i32, %arg1: i32) -> (i32, i32, i32) {
    %c0_i32 = arith.constant 0 : i32
    %c0_i32_0 = arith.constant 0 : i32
    %c0_i32_1 = arith.constant 0 : i32
    return %arg1, %c0_i32, %c0_i32_0 : i32, i32, i32
  }
  func.func @transform_9(%arg0: i32, %arg1: i32) -> (i32, i32, i32) {
    %c0_i32 = arith.constant 0 : i32
    %c0_i32_0 = arith.constant 0 : i32
    %c0_i32_1 = arith.constant 0 : i32
    return %arg1, %c0_i32, %c0_i32_0 : i32, i32, i32
  }
  func.func @transform_10(%arg0: i32, %arg1: i32) -> (i32, i32, i32) {
    %c0_i32 = arith.constant 0 : i32
    %c0_i32_0 = arith.constant 0 : i32
    %c0_i32_1 = arith.constant 0 : i32
    return %arg1, %c0_i32, %c0_i32_0 : i32, i32, i32
  }
  func.func @transform_11(%arg0: i32, %arg1: i32) -> (i32, i32, i32) {
    %c0_i32 = arith.constant 0 : i32
    %c0_i32_0 = arith.constant 0 : i32
    %c0_i32_1 = arith.constant 0 : i32
    return %arg1, %c0_i32, %c0_i32_0 : i32, i32, i32
  }
  func.func @transform_12(%arg0: i32, %arg1: i32) -> (i32, i32, i32) {
    %c0_i32 = arith.constant 0 : i32
    %c0_i32_0 = arith.constant 0 : i32
    %c0_i32_1 = arith.constant 0 : i32
    return %arg1, %c0_i32, %c0_i32_0 : i32, i32, i32
  }
  func.func @transform_13(%arg0: i32, %arg1: i32) -> (i32, i32, i32) {
    %c0_i32 = arith.constant 0 : i32
    %c0_i32_0 = arith.constant 0 : i32
    %c0_i32_1 = arith.constant 0 : i32
    return %arg1, %c0_i32, %c0_i32_0 : i32, i32, i32
  }
  func.func @transform_14(%arg0: i32, %arg1: i32) -> (i32, i32, i32) {
    %c0_i32 = arith.constant 0 : i32
    %c0_i32_0 = arith.constant 0 : i32
    %c0_i32_1 = arith.constant 0 : i32
    return %arg1, %c0_i32, %c0_i32_0 : i32, i32, i32
  }
  func.func @transform_15(%arg0: i32, %arg1: i32) -> (i32, i32, i32) {
    %c0_i32 = arith.constant 0 : i32
    %c0_i32_0 = arith.constant 0 : i32
    %c0_i32_1 = arith.constant 0 : i32
    return %arg1, %c0_i32, %c0_i32_0 : i32, i32, i32
  }
  func.func @transform_16(%arg0: i32, %arg1: i32) -> (i32, i32, i32) {
    %c0_i32 = arith.constant 0 : i32
    %c0_i32_0 = arith.constant 0 : i32
    %c0_i32_1 = arith.constant 0 : i32
    return %arg1, %c0_i32, %c0_i32_0 : i32, i32, i32
  }
  func.func @transform_17(%arg0: i32, %arg1: i32) -> (i32, i32, i32) {
    %c0_i32 = arith.constant 0 : i32
    %c0_i32_0 = arith.constant 0 : i32
    %c0_i32_1 = arith.constant 0 : i32
    return %arg1, %c0_i32, %c0_i32_0 : i32, i32, i32
  }
  func.func @transform_18(%arg0: i32, %arg1: i32) -> (i32, i32, i32) {
    %c0_i32 = arith.constant 0 : i32
    %c0_i32_0 = arith.constant 0 : i32
    %c0_i32_1 = arith.constant 0 : i32
    return %arg1, %c0_i32, %c0_i32_0 : i32, i32, i32
  }
  func.func @transform_19(%arg0: i32, %arg1: i32) -> (i32, i32, i32) {
    %c0_i32 = arith.constant 0 : i32
    %c0_i32_0 = arith.constant 0 : i32
    %c0_i32_1 = arith.constant 0 : i32
    return %arg1, %c0_i32, %c0_i32_0 : i32, i32, i32
  }
  func.func @transform_20(%arg0: i32, %arg1: i32) -> (i32, i32, i32) {
    %c0_i32 = arith.constant 0 : i32
    %c0_i32_0 = arith.constant 0 : i32
    %c0_i32_1 = arith.constant 0 : i32
    return %arg1, %c0_i32, %c0_i32_0 : i32, i32, i32
  }
  func.func @transform_21(%arg0: i32, %arg1: i32) -> (i32, i32, i32) {
    %c0_i32 = arith.constant 0 : i32
    %c0_i32_0 = arith.constant 0 : i32
    %c0_i32_1 = arith.constant 0 : i32
    return %arg1, %c0_i32, %c0_i32_0 : i32, i32, i32
  }
  func.func @transform_22(%arg0: i32, %arg1: i32) -> (i32, i32, i32) {
    %c0_i32 = arith.constant 0 : i32
    %c0_i32_0 = arith.constant 0 : i32
    %c0_i32_1 = arith.constant 0 : i32
    return %arg1, %c0_i32, %c0_i32_0 : i32, i32, i32
  }
  func.func @transform_23(%arg0: i32, %arg1: i32) -> (i32, i32) {
    %c0_i32 = arith.constant 0 : i32
    %c0_i32_0 = arith.constant 0 : i32
    %c0_i32_1 = arith.constant 0 : i32
    return %c0_i32, %c0_i32_0 : i32, i32
  }
  func.func @transform_24(%arg0: i32, %arg1: i32) -> (i32, i32) {
    %c0_i32 = arith.constant 0 : i32
    %c0_i32_0 = arith.constant 0 : i32
    %c0_i32_1 = arith.constant 0 : i32
    return %c0_i32, %c0_i32_0 : i32, i32
  }
  func.func @transform_25(%arg0: i32, %arg1: i32) -> (i32, i32, i32) {
    %c0_i32 = arith.constant 0 : i32
    %c0_i32_0 = arith.constant 0 : i32
    %c0_i32_1 = arith.constant 0 : i32
    return %arg0, %c0_i32, %c0_i32_0 : i32, i32, i32
  }
}

</mosaic_0001>

<llo_original>
// kernel: decoder_forward.1
$region0: #{decoder_forward.1}
  #allocation0 [shape = 'u32[]', space=smem, size = 0x4, offset = 0x4, fixed_abs, tag = 'smem constant byte address 0x4 - core index']
  #allocation1 [shape = 'u32[144,128]{1,0:T(1,128)}', space=vmem, size = 0x12000, scoped, tag = 'internal scratch']
  #allocation2 [shape = 'f32[8,32]{1,0:T(8,128)}', space=vmem, size = 0x1000, scoped, tag = 'scratch operand']
  %s0 = inlined_call_operand.vmem [shape: f32[2,8,32], index: 0, kind: input, shape index: {}]
  %s1 = inlined_call_operand.vmem [shape: f32[2,8,32], index: 1, kind: input, shape index: {}]
  %s2 = inlined_call_operand.vmem [shape: f32[8,8], index: 2, kind: input, shape index: {}]
  %s3 = inlined_call_operand.vmem [shape: bf16[2,32,96], index: 3, kind: input, shape index: {}]
  %s4 = inlined_call_operand.vmem [shape: f32[2,1,96], index: 4, kind: input, shape index: {}]
  %s5 = inlined_call_operand.vmem [shape: bf16[2,32,32], index: 5, kind: input, shape index: {}]
  %s6 = inlined_call_operand.vmem [shape: f32[2,1,32], index: 6, kind: input, shape index: {}]
  %s7 = inlined_call_operand.vmem [shape: bf16[2,32,32], index: 7, kind: input, shape index: {}]
  %s8 = inlined_call_operand.vmem [shape: f32[2,1,32], index: 8, kind: input, shape index: {}]
  %s9 = inlined_call_operand.vmem [shape: bf16[2,32,64], index: 9, kind: input, shape index: {}]
  %s10 = inlined_call_operand.vmem [shape: f32[2,1,64], index: 10, kind: input, shape index: {}]
  %s11 = inlined_call_operand.vmem [shape: bf16[2,32,32], index: 11, kind: input, shape index: {}]
  %s12 = inlined_call_operand.vmem [shape: f32[2,1,32], index: 12, kind: input, shape index: {}]
  %s13 = inlined_call_operand.vmem [shape: f32[2,1,32], index: 13, kind: input, shape index: {}]
  %s14 = inlined_call_operand.vmem [shape: f32[2,1,32], index: 14, kind: input, shape index: {}]
  %s15 = inlined_call_operand.vmem [shape: f32[2,1,32], index: 15, kind: input, shape index: {}]
  %s16 = inlined_call_operand.vmem [shape: f32[2,1,32], index: 16, kind: input, shape index: {}]
  %s17 = inlined_call_operand.vmem [shape: f32[2,1,32], index: 17, kind: input, shape index: {}]
  %s18 = inlined_call_operand.vmem [shape: f32[2,1,32], index: 18, kind: input, shape index: {}]
  %s19 = inlined_call_operand.vmem [shape: bf16[2,32,32], index: 19, kind: input, shape index: {}]
  %s20 = inlined_call_operand.vmem [shape: f32[2,1,32], index: 20, kind: input, shape index: {}]
  %s21 = inlined_call_operand.vmem [shape: bf16[2,32,32], index: 21, kind: input, shape index: {}]
  %s22 = inlined_call_operand.vmem [shape: f32[2,1,32], index: 22, kind: input, shape index: {}]
  %s23 = inlined_call_operand.vmem [shape: bf16[32,128], index: 23, kind: input, shape index: {}]
  %s24 = inlined_call_operand.vmem [shape: f32[1,128], index: 24, kind: input, shape index: {}]
  %s25 = inlined_call_operand.hbm [shape: f32[2,8,128], index: 25, kind: output, shape index: {}]
  %s26 = sld [smem:[#allocation0]]
  $region141: #{decoder_forward.1} parent=0
    _
  %s28 = ssub.s32 1, %s26
  %s29 = scalar_select 0, %s28, %s26
  $region1: #{decoder_forward.1} parent=0
    #allocation3 [shape = 'u8[8192]{0}', space=vmem, size = 0x2000, scoped, tag = 'output window, operand 0']
    #allocation4 [shape = 's32[2]{0}', space=sflag, size = 0x8, scoped, tag = 'scoped memory for decoder_forward.1']
    %30 = vsyncpa [#allocation4], 0
    %s31 = scalar_lea.sflag [#allocation4], 1
    %32 = vsyncpa %s31, 0
    loop: start=0, step=1, limit=6
    $region2: #{decoder_forward.1} parent=1 // loop_pre_header
      _
    $region3: #{decoder_forward.1} parent=1 // loop_header
      %s34 = sphi 0, %s38
      %p35 = scmp.ge.s32.totalorder %s34, 6
      %s41 = sphi 0, %s53
      %s42 = sphi 0, %s49
      %s43 = sphi 0, %s41
      %s44 = sphi 0, %s42
      %s45 = sphi 0, %s43
      %s46 = sphi 0, %s44
      %s56 = sphi 0, %s58
      %s59 = sphi 0, %s56
      %s60 = sphi 0, %s59
      %s76 = sphi 0, %s60
      %s82 = sphi 0, %s84
      %s85 = sphi 0, %s82
      %s86 = sphi 0, %s85
      %s102 = sphi 0, %s86
      %s106 = sphi 0, %s106
      %s108 = sphi 0, %s106
      %s109 = sphi 0, %s108
      %s123 = sphi 0, %s109
      %s129 = sphi 0, %s131
      %s132 = sphi 0, %s129
      %s133 = sphi 0, %s132
      %s149 = sphi 0, %s133
      %s155 = sphi 0, %s157
      %s158 = sphi 0, %s155
      %s159 = sphi 0, %s158
      %s175 = sphi 0, %s159
      %s181 = sphi 0, %s183
      %s184 = sphi 0, %s181
      %s185 = sphi 0, %s184
      %s201 = sphi 0, %s185
      %s207 = sphi 0, %s209
      %s210 = sphi 0, %s207
      %s211 = sphi 0, %s210
      %s227 = sphi 0, %s211
      %s233 = sphi 0, %s235
      %s236 = sphi 0, %s233
      %s237 = sphi 0, %s236
      %s253 = sphi 0, %s237
      %s259 = sphi 0, %s261
      %s262 = sphi 0, %s259
      %s263 = sphi 0, %s262
      %s279 = sphi 0, %s263
      %s285 = sphi 0, %s287
      %s288 = sphi 0, %s285
      %s289 = sphi 0, %s288
      %s305 = sphi 0, %s289
      %s311 = sphi 0, %s313
      %s314 = sphi 0, %s311
      %s315 = sphi 0, %s314
      %s331 = sphi 0, %s315
      %s337 = sphi 0, %s339
      %s340 = sphi 0, %s337
      %s341 = sphi 0, %s340
      %s357 = sphi 0, %s341
      %s363 = sphi 0, %s365
      %s366 = sphi 0, %s363
      %s367 = sphi 0, %s366
      %s383 = sphi 0, %s367
      %s389 = sphi 0, %s391
      %s392 = sphi 0, %s389
      %s393 = sphi 0, %s392
      %s409 = sphi 0, %s393
      %s415 = sphi 0, %s417
      %s418 = sphi 0, %s415
      %s419 = sphi 0, %s418
      %s435 = sphi 0, %s419
      %s441 = sphi 0, %s443
      %s444 = sphi 0, %s441
      %s445 = sphi 0, %s444
      %s461 = sphi 0, %s445
      %s467 = sphi 0, %s469
      %s470 = sphi 0, %s467
      %s471 = sphi 0, %s470
      %s487 = sphi 0, %s471
      %s493 = sphi 0, %s495
      %s496 = sphi 0, %s493
      %s497 = sphi 0, %s496
      %s513 = sphi 0, %s497
      %s519 = sphi 0, %s521
      %s522 = sphi 0, %s519
      %s523 = sphi 0, %s522
      %s539 = sphi 0, %s523
      %s545 = sphi 0, %s547
      %s548 = sphi 0, %s545
      %s549 = sphi 0, %s548
      %s565 = sphi 0, %s549
      %s571 = sphi 0, %s573
      %s574 = sphi 0, %s571
      %s575 = sphi 0, %s574
      %s591 = sphi 0, %s575
      %s597 = sphi 0, %s599
      %s600 = sphi 0, %s597
      %s601 = sphi 0, %s600
      %s617 = sphi 0, %s601
      %s623 = sphi 0, %s625
      %s626 = sphi 0, %s623
      %s627 = sphi 0, %s626
      %s643 = sphi 0, %s627
      %s647 = sphi 0, %s647
      %s649 = sphi 0, %s647
      %s650 = sphi 0, %s649
      %s664 = sphi 0, %s650
      %s668 = sphi 0, %s668
      %s670 = sphi 0, %s668
      %s671 = sphi 0, %s670
      %s685 = sphi 0, %s671
      %s691 = sphi 0, %s693
      %s694 = sphi 0, %s691
      %s695 = sphi 0, %s694
      %s711 = sphi 0, %s695
    $region4: #{decoder_forward.1} parent=1 // loop_header_branch
      %37 = sbr.rel (%p35) target = $region8
    $region5: #{decoder_forward.1} parent=1 // loop_body
      %s39 = ssub.s32 %s34, 1
      %s40 = ssub.s32 %s34, 2
      %s47 = sadd.s32 1, %s42
      %p48 = scmp.ge.s32.totalorder %s47, 2
      %s49 = scalar_select %p48, 0, %s47
      %s50 = sadd.s32 1, %s41
      %s51 = scalar_select %p48, %s50, %s41
      %p52 = scmp.ge.s32.totalorder %s51, 2
      %s53 = scalar_select %p52, 0, %s51
      %s54 = ssub.s32 %s41, %s53
      %p55 = scmp.eq.s32.totalorder %s54, 0
      %s57 = sadd.s32 %s56, 1
      %s58 = scalar_select %p55, %s56, %s57
      %p61 = pneg %p55
      %p62 = scmp.eq.s32.totalorder %s34, 3
      %p63 = por %p61, %p62
      %p64 = scmp.ne.s32.totalorder %s56, %s59
      %p65 = scmp.eq.s32.totalorder %s34, 0
      %p66 = por %p64, %p65
      %p67 = scmp.ne.s32.totalorder %s56, %s59
      %p68 = scmp.eq.s32.totalorder %s39, 3
      %p69 = por %p67, %p68
      %p70 = scmp.ne.s32.totalorder %s59, %s60
      %p71 = scmp.eq.s32.totalorder %s39, 0
      %p72 = por %p70, %p71
      %p73 = scmp.ne.s32.totalorder %s59, %s60
      %p74 = scmp.eq.s32.totalorder %s40, 3
      %p75 = por %p73, %p74
      %p77 = scmp.ne.s32.totalorder %s60, %s76
      %p78 = scmp.eq.s32.totalorder %s40, 0
      %p79 = por %p77, %p78
      %s80 = ssub.s32 %s41, %s53
      %p81 = scmp.eq.s32.totalorder %s80, 0
      %s83 = sadd.s32 %s82, 1
      %s84 = scalar_select %p81, %s82, %s83
      %p87 = pneg %p81
      %p88 = scmp.eq.s32.totalorder %s34, 3
      %p89 = por %p87, %p88
      %p90 = scmp.ne.s32.totalorder %s82, %s85
      %p91 = scmp.eq.s32.totalorder %s34, 0
      %p92 = por %p90, %p91
      %p93 = scmp.ne.s32.totalorder %s82, %s85
      %p94 = scmp.eq.s32.totalorder %s39, 3
      %p95 = por %p93, %p94
      %p96 = scmp.ne.s32.totalorder %s85, %s86
      %p97 = scmp.eq.s32.totalorder %s39, 0
      %p98 = por %p96, %p97
      %p99 = scmp.ne.s32.totalorder %s85, %s86
      %p100 = scmp.eq.s32.totalorder %s40, 3
      %p101 = por %p99, %p100
      %p103 = scmp.ne.s32.totalorder %s86, %s102
      %p104 = scmp.eq.s32.totalorder %s40, 0
      %p105 = por %p103, %p104
      %s107 = sadd.s32 %s106, 1
      %p110 = scmp.eq.s32.totalorder %s34, 3
      %p111 = scmp.ne.s32.totalorder %s106, %s108
      %p112 = scmp.eq.s32.totalorder %s34, 0
      %p113 = por %p111, %p112
      %p114 = scmp.ne.s32.totalorder %s106, %s108
      %p115 = scmp.eq.s32.totalorder %s39, 3
      %p116 = por %p114, %p115
      %p117 = scmp.ne.s32.totalorder %s108, %s109
      %p118 = scmp.eq.s32.totalorder %s39, 0
      %p119 = por %p117, %p118
      %p120 = scmp.ne.s32.totalorder %s108, %s109
      %p121 = scmp.eq.s32.totalorder %s40, 3
      %p122 = por %p120, %p121
      %p124 = scmp.ne.s32.totalorder %s109, %s123
      %p125 = scmp.eq.s32.totalorder %s40, 0
      %p126 = por %p124, %p125
      %s127 = ssub.s32 %s42, %s49
      %p128 = scmp.eq.s32.totalorder %s127, 0
      %s130 = sadd.s32 %s129, 1
      %s131 = scalar_select %p128, %s129, %s130
      %p134 = pneg %p128
      %p135 = scmp.eq.s32.totalorder %s34, 3
      %p136 = por %p134, %p135
      %p137 = scmp.ne.s32.totalorder %s129, %s132
      %p138 = scmp.eq.s32.totalorder %s34, 0
      %p139 = por %p137, %p138
      %p140 = scmp.ne.s32.totalorder %s129, %s132
      %p141 = scmp.eq.s32.totalorder %s39, 3
      %p142 = por %p140, %p141
      %p143 = scmp.ne.s32.totalorder %s132, %s133
      %p144 = scmp.eq.s32.totalorder %s39, 0
      %p145 = por %p143, %p144
      %p146 = scmp.ne.s32.totalorder %s132, %s133
      %p147 = scmp.eq.s32.totalorder %s40, 3
      %p148 = por %p146, %p147
      %p150 = scmp.ne.s32.totalorder %s133, %s149
      %p151 = scmp.eq.s32.totalorder %s40, 0
      %p152 = por %p150, %p151
      %s153 = ssub.s32 %s42, %s49
      %p154 = scmp.eq.s32.totalorder %s153, 0
      %s156 = sadd.s32 %s155, 1
      %s157 = scalar_select %p154, %s155, %s156
      %p160 = pneg %p154
      %p161 = scmp.eq.s32.totalorder %s34, 3
      %p162 = por %p160, %p161
      %p163 = scmp.ne.s32.totalorder %s155, %s158
      %p164 = scmp.eq.s32.totalorder %s34, 0
      %p165 = por %p163, %p164
      %p166 = scmp.ne.s32.totalorder %s155, %s158
      %p167 = scmp.eq.s32.totalorder %s39, 3
      %p168 = por %p166, %p167
      %p169 = scmp.ne.s32.totalorder %s158, %s159
      %p170 = scmp.eq.s32.totalorder %s39, 0
      %p171 = por %p169, %p170
      %p172 = scmp.ne.s32.totalorder %s158, %s159
      %p173 = scmp.eq.s32.totalorder %s40, 3
      %p174 = por %p172, %p173
      %p176 = scmp.ne.s32.totalorder %s159, %s175
      %p177 = scmp.eq.s32.totalorder %s40, 0
      %p178 = por %p176, %p177
      %s179 = ssub.s32 %s42, %s49
      %p180 = scmp.eq.s32.totalorder %s179, 0
      %s182 = sadd.s32 %s181, 1
      %s183 = scalar_select %p180, %s181, %s182
      %p186 = pneg %p180
      %p187 = scmp.eq.s32.totalorder %s34, 3
      %p188 = por %p186, %p187
      %p189 = scmp.ne.s32.totalorder %s181, %s184
      %p190 = scmp.eq.s32.totalorder %s34, 0
      %p191 = por %p189, %p190
      %p192 = scmp.ne.s32.totalorder %s181, %s184
      %p193 = scmp.eq.s32.totalorder %s39, 3
      %p194 = por %p192, %p193
      %p195 = scmp.ne.s32.totalorder %s184, %s185
      %p196 = scmp.eq.s32.totalorder %s39, 0
      %p197 = por %p195, %p196
      %p198 = scmp.ne.s32.totalorder %s184, %s185
      %p199 = scmp.eq.s32.totalorder %s40, 3
      %p200 = por %p198, %p199
      %p202 = scmp.ne.s32.totalorder %s185, %s201
      %p203 = scmp.eq.s32.totalorder %s40, 0
      %p204 = por %p202, %p203
      %s205 = ssub.s32 %s42, %s49
      %p206 = scmp.eq.s32.totalorder %s205, 0
      %s208 = sadd.s32 %s207, 1
      %s209 = scalar_select %p206, %s207, %s208
      %p212 = pneg %p206
      %p213 = scmp.eq.s32.totalorder %s34, 3
      %p214 = por %p212, %p213
      %p215 = scmp.ne.s32.totalorder %s207, %s210
      %p216 = scmp.eq.s32.totalorder %s34, 0
      %p217 = por %p215, %p216
      %p218 = scmp.ne.s32.totalorder %s207, %s210
      %p219 = scmp.eq.s32.totalorder %s39, 3
      %p220 = por %p218, %p219
      %p221 = scmp.ne.s32.totalorder %s210, %s211
      %p222 = scmp.eq.s32.totalorder %s39, 0
      %p223 = por %p221, %p222
      %p224 = scmp.ne.s32.totalorder %s210, %s211
      %p225 = scmp.eq.s32.totalorder %s40, 3
      %p226 = por %p224, %p225
      %p228 = scmp.ne.s32.totalorder %s211, %s227
      %p229 = scmp.eq.s32.totalorder %s40, 0
      %p230 = por %p228, %p229
      %s231 = ssub.s32 %s42, %s49
      %p232 = scmp.eq.s32.totalorder %s231, 0
      %s234 = sadd.s32 %s233, 1
      %s235 = scalar_select %p232, %s233, %s234
      %p238 = pneg %p232
      %p239 = scmp.eq.s32.totalorder %s34, 3
      %p240 = por %p238, %p239
      %p241 = scmp.ne.s32.totalorder %s233, %s236
      %p242 = scmp.eq.s32.totalorder %s34, 0
      %p243 = por %p241, %p242
      %p244 = scmp.ne.s32.totalorder %s233, %s236
      %p245 = scmp.eq.s32.totalorder %s39, 3
      %p246 = por %p244, %p245
      %p247 = scmp.ne.s32.totalorder %s236, %s237
      %p248 = scmp.eq.s32.totalorder %s39, 0
      %p249 = por %p247, %p248
      %p250 = scmp.ne.s32.totalorder %s236, %s237
      %p251 = scmp.eq.s32.totalorder %s40, 3
      %p252 = por %p250, %p251
      %p254 = scmp.ne.s32.totalorder %s237, %s253
      %p255 = scmp.eq.s32.totalorder %s40, 0
      %p256 = por %p254, %p255
      %s257 = ssub.s32 %s42, %s49
      %p258 = scmp.eq.s32.totalorder %s257, 0
      %s260 = sadd.s32 %s259, 1
      %s261 = scalar_select %p258, %s259, %s260
      %p264 = pneg %p258
      %p265 = scmp.eq.s32.totalorder %s34, 3
      %p266 = por %p264, %p265
      %p267 = scmp.ne.s32.totalorder %s259, %s262
      %p268 = scmp.eq.s32.totalorder %s34, 0
      %p269 = por %p267, %p268
      %p270 = scmp.ne.s32.totalorder %s259, %s262
      %p271 = scmp.eq.s32.totalorder %s39, 3
      %p272 = por %p270, %p271
      %p273 = scmp.ne.s32.totalorder %s262, %s263
      %p274 = scmp.eq.s32.totalorder %s39, 0
      %p275 = por %p273, %p274
      %p276 = scmp.ne.s32.totalorder %s262, %s263
      %p277 = scmp.eq.s32.totalorder %s40, 3
      %p278 = por %p276, %p277
      %p280 = scmp.ne.s32.totalorder %s263, %s279
      %p281 = scmp.eq.s32.totalorder %s40, 0
      %p282 = por %p280, %p281
      %s283 = ssub.s32 %s42, %s49
      %p284 = scmp.eq.s32.totalorder %s283, 0
      %s286 = sadd.s32 %s285, 1
      %s287 = scalar_select %p284, %s285, %s286
      %p290 = pneg %p284
      %p291 = scmp.eq.s32.totalorder %s34, 3
      %p292 = por %p290, %p291
      %p293 = scmp.ne.s32.totalorder %s285, %s288
      %p294 = scmp.eq.s32.totalorder %s34, 0
      %p295 = por %p293, %p294
      %p296 = scmp.ne.s32.totalorder %s285, %s288
      %p297 = scmp.eq.s32.totalorder %s39, 3
      %p298 = por %p296, %p297
      %p299 = scmp.ne.s32.totalorder %s288, %s289
      %p300 = scmp.eq.s32.totalorder %s39, 0
      %p301 = por %p299, %p300
      %p302 = scmp.ne.s32.totalorder %s288, %s289
      %p303 = scmp.eq.s32.totalorder %s40, 3
      %p304 = por %p302, %p303
      %p306 = scmp.ne.s32.totalorder %s289, %s305
      %p307 = scmp.eq.s32.totalorder %s40, 0
      %p308 = por %p306, %p307
      %s309 = ssub.s32 %s42, %s49
      %p310 = scmp.eq.s32.totalorder %s309, 0
      %s312 = sadd.s32 %s311, 1
      %s313 = scalar_select %p310, %s311, %s312
      %p316 = pneg %p310
      %p317 = scmp.eq.s32.totalorder %s34, 3
      %p318 = por %p316, %p317
      %p319 = scmp.ne.s32.totalorder %s311, %s314
      %p320 = scmp.eq.s32.totalorder %s34, 0
      %p321 = por %p319, %p320
      %p322 = scmp.ne.s32.totalorder %s311, %s314
      %p323 = scmp.eq.s32.totalorder %s39, 3
      %p324 = por %p322, %p323
      %p325 = scmp.ne.s32.totalorder %s314, %s315
      %p326 = scmp.eq.s32.totalorder %s39, 0
      %p327 = por %p325, %p326
      %p328 = scmp.ne.s32.totalorder %s314, %s315
      %p329 = scmp.eq.s32.totalorder %s40, 3
      %p330 = por %p328, %p329
      %p332 = scmp.ne.s32.totalorder %s315, %s331
      %p333 = scmp.eq.s32.totalorder %s40, 0
      %p334 = por %p332, %p333
      %s335 = ssub.s32 %s42, %s49
      %p336 = scmp.eq.s32.totalorder %s335, 0
      %s338 = sadd.s32 %s337, 1
      %s339 = scalar_select %p336, %s337, %s338
      %p342 = pneg %p336
      %p343 = scmp.eq.s32.totalorder %s34, 3
      %p344 = por %p342, %p343
      %p345 = scmp.ne.s32.totalorder %s337, %s340
      %p346 = scmp.eq.s32.totalorder %s34, 0
      %p347 = por %p345, %p346
      %p348 = scmp.ne.s32.totalorder %s337, %s340
      %p349 = scmp.eq.s32.totalorder %s39, 3
      %p350 = por %p348, %p349
      %p351 = scmp.ne.s32.totalorder %s340, %s341
      %p352 = scmp.eq.s32.totalorder %s39, 0
      %p353 = por %p351, %p352
      %p354 = scmp.ne.s32.totalorder %s340, %s341
      %p355 = scmp.eq.s32.totalorder %s40, 3
      %p356 = por %p354, %p355
      %p358 = scmp.ne.s32.totalorder %s341, %s357
      %p359 = scmp.eq.s32.totalorder %s40, 0
      %p360 = por %p358, %p359
      %s361 = ssub.s32 %s42, %s49
      %p362 = scmp.eq.s32.totalorder %s361, 0
      %s364 = sadd.s32 %s363, 1
      %s365 = scalar_select %p362, %s363, %s364
      %p368 = pneg %p362
      %p369 = scmp.eq.s32.totalorder %s34, 3
      %p370 = por %p368, %p369
      %p371 = scmp.ne.s32.totalorder %s363, %s366
      %p372 = scmp.eq.s32.totalorder %s34, 0
      %p373 = por %p371, %p372
      %p374 = scmp.ne.s32.totalorder %s363, %s366
      %p375 = scmp.eq.s32.totalorder %s39, 3
      %p376 = por %p374, %p375
      %p377 = scmp.ne.s32.totalorder %s366, %s367
      %p378 = scmp.eq.s32.totalorder %s39, 0
      %p379 = por %p377, %p378
      %p380 = scmp.ne.s32.totalorder %s366, %s367
      %p381 = scmp.eq.s32.totalorder %s40, 3
      %p382 = por %p380, %p381
      %p384 = scmp.ne.s32.totalorder %s367, %s383
      %p385 = scmp.eq.s32.totalorder %s40, 0
      %p386 = por %p384, %p385
      %s387 = ssub.s32 %s42, %s49
      %p388 = scmp.eq.s32.totalorder %s387, 0
      %s390 = sadd.s32 %s389, 1
      %s391 = scalar_select %p388, %s389, %s390
      %p394 = pneg %p388
      %p395 = scmp.eq.s32.totalorder %s34, 3
      %p396 = por %p394, %p395
      %p397 = scmp.ne.s32.totalorder %s389, %s392
      %p398 = scmp.eq.s32.totalorder %s34, 0
      %p399 = por %p397, %p398
      %p400 = scmp.ne.s32.totalorder %s389, %s392
      %p401 = scmp.eq.s32.totalorder %s39, 3
      %p402 = por %p400, %p401
      %p403 = scmp.ne.s32.totalorder %s392, %s393
      %p404 = scmp.eq.s32.totalorder %s39, 0
      %p405 = por %p403, %p404
      %p406 = scmp.ne.s32.totalorder %s392, %s393
      %p407 = scmp.eq.s32.totalorder %s40, 3
      %p408 = por %p406, %p407
      %p410 = scmp.ne.s32.totalorder %s393, %s409
      %p411 = scmp.eq.s32.totalorder %s40, 0
      %p412 = por %p410, %p411
      %s413 = ssub.s32 %s42, %s49
      %p414 = scmp.eq.s32.totalorder %s413, 0
      %s416 = sadd.s32 %s415, 1
      %s417 = scalar_select %p414, %s415, %s416
      %p420 = pneg %p414
      %p421 = scmp.eq.s32.totalorder %s34, 3
      %p422 = por %p420, %p421
      %p423 = scmp.ne.s32.totalorder %s415, %s418
      %p424 = scmp.eq.s32.totalorder %s34, 0
      %p425 = por %p423, %p424
      %p426 = scmp.ne.s32.totalorder %s415, %s418
      %p427 = scmp.eq.s32.totalorder %s39, 3
      %p428 = por %p426, %p427
      %p429 = scmp.ne.s32.totalorder %s418, %s419
      %p430 = scmp.eq.s32.totalorder %s39, 0
      %p431 = por %p429, %p430
      %p432 = scmp.ne.s32.totalorder %s418, %s419
      %p433 = scmp.eq.s32.totalorder %s40, 3
      %p434 = por %p432, %p433
      %p436 = scmp.ne.s32.totalorder %s419, %s435
      %p437 = scmp.eq.s32.totalorder %s40, 0
      %p438 = por %p436, %p437
      %s439 = ssub.s32 %s42, %s49
      %p440 = scmp.eq.s32.totalorder %s439, 0
      %s442 = sadd.s32 %s441, 1
      %s443 = scalar_select %p440, %s441, %s442
      %p446 = pneg %p440
      %p447 = scmp.eq.s32.totalorder %s34, 3
      %p448 = por %p446, %p447
      %p449 = scmp.ne.s32.totalorder %s441, %s444
      %p450 = scmp.eq.s32.totalorder %s34, 0
      %p451 = por %p449, %p450
      %p452 = scmp.ne.s32.totalorder %s441, %s444
      %p453 = scmp.eq.s32.totalorder %s39, 3
      %p454 = por %p452, %p453
      %p455 = scmp.ne.s32.totalorder %s444, %s445
      %p456 = scmp.eq.s32.totalorder %s39, 0
      %p457 = por %p455, %p456
      %p458 = scmp.ne.s32.totalorder %s444, %s445
      %p459 = scmp.eq.s32.totalorder %s40, 3
      %p460 = por %p458, %p459
      %p462 = scmp.ne.s32.totalorder %s445, %s461
      %p463 = scmp.eq.s32.totalorder %s40, 0
      %p464 = por %p462, %p463
      %s465 = ssub.s32 %s42, %s49
      %p466 = scmp.eq.s32.totalorder %s465, 0
      %s468 = sadd.s32 %s467, 1
      %s469 = scalar_select %p466, %s467, %s468
      %p472 = pneg %p466
      %p473 = scmp.eq.s32.totalorder %s34, 3
      %p474 = por %p472, %p473
      %p475 = scmp.ne.s32.totalorder %s467, %s470
      %p476 = scmp.eq.s32.totalorder %s34, 0
      %p477 = por %p475, %p476
      %p478 = scmp.ne.s32.totalorder %s467, %s470
      %p479 = scmp.eq.s32.totalorder %s39, 3
      %p480 = por %p478, %p479
      %p481 = scmp.ne.s32.totalorder %s470, %s471
      %p482 = scmp.eq.s32.totalorder %s39, 0
      %p483 = por %p481, %p482
      %p484 = scmp.ne.s32.totalorder %s470, %s471
      %p485 = scmp.eq.s32.totalorder %s40, 3
      %p486 = por %p484, %p485
      %p488 = scmp.ne.s32.totalorder %s471, %s487
      %p489 = scmp.eq.s32.totalorder %s40, 0
      %p490 = por %p488, %p489
      %s491 = ssub.s32 %s42, %s49
      %p492 = scmp.eq.s32.totalorder %s491, 0
      %s494 = sadd.s32 %s493, 1
      %s495 = scalar_select %p492, %s493, %s494
      %p498 = pneg %p492
      %p499 = scmp.eq.s32.totalorder %s34, 3
      %p500 = por %p498, %p499
      %p501 = scmp.ne.s32.totalorder %s493, %s496
      %p502 = scmp.eq.s32.totalorder %s34, 0
      %p503 = por %p501, %p502
      %p504 = scmp.ne.s32.totalorder %s493, %s496
      %p505 = scmp.eq.s32.totalorder %s39, 3
      %p506 = por %p504, %p505
      %p507 = scmp.ne.s32.totalorder %s496, %s497
      %p508 = scmp.eq.s32.totalorder %s39, 0
      %p509 = por %p507, %p508
      %p510 = scmp.ne.s32.totalorder %s496, %s497
      %p511 = scmp.eq.s32.totalorder %s40, 3
      %p512 = por %p510, %p511
      %p514 = scmp.ne.s32.totalorder %s497, %s513
      %p515 = scmp.eq.s32.totalorder %s40, 0
      %p516 = por %p514, %p515
      %s517 = ssub.s32 %s42, %s49
      %p518 = scmp.eq.s32.totalorder %s517, 0
      %s520 = sadd.s32 %s519, 1
      %s521 = scalar_select %p518, %s519, %s520
      %p524 = pneg %p518
      %p525 = scmp.eq.s32.totalorder %s34, 3
      %p526 = por %p524, %p525
      %p527 = scmp.ne.s32.totalorder %s519, %s522
      %p528 = scmp.eq.s32.totalorder %s34, 0
      %p529 = por %p527, %p528
      %p530 = scmp.ne.s32.totalorder %s519, %s522
      %p531 = scmp.eq.s32.totalorder %s39, 3
      %p532 = por %p530, %p531
      %p533 = scmp.ne.s32.totalorder %s522, %s523
      %p534 = scmp.eq.s32.totalorder %s39, 0
      %p535 = por %p533, %p534
      %p536 = scmp.ne.s32.totalorder %s522, %s523
      %p537 = scmp.eq.s32.totalorder %s40, 3
      %p538 = por %p536, %p537
      %p540 = scmp.ne.s32.totalorder %s523, %s539
      %p541 = scmp.eq.s32.totalorder %s40, 0
      %p542 = por %p540, %p541
      %s543 = ssub.s32 %s42, %s49
      %p544 = scmp.eq.s32.totalorder %s543, 0
      %s546 = sadd.s32 %s545, 1
      %s547 = scalar_select %p544, %s545, %s546
      %p550 = pneg %p544
      %p551 = scmp.eq.s32.totalorder %s34, 3
      %p552 = por %p550, %p551
      %p553 = scmp.ne.s32.totalorder %s545, %s548
      %p554 = scmp.eq.s32.totalorder %s34, 0
      %p555 = por %p553, %p554
      %p556 = scmp.ne.s32.totalorder %s545, %s548
      %p557 = scmp.eq.s32.totalorder %s39, 3
      %p558 = por %p556, %p557
      %p559 = scmp.ne.s32.totalorder %s548, %s549
      %p560 = scmp.eq.s32.totalorder %s39, 0
      %p561 = por %p559, %p560
      %p562 = scmp.ne.s32.totalorder %s548, %s549
      %p563 = scmp.eq.s32.totalorder %s40, 3
      %p564 = por %p562, %p563
      %p566 = scmp.ne.s32.totalorder %s549, %s565
      %p567 = scmp.eq.s32.totalorder %s40, 0
      %p568 = por %p566, %p567
      %s569 = ssub.s32 %s42, %s49
      %p570 = scmp.eq.s32.totalorder %s569, 0
      %s572 = sadd.s32 %s571, 1
      %s573 = scalar_select %p570, %s571, %s572
      %p576 = pneg %p570
      %p577 = scmp.eq.s32.totalorder %s34, 3
      %p578 = por %p576, %p577
      %p579 = scmp.ne.s32.totalorder %s571, %s574
      %p580 = scmp.eq.s32.totalorder %s34, 0
      %p581 = por %p579, %p580
      %p582 = scmp.ne.s32.totalorder %s571, %s574
      %p583 = scmp.eq.s32.totalorder %s39, 3
      %p584 = por %p582, %p583
      %p585 = scmp.ne.s32.totalorder %s574, %s575
      %p586 = scmp.eq.s32.totalorder %s39, 0
      %p587 = por %p585, %p586
      %p588 = scmp.ne.s32.totalorder %s574, %s575
      %p589 = scmp.eq.s32.totalorder %s40, 3
      %p590 = por %p588, %p589
      %p592 = scmp.ne.s32.totalorder %s575, %s591
      %p593 = scmp.eq.s32.totalorder %s40, 0
      %p594 = por %p592, %p593
      %s595 = ssub.s32 %s42, %s49
      %p596 = scmp.eq.s32.totalorder %s595, 0
      %s598 = sadd.s32 %s597, 1
      %s599 = scalar_select %p596, %s597, %s598
      %p602 = pneg %p596
      %p603 = scmp.eq.s32.totalorder %s34, 3
      %p604 = por %p602, %p603
      %p605 = scmp.ne.s32.totalorder %s597, %s600
      %p606 = scmp.eq.s32.totalorder %s34, 0
      %p607 = por %p605, %p606
      %p608 = scmp.ne.s32.totalorder %s597, %s600
      %p609 = scmp.eq.s32.totalorder %s39, 3
      %p610 = por %p608, %p609
      %p611 = scmp.ne.s32.totalorder %s600, %s601
      %p612 = scmp.eq.s32.totalorder %s39, 0
      %p613 = por %p611, %p612
      %p614 = scmp.ne.s32.totalorder %s600, %s601
      %p615 = scmp.eq.s32.totalorder %s40, 3
      %p616 = por %p614, %p615
      %p618 = scmp.ne.s32.totalorder %s601, %s617
      %p619 = scmp.eq.s32.totalorder %s40, 0
      %p620 = por %p618, %p619
      %s621 = ssub.s32 %s42, %s49
      %p622 = scmp.eq.s32.totalorder %s621, 0
      %s624 = sadd.s32 %s623, 1
      %s625 = scalar_select %p622, %s623, %s624
      %p628 = pneg %p622
      %p629 = scmp.eq.s32.totalorder %s34, 3
      %p630 = por %p628, %p629
      %p631 = scmp.ne.s32.totalorder %s623, %s626
      %p632 = scmp.eq.s32.totalorder %s34, 0
      %p633 = por %p631, %p632
      %p634 = scmp.ne.s32.totalorder %s623, %s626
      %p635 = scmp.eq.s32.totalorder %s39, 3
      %p636 = por %p634, %p635
      %p637 = scmp.ne.s32.totalorder %s626, %s627
      %p638 = scmp.eq.s32.totalorder %s39, 0
      %p639 = por %p637, %p638
      %p640 = scmp.ne.s32.totalorder %s626, %s627
      %p641 = scmp.eq.s32.totalorder %s40, 3
      %p642 = por %p640, %p641
      %p644 = scmp.ne.s32.totalorder %s627, %s643
      %p645 = scmp.eq.s32.totalorder %s40, 0
      %p646 = por %p644, %p645
      %s648 = sadd.s32 %s647, 1
      %p651 = scmp.eq.s32.totalorder %s34, 3
      %p652 = scmp.ne.s32.totalorder %s647, %s649
      %p653 = scmp.eq.s32.totalorder %s34, 0
      %p654 = por %p652, %p653
      %p655 = scmp.ne.s32.totalorder %s647, %s649
      %p656 = scmp.eq.s32.totalorder %s39, 3
      %p657 = por %p655, %p656
      %p658 = scmp.ne.s32.totalorder %s649, %s650
      %p659 = scmp.eq.s32.totalorder %s39, 0
      %p660 = por %p658, %p659
      %p661 = scmp.ne.s32.totalorder %s649, %s650
      %p662 = scmp.eq.s32.totalorder %s40, 3
      %p663 = por %p661, %p662
      %p665 = scmp.ne.s32.totalorder %s650, %s664
      %p666 = scmp.eq.s32.totalorder %s40, 0
      %p667 = por %p665, %p666
      %s669 = sadd.s32 %s668, 1
      %p672 = scmp.eq.s32.totalorder %s34, 3
      %p673 = scmp.ne.s32.totalorder %s668, %s670
      %p674 = scmp.eq.s32.totalorder %s34, 0
      %p675 = por %p673, %p674
      %p676 = scmp.ne.s32.totalorder %s668, %s670
      %p677 = scmp.eq.s32.totalorder %s39, 3
      %p678 = por %p676, %p677
      %p679 = scmp.ne.s32.totalorder %s670, %s671
      %p680 = scmp.eq.s32.totalorder %s39, 0
      %p681 = por %p679, %p680
      %p682 = scmp.ne.s32.totalorder %s670, %s671
      %p683 = scmp.eq.s32.totalorder %s40, 3
      %p684 = por %p682, %p683
      %p686 = scmp.ne.s32.totalorder %s671, %s685
      %p687 = scmp.eq.s32.totalorder %s40, 0
      %p688 = por %p686, %p687
      %s689 = ssub.s32 %s41, %s53
      %p690 = scmp.eq.s32.totalorder %s689, 0
      %s692 = sadd.s32 %s691, 1
      %s693 = scalar_select %p690, %s691, %s692
      %p696 = pneg %p690
      %p697 = scmp.eq.s32.totalorder %s34, 3
      %p698 = por %p696, %p697
      %p699 = scmp.ne.s32.totalorder %s691, %s694
      %p700 = scmp.eq.s32.totalorder %s34, 0
      %p701 = por %p699, %p700
      %p702 = scmp.ne.s32.totalorder %s691, %s694
      %p703 = scmp.eq.s32.totalorder %s39, 3
      %p704 = por %p702, %p703
      %p705 = scmp.ne.s32.totalorder %s694, %s695
      %p706 = scmp.eq.s32.totalorder %s39, 0
      %p707 = por %p705, %p706
      %p708 = scmp.ne.s32.totalorder %s694, %s695
      %p709 = scmp.eq.s32.totalorder %s40, 3
      %p710 = por %p708, %p709
      %p712 = scmp.ne.s32.totalorder %s695, %s711
      %p713 = scmp.eq.s32.totalorder %s40, 0
      %p714 = por %p712, %p713
      %p715 = scmp.le.s32.totalorder 1, %s34
      %p716 = scmp.lt.s32.totalorder %s34, 5
      %p717 = pnand %p715, %p716
      %p718 = pneg %p717
      // Predicated region
      $region9: #{decoder_forward.1} parent=5 // pred_check
        _
      $region10: #{decoder_forward.1} parent=5 // pred_check_branch
        %720 = sbr.rel (%p717) target = $region12
      $region11: #{decoder_forward.1} parent=5 // pred_region
        %s721 = ssub.s32 %s34, 1
        // Predicated region
        $region13: #{decoder_forward.1} parent=11 // pred_check
          %p722 = pneg %p119
        $region14: #{decoder_forward.1} parent=11 // pred_check_branch
          %724 = sbr.rel (%p722) target = $region16
        $region15: #{decoder_forward.1} parent=11 // pred_region
          _
        $region16: #{decoder_forward.1} parent=11 // pred_fallthru
          _
        // Predicated region
        $region17: #{decoder_forward.1} parent=11 // pred_check
          %p725 = pneg %p660
        $region18: #{decoder_forward.1} parent=11 // pred_check_branch
          %727 = sbr.rel (%p725) target = $region20
        $region19: #{decoder_forward.1} parent=11 // pred_region
          _
        $region20: #{decoder_forward.1} parent=11 // pred_fallthru
          _
        // Predicated region
        $region21: #{decoder_forward.1} parent=11 // pred_check
          %p728 = pneg %p681
        $region22: #{decoder_forward.1} parent=11 // pred_check_branch
          %730 = sbr.rel (%p728) target = $region24
        $region23: #{decoder_forward.1} parent=11 // pred_region
          _
        $region24: #{decoder_forward.1} parent=11 // pred_fallthru
          _
      $region12: #{decoder_forward.1} parent=5 // pred_fallthru
        _
      %p731 = scmp.lt.s32.totalorder %s34, 4
      // Predicated region
      $region25: #{decoder_forward.1} parent=5 // pred_check
        %p732 = pneg %p731
      $region26: #{decoder_forward.1} parent=5 // pred_check_branch
        %734 = sbr.rel (%p732) target = $region28
      $region27: #{decoder_forward.1} parent=5 // pred_region
        // Predicated region
        $region29: #{decoder_forward.1} parent=27 // pred_check
          %p735 = pneg %p66
        $region30: #{decoder_forward.1} parent=27 // pred_check_branch
          %737 = sbr.rel (%p735) target = $region32
        $region31: #{decoder_forward.1} parent=27 // pred_region
          %p738 = scmp.lt.s32.totalorder %s41, 1
          %s739 = scalar_select %p738, %s41, 1
          %s740 = smul.addr %s739, 8
          %s741 = scalar_lea.vmem %s0, %s740
        $region32: #{decoder_forward.1} parent=27 // pred_fallthru
          _
        // Predicated region
        $region33: #{decoder_forward.1} parent=27 // pred_check
          %p742 = pneg %p92
        $region34: #{decoder_forward.1} parent=27 // pred_check_branch
          %744 = sbr.rel (%p742) target = $region36
        $region35: #{decoder_forward.1} parent=27 // pred_region
          %p745 = scmp.lt.s32.totalorder %s41, 1
          %s746 = scalar_select %p745, %s41, 1
          %s747 = smul.addr %s746, 8
          %s748 = scalar_lea.vmem %s1, %s747
        $region36: #{decoder_forward.1} parent=27 // pred_fallthru
          _
        // Predicated region
        $region37: #{decoder_forward.1} parent=27 // pred_check
          %p749 = pneg %p139
        $region38: #{decoder_forward.1} parent=27 // pred_check_branch
          %751 = sbr.rel (%p749) target = $region40
        $region39: #{decoder_forward.1} parent=27 // pred_region
          %p752 = scmp.lt.s32.totalorder %s42, 1
          %s753 = scalar_select %p752, %s42, 1
          %s754 = smul.addr %s753, 4
          %s755 = smul.addr %s754, 4
          %s756 = scalar_lea.vmem %s3, %s755
        $region40: #{decoder_forward.1} parent=27 // pred_fallthru
          _
        // Predicated region
        $region41: #{decoder_forward.1} parent=27 // pred_check
          %p757 = pneg %p165
        $region42: #{decoder_forward.1} parent=27 // pred_check_branch
          %759 = sbr.rel (%p757) target = $region44
        $region43: #{decoder_forward.1} parent=27 // pred_region
          %p760 = scmp.lt.s32.totalorder %s42, 1
          %s761 = scalar_select %p760, %s42, 1
          %s762 = scalar_lea.vmem %s4, %s761
        $region44: #{decoder_forward.1} parent=27 // pred_fallthru
          _
        // Predicated region
        $region45: #{decoder_forward.1} parent=27 // pred_check
          %p763 = pneg %p191
        $region46: #{decoder_forward.1} parent=27 // pred_check_branch
          %765 = sbr.rel (%p763) target = $region48
        $region47: #{decoder_forward.1} parent=27 // pred_region
          %p766 = scmp.lt.s32.totalorder %s42, 1
          %s767 = scalar_select %p766, %s42, 1
          %s768 = smul.addr %s767, 4
          %s769 = smul.addr %s768, 4
          %s770 = scalar_lea.vmem %s5, %s769
        $region48: #{decoder_forward.1} parent=27 // pred_fallthru
          _
        // Predicated region
        $region49: #{decoder_forward.1} parent=27 // pred_check
          %p771 = pneg %p217
        $region50: #{decoder_forward.1} parent=27 // pred_check_branch
          %773 = sbr.rel (%p771) target = $region52
        $region51: #{decoder_forward.1} parent=27 // pred_region
          %p774 = scmp.lt.s32.totalorder %s42, 1
          %s775 = scalar_select %p774, %s42, 1
          %s776 = scalar_lea.vmem %s6, %s775
        $region52: #{decoder_forward.1} parent=27 // pred_fallthru
          _
        // Predicated region
        $region53: #{decoder_forward.1} parent=27 // pred_check
          %p777 = pneg %p243
        $region54: #{decoder_forward.1} parent=27 // pred_check_branch
          %779 = sbr.rel (%p777) target = $region56
        $region55: #{decoder_forward.1} parent=27 // pred_region
          %p780 = scmp.lt.s32.totalorder %s42, 1
          %s781 = scalar_select %p780, %s42, 1
          %s782 = smul.addr %s781, 4
          %s783 = smul.addr %s782, 4
          %s784 = scalar_lea.vmem %s7, %s783
        $region56: #{decoder_forward.1} parent=27 // pred_fallthru
          _
        // Predicated region
        $region57: #{decoder_forward.1} parent=27 // pred_check
          %p785 = pneg %p269
        $region58: #{decoder_forward.1} parent=27 // pred_check_branch
          %787 = sbr.rel (%p785) target = $region60
        $region59: #{decoder_forward.1} parent=27 // pred_region
          %p788 = scmp.lt.s32.totalorder %s42, 1
          %s789 = scalar_select %p788, %s42, 1
          %s790 = scalar_lea.vmem %s8, %s789
        $region60: #{decoder_forward.1} parent=27 // pred_fallthru
          _
        // Predicated region
        $region61: #{decoder_forward.1} parent=27 // pred_check
          %p791 = pneg %p295
        $region62: #{decoder_forward.1} parent=27 // pred_check_branch
          %793 = sbr.rel (%p791) target = $region64
        $region63: #{decoder_forward.1} parent=27 // pred_region
          %p794 = scmp.lt.s32.totalorder %s42, 1
          %s795 = scalar_select %p794, %s42, 1
          %s796 = smul.addr %s795, 4
          %s797 = smul.addr %s796, 4
          %s798 = scalar_lea.vmem %s9, %s797
        $region64: #{decoder_forward.1} parent=27 // pred_fallthru
          _
        // Predicated region
        $region65: #{decoder_forward.1} parent=27 // pred_check
          %p799 = pneg %p321
        $region66: #{decoder_forward.1} parent=27 // pred_check_branch
          %801 = sbr.rel (%p799) target = $region68
        $region67: #{decoder_forward.1} parent=27 // pred_region
          %p802 = scmp.lt.s32.totalorder %s42, 1
          %s803 = scalar_select %p802, %s42, 1
          %s804 = scalar_lea.vmem %s10, %s803
        $region68: #{decoder_forward.1} parent=27 // pred_fallthru
          _
        // Predicated region
        $region69: #{decoder_forward.1} parent=27 // pred_check
          %p805 = pneg %p347
        $region70: #{decoder_forward.1} parent=27 // pred_check_branch
          %807 = sbr.rel (%p805) target = $region72
        $region71: #{decoder_forward.1} parent=27 // pred_region
          %p808 = scmp.lt.s32.totalorder %s42, 1
          %s809 = scalar_select %p808, %s42, 1
          %s810 = smul.addr %s809, 4
          %s811 = smul.addr %s810, 4
          %s812 = scalar_lea.vmem %s11, %s811
        $region72: #{decoder_forward.1} parent=27 // pred_fallthru
          _
        // Predicated region
        $region73: #{decoder_forward.1} parent=27 // pred_check
          %p813 = pneg %p373
        $region74: #{decoder_forward.1} parent=27 // pred_check_branch
          %815 = sbr.rel (%p813) target = $region76
        $region75: #{decoder_forward.1} parent=27 // pred_region
          %p816 = scmp.lt.s32.totalorder %s42, 1
          %s817 = scalar_select %p816, %s42, 1
          %s818 = scalar_lea.vmem %s12, %s817
        $region76: #{decoder_forward.1} parent=27 // pred_fallthru
          _
        // Predicated region
        $region77: #{decoder_forward.1} parent=27 // pred_check
          %p819 = pneg %p399
        $region78: #{decoder_forward.1} parent=27 // pred_check_branch
          %821 = sbr.rel (%p819) target = $region80
        $region79: #{decoder_forward.1} parent=27 // pred_region
          %p822 = scmp.lt.s32.totalorder %s42, 1
          %s823 = scalar_select %p822, %s42, 1
          %s824 = scalar_lea.vmem %s13, %s823
        $region80: #{decoder_forward.1} parent=27 // pred_fallthru
          _
        // Predicated region
        $region81: #{decoder_forward.1} parent=27 // pred_check
          %p825 = pneg %p425
        $region82: #{decoder_forward.1} parent=27 // pred_check_branch
          %827 = sbr.rel (%p825) target = $region84
        $region83: #{decoder_forward.1} parent=27 // pred_region
          %p828 = scmp.lt.s32.totalorder %s42, 1
          %s829 = scalar_select %p828, %s42, 1
          %s830 = scalar_lea.vmem %s14, %s829
        $region84: #{decoder_forward.1} parent=27 // pred_fallthru
          _
        // Predicated region
        $region85: #{decoder_forward.1} parent=27 // pred_check
          %p831 = pneg %p451
        $region86: #{decoder_forward.1} parent=27 // pred_check_branch
          %833 = sbr.rel (%p831) target = $region88
        $region87: #{decoder_forward.1} parent=27 // pred_region
          %p834 = scmp.lt.s32.totalorder %s42, 1
          %s835 = scalar_select %p834, %s42, 1
          %s836 = scalar_lea.vmem %s15, %s835
        $region88: #{decoder_forward.1} parent=27 // pred_fallthru
          _
        // Predicated region
        $region89: #{decoder_forward.1} parent=27 // pred_check
          %p837 = pneg %p477
        $region90: #{decoder_forward.1} parent=27 // pred_check_branch
          %839 = sbr.rel (%p837) target = $region92
        $region91: #{decoder_forward.1} parent=27 // pred_region
          %p840 = scmp.lt.s32.totalorder %s42, 1
          %s841 = scalar_select %p840, %s42, 1
          %s842 = scalar_lea.vmem %s16, %s841
        $region92: #{decoder_forward.1} parent=27 // pred_fallthru
          _
        // Predicated region
        $region93: #{decoder_forward.1} parent=27 // pred_check
          %p843 = pneg %p503
        $region94: #{decoder_forward.1} parent=27 // pred_check_branch
          %845 = sbr.rel (%p843) target = $region96
        $region95: #{decoder_forward.1} parent=27 // pred_region
          %p846 = scmp.lt.s32.totalorder %s42, 1
          %s847 = scalar_select %p846, %s42, 1
          %s848 = scalar_lea.vmem %s17, %s847
        $region96: #{decoder_forward.1} parent=27 // pred_fallthru
          _
        // Predicated region
        $region97: #{decoder_forward.1} parent=27 // pred_check
          %p849 = pneg %p529
        $region98: #{decoder_forward.1} parent=27 // pred_check_branch
          %851 = sbr.rel (%p849) target = $region100
        $region99: #{decoder_forward.1} parent=27 // pred_region
          %p852 = scmp.lt.s32.totalorder %s42, 1
          %s853 = scalar_select %p852, %s42, 1
          %s854 = scalar_lea.vmem %s18, %s853
        $region100: #{decoder_forward.1} parent=27 // pred_fallthru
          _
        // Predicated region
        $region101: #{decoder_forward.1} parent=27 // pred_check
          %p855 = pneg %p555
        $region102: #{decoder_forward.1} parent=27 // pred_check_branch
          %857 = sbr.rel (%p855) target = $region104
        $region103: #{decoder_forward.1} parent=27 // pred_region
          %p858 = scmp.lt.s32.totalorder %s42, 1
          %s859 = scalar_select %p858, %s42, 1
          %s860 = smul.addr %s859, 4
          %s861 = smul.addr %s860, 4
          %s862 = scalar_lea.vmem %s19, %s861
        $region104: #{decoder_forward.1} parent=27 // pred_fallthru
          _
        // Predicated region
        $region105: #{decoder_forward.1} parent=27 // pred_check
          %p863 = pneg %p581
        $region106: #{decoder_forward.1} parent=27 // pred_check_branch
          %865 = sbr.rel (%p863) target = $region108
        $region107: #{decoder_forward.1} parent=27 // pred_region
          %p866 = scmp.lt.s32.totalorder %s42, 1
          %s867 = scalar_select %p866, %s42, 1
          %s868 = scalar_lea.vmem %s20, %s867
        $region108: #{decoder_forward.1} parent=27 // pred_fallthru
          _
        // Predicated region
        $region109: #{decoder_forward.1} parent=27 // pred_check
          %p869 = pneg %p607
        $region110: #{decoder_forward.1} parent=27 // pred_check_branch
          %871 = sbr.rel (%p869) target = $region112
        $region111: #{decoder_forward.1} parent=27 // pred_region
          %p872 = scmp.lt.s32.totalorder %s42, 1
          %s873 = scalar_select %p872, %s42, 1
          %s874 = smul.addr %s873, 4
          %s875 = smul.addr %s874, 4
          %s876 = scalar_lea.vmem %s21, %s875
        $region112: #{decoder_forward.1} parent=27 // pred_fallthru
          _
        // Predicated region
        $region113: #{decoder_forward.1} parent=27 // pred_check
          %p877 = pneg %p633
        $region114: #{decoder_forward.1} parent=27 // pred_check_branch
          %879 = sbr.rel (%p877) target = $region116
        $region115: #{decoder_forward.1} parent=27 // pred_region
          %p880 = scmp.lt.s32.totalorder %s42, 1
          %s881 = scalar_select %p880, %s42, 1
          %s882 = scalar_lea.vmem %s22, %s881
        $region116: #{decoder_forward.1} parent=27 // pred_fallthru
          _
      $region28: #{decoder_forward.1} parent=5 // pred_fallthru
        _
      %p883 = scmp.le.s32.totalorder 1, %s34
      %p884 = scmp.lt.s32.totalorder %s34, 5
      %p885 = pnand %p883, %p884
      %p886 = pneg %p885
      // Predicated region
      $region117: #{decoder_forward.1} parent=5 // pred_check
        _
      $region118: #{decoder_forward.1} parent=5 // pred_check_branch
        %888 = sbr.rel (%p885) target = $region120
      $region119: #{decoder_forward.1} parent=5 // pred_region
        %s889 = ssub.s32 %s34, 1
        %p890 = scmp.lt.s32.totalorder %s43, 1
        %s891 = scalar_select %p890, %s43, 1
        %s892 = smul.addr %s891, 8
        %s893 = scalar_lea.vmem %s0, %s892
        %p894 = pneg %p72
        %p895 = pneg %p69
        %p896 = scmp.lt.s32.totalorder %s43, 1
        %s897 = scalar_select %p896, %s43, 1
        %s898 = smul.addr %s897, 8
        %s899 = scalar_lea.vmem %s1, %s898
        %p900 = pneg %p98
        %p901 = pneg %p95
        %p902 = pneg %p119
        %p903 = pneg %p116
        %p904 = scmp.lt.s32.totalorder %s44, 1
        %s905 = scalar_select %p904, %s44, 1
        %s906 = smul.addr %s905, 4
        %s907 = smul.addr %s906, 4
        %s908 = scalar_lea.vmem %s3, %s907
        %p909 = pneg %p145
        %p910 = pneg %p142
        %p911 = scmp.lt.s32.totalorder %s44, 1
        %s912 = scalar_select %p911, %s44, 1
        %s913 = scalar_lea.vmem %s4, %s912
        %p914 = pneg %p171
        %p915 = pneg %p168
        %p916 = scmp.lt.s32.totalorder %s44, 1
        %s917 = scalar_select %p916, %s44, 1
        %s918 = smul.addr %s917, 4
        %s919 = smul.addr %s918, 4
        %s920 = scalar_lea.vmem %s5, %s919
        %p921 = pneg %p197
        %p922 = pneg %p194
        %p923 = scmp.lt.s32.totalorder %s44, 1
        %s924 = scalar_select %p923, %s44, 1
        %s925 = scalar_lea.vmem %s6, %s924
        %p926 = pneg %p223
        %p927 = pneg %p220
        %p928 = scmp.lt.s32.totalorder %s44, 1
        %s929 = scalar_select %p928, %s44, 1
        %s930 = smul.addr %s929, 4
        %s931 = smul.addr %s930, 4
        %s932 = scalar_lea.vmem %s7, %s931
        %p933 = pneg %p249
        %p934 = pneg %p246
        %p935 = scmp.lt.s32.totalorder %s44, 1
        %s936 = scalar_select %p935, %s44, 1
        %s937 = scalar_lea.vmem %s8, %s936
        %p938 = pneg %p275
        %p939 = pneg %p272
        %p940 = scmp.lt.s32.totalorder %s44, 1
        %s941 = scalar_select %p940, %s44, 1
        %s942 = smul.addr %s941, 4
        %s943 = smul.addr %s942, 4
        %s944 = scalar_lea.vmem %s9, %s943
        %p945 = pneg %p301
        %p946 = pneg %p298
        %p947 = scmp.lt.s32.totalorder %s44, 1
        %s948 = scalar_select %p947, %s44, 1
        %s949 = scalar_lea.vmem %s10, %s948
        %p950 = pneg %p327
        %p951 = pneg %p324
        %p952 = scmp.lt.s32.totalorder %s44, 1
        %s953 = scalar_select %p952, %s44, 1
        %s954 = smul.addr %s953, 4
        %s955 = smul.addr %s954, 4
        %s956 = scalar_lea.vmem %s11, %s955
        %p957 = pneg %p353
        %p958 = pneg %p350
        %p959 = scmp.lt.s32.totalorder %s44, 1
        %s960 = scalar_select %p959, %s44, 1
        %s961 = scalar_lea.vmem %s12, %s960
        %p962 = pneg %p379
        %p963 = pneg %p376
        %p964 = scmp.lt.s32.totalorder %s44, 1
        %s965 = scalar_select %p964, %s44, 1
        %s966 = scalar_lea.vmem %s13, %s965
        %p967 = pneg %p405
        %p968 = pneg %p402
        %p969 = scmp.lt.s32.totalorder %s44, 1
        %s970 = scalar_select %p969, %s44, 1
        %s971 = scalar_lea.vmem %s14, %s970
        %p972 = pneg %p431
        %p973 = pneg %p428
        %p974 = scmp.lt.s32.totalorder %s44, 1
        %s975 = scalar_select %p974, %s44, 1
        %s976 = scalar_lea.vmem %s15, %s975
        %p977 = pneg %p457
        %p978 = pneg %p454
        %p979 = scmp.lt.s32.totalorder %s44, 1
        %s980 = scalar_select %p979, %s44, 1
        %s981 = scalar_lea.vmem %s16, %s980
        %p982 = pneg %p483
        %p983 = pneg %p480
        %p984 = scmp.lt.s32.totalorder %s44, 1
        %s985 = scalar_select %p984, %s44, 1
        %s986 = scalar_lea.vmem %s17, %s985
        %p987 = pneg %p509
        %p988 = pneg %p506
        %p989 = scmp.lt.s32.totalorder %s44, 1
        %s990 = scalar_select %p989, %s44, 1
        %s991 = scalar_lea.vmem %s18, %s990
        %p992 = pneg %p535
        %p993 = pneg %p532
        %p994 = scmp.lt.s32.totalorder %s44, 1
        %s995 = scalar_select %p994, %s44, 1
        %s996 = smul.addr %s995, 4
        %s997 = smul.addr %s996, 4
        %s998 = scalar_lea.vmem %s19, %s997
        %p999 = pneg %p561
        %p1000 = pneg %p558
        %p1001 = scmp.lt.s32.totalorder %s44, 1
        %s1002 = scalar_select %p1001, %s44, 1
        %s1003 = scalar_lea.vmem %s20, %s1002
        %p1004 = pneg %p587
        %p1005 = pneg %p584
        %p1006 = scmp.lt.s32.totalorder %s44, 1
        %s1007 = scalar_select %p1006, %s44, 1
        %s1008 = smul.addr %s1007, 4
        %s1009 = smul.addr %s1008, 4
        %s1010 = scalar_lea.vmem %s21, %s1009
        %p1011 = pneg %p613
        %p1012 = pneg %p610
        %p1013 = scmp.lt.s32.totalorder %s44, 1
        %s1014 = scalar_select %p1013, %s44, 1
        %s1015 = scalar_lea.vmem %s22, %s1014
        %p1016 = pneg %p639
        %p1017 = pneg %p636
        %p1018 = pneg %p660
        %p1019 = pneg %p657
        %p1020 = pneg %p681
        %p1021 = pneg %p678
        %p1022 = pneg %p707
        %p1023 = pneg %p704
        %s1024 = sand.u32 %s694, 1
        %s1025 = scalar_lea.sflag [#allocation4], %s1024
        %s1026 = sand.u32 %s694, 1
        %s1027 = smul.addr %s1026, 8
        %s1028 = scalar_lea.vmem [#allocation3], %s1027
        %p1029 = scmp.lt.s32.totalorder %s43, 1
        %s1030 = scalar_select %p1029, %s43, 1
        %s1031 = smul.addr %s1030, 8
        %s1032 = scalar_lea.vmem %s0, %s1031
        %p1033 = scmp.lt.s32.totalorder %s43, 1
        %s1034 = scalar_select %p1033, %s43, 1
        %s1035 = smul.addr %s1034, 8
        %s1036 = scalar_lea.vmem %s1, %s1035
        %p1037 = scmp.lt.s32.totalorder %s44, 1
        %s1038 = scalar_select %p1037, %s44, 1
        %s1039 = smul.addr %s1038, 4
        %s1040 = smul.addr %s1039, 4
        %s1041 = scalar_lea.vmem %s3, %s1040
        %p1042 = scmp.lt.s32.totalorder %s44, 1
        %s1043 = scalar_select %p1042, %s44, 1
        %s1044 = scalar_lea.vmem %s4, %s1043
        %p1045 = scmp.lt.s32.totalorder %s44, 1
        %s1046 = scalar_select %p1045, %s44, 1
        %s1047 = smul.addr %s1046, 4
        %s1048 = smul.addr %s1047, 4
        %s1049 = scalar_lea.vmem %s5, %s1048
        %p1050 = scmp.lt.s32.totalorder %s44, 1
        %s1051 = scalar_select %p1050, %s44, 1
        %s1052 = scalar_lea.vmem %s6, %s1051
        %p1053 = scmp.lt.s32.totalorder %s44, 1
        %s1054 = scalar_select %p1053, %s44, 1
        %s1055 = smul.addr %s1054, 4
        %s1056 = smul.addr %s1055, 4
        %s1057 = scalar_lea.vmem %s7, %s1056
        %p1058 = scmp.lt.s32.totalorder %s44, 1
        %s1059 = scalar_select %p1058, %s44, 1
        %s1060 = scalar_lea.vmem %s8, %s1059
        %p1061 = scmp.lt.s32.totalorder %s44, 1
        %s1062 = scalar_select %p1061, %s44, 1
        %s1063 = smul.addr %s1062, 4
        %s1064 = smul.addr %s1063, 4
        %s1065 = scalar_lea.vmem %s9, %s1064
        %p1066 = scmp.lt.s32.totalorder %s44, 1
        %s1067 = scalar_select %p1066, %s44, 1
        %s1068 = scalar_lea.vmem %s10, %s1067
        %p1069 = scmp.lt.s32.totalorder %s44, 1
        %s1070 = scalar_select %p1069, %s44, 1
        %s1071 = smul.addr %s1070, 4
        %s1072 = smul.addr %s1071, 4
        %s1073 = scalar_lea.vmem %s11, %s1072
        %p1074 = scmp.lt.s32.totalorder %s44, 1
        %s1075 = scalar_select %p1074, %s44, 1
        %s1076 = scalar_lea.vmem %s12, %s1075
        %p1077 = scmp.lt.s32.totalorder %s44, 1
        %s1078 = scalar_select %p1077, %s44, 1
        %s1079 = scalar_lea.vmem %s13, %s1078
        %p1080 = scmp.lt.s32.totalorder %s44, 1
        %s1081 = scalar_select %p1080, %s44, 1
        %s1082 = scalar_lea.vmem %s14, %s1081
        %p1083 = scmp.lt.s32.totalorder %s44, 1
        %s1084 = scalar_select %p1083, %s44, 1
        %s1085 = scalar_lea.vmem %s15, %s1084
        %p1086 = scmp.lt.s32.totalorder %s44, 1
        %s1087 = scalar_select %p1086, %s44, 1
        %s1088 = scalar_lea.vmem %s16, %s1087
        %p1089 = scmp.lt.s32.totalorder %s44, 1
        %s1090 = scalar_select %p1089, %s44, 1
        %s1091 = scalar_lea.vmem %s17, %s1090
        %p1092 = scmp.lt.s32.totalorder %s44, 1
        %s1093 = scalar_select %p1092, %s44, 1
        %s1094 = scalar_lea.vmem %s18, %s1093
        %p1095 = scmp.lt.s32.totalorder %s44, 1
        %s1096 = scalar_select %p1095, %s44, 1
        %s1097 = smul.addr %s1096, 4
        %s1098 = smul.addr %s1097, 4
        %s1099 = scalar_lea.vmem %s19, %s1098
        %p1100 = scmp.lt.s32.totalorder %s44, 1
        %s1101 = scalar_select %p1100, %s44, 1
        %s1102 = scalar_lea.vmem %s20, %s1101
        %p1103 = scmp.lt.s32.totalorder %s44, 1
        %s1104 = scalar_select %p1103, %s44, 1
        %s1105 = smul.addr %s1104, 4
        %s1106 = smul.addr %s1105, 4
        %s1107 = scalar_lea.vmem %s21, %s1106
        %p1108 = scmp.lt.s32.totalorder %s44, 1
        %s1109 = scalar_select %p1108, %s44, 1
        %s1110 = scalar_lea.vmem %s22, %s1109
        %p1112 = scmp.eq.s32.totalorder %s44, 0
        // Predicated region
        $region121: #{decoder_forward.1} parent=119 // pred_check
          %p1113 = pneg %p1112
        $region122: #{decoder_forward.1} parent=119 // pred_check_branch
          %1115 = sbr.rel (%p1113) target = $region124
        $region123: #{decoder_forward.1} parent=119 // pred_region
          %v1116 = vld [vmem:[%s1032] sm:$0xff]
          %vm1117 = vcmask 261120
          %1118 = vst.msk [vmem:[#allocation2] sm:$0xff] %vm1117, %v1116
        $region124: #{decoder_forward.1} parent=119 // pred_fallthru
          _
        %v1119 = vld [vmem:[#allocation2] sm:$0xff]
        %v1120 = vld [vmem:[%s1036] sm:$0xff]
        %v1121 = vld [vmem:[%s2] sm:$0xff]
        %v1122 = vpack.c.bf16 %v1119, %v1119
        %v1123 = vld [vmem:[%s1041] sm:$0xf]
        %v1124 = vld [vmem:[%s1041 + $0x4] sm:$0xf]
        %v1125 = vld [vmem:[%s1041 + $0x8] sm:$0xf]
        %v1126 = vld [vmem:[%s1041 + $0xc] sm:$0xf]
        %v1127 = vld [vmem:[%s1044] sm:$0x1]
        %v1129 = vlaneseq
        %v1130 = vshrl.u32 %v1129, 7
        %v1131 = vsub.s32 0, %v1130
        %v1132 = vrot.slane %v1127, %v1131
        %v1138 = vunpack.c.l.b16 %v1123
        %v1139 = vunpack.c.l.b16 %v1124
        %v1140 = vunpack.c.l.b16 %v1125
        %v1141 = vunpack.c.l.b16 %v1126
        %v1142 = vpack.c.b16 %v1139, %v1138
        %v1143 = vpack.c.b16 %v1141, %v1140
        %vm1146 = vcmask 261120
        %v1148 = vsel %vm1146, %v1122, 0
        %1150 = vmatprep.subr.bf16.mxu0 0
        %1151 = vmatpush1.bf16.msra.mxu0 %v1142
        %1152 = vmatprep.subr.bf16.mxu0 0
        %1153 = vmatpush1.bf16.msra.mxu0 %v1143
        %1154 = vmatprep.subr.bf16.mxu0 0
        %1155 = vmatpush1.bf16.msra.mxu0 0
        %1156 = vmatprep.subr.bf16.mxu0 0
        %1157 = vmatpush1.bf16.msra.mxu0 0
        %1158 = vmatprep.subr.bf16.mxu0 0
        %1159 = vmatpush1.bf16.msra.mxu0 0
        %1160 = vmatprep.subr.bf16.mxu0 0
        %1161 = vmatpush1.bf16.msra.mxu0 0
        %1162 = vmatprep.subr.bf16.mxu0 0
        %1163 = vmatpush1.bf16.msra.mxu0 0
        %1164 = vmatprep.subr.bf16.mxu0 0
        %1165 = vmatpush1.bf16.msra.mxu0 0
        %1166 = vmatprep.subr.bf16.mxu0 0
        %1167 = vmatpush1.bf16.msra.mxu0 0
        %1168 = vmatprep.subr.bf16.mxu0 0
        %1169 = vmatpush1.bf16.msra.mxu0 0
        %1170 = vmatprep.subr.bf16.mxu0 0
        %1171 = vmatpush1.bf16.msra.mxu0 0
        %1172 = vmatprep.subr.bf16.mxu0 0
        %1173 = vmatpush1.bf16.msra.mxu0 0
        %1174 = vmatprep.subr.bf16.mxu0 0
        %1175 = vmatpush1.bf16.msra.mxu0 0
        %1176 = vmatprep.subr.bf16.mxu0 0
        %1177 = vmatpush1.bf16.msra.mxu0 0
        %1178 = vmatprep.subr.bf16.mxu0 0
        %1179 = vmatpush1.bf16.msra.mxu0 0
        %1180 = vmatprep.subr.bf16.mxu0 0
        %1181 = vmatpush1.bf16.msra.mxu0 0
        %1182 = vmatprep.mubr.bf16.mxu0 0
        %1183 = vmatmul.mubr.bf16.gmra.mrb[0].mxu0 %v1148
        %v1184 = vpop.f32.mrb[0].mxu0
        %v1185 = vadd.f32 %v1132, %v1184
        %v1186 = vpop.f32.mrb[0].mxu0
        %v1187 = vpop.f32.mrb[0].mxu0
        %v1188 = vpop.f32.mrb[0].mxu0
        %1189 = vdwg.mxu0
        %v1190 = vpack.c.bf16 %v1185, %v1185
        %1192 = vrot.lane.b32.xlu0 %v1190, 96
        %v1193 = vpop.permute.xlu0 %1192
        %vm1194 = vcmask 64512
        %v1196 = vsel %vm1194, %v1190, 0
        %v1199 = vsel %vm1194, %v1193, 0
        %1201 = vmatprep.subr.bf16.mxu0 0
        %1202 = vmatpush1.bf16.xpose.msra.mxu0 %v1199
        %1203 = vmatprep.subr.bf16.mxu0 0
        %1204 = vmatpush1.bf16.xpose.msra.mxu0 0
        %1205 = vmatprep.subr.bf16.mxu0 0
        %1206 = vmatpush1.bf16.xpose.msra.mxu0 0
        %1207 = vmatprep.subr.bf16.mxu0 0
        %1208 = vmatpush1.bf16.xpose.msra.mxu0 0
        %1209 = vmatprep.subr.bf16.mxu0 0
        %1210 = vmatpush1.bf16.xpose.msra.mxu0 0
        %1211 = vmatprep.subr.bf16.mxu0 0
        %1212 = vmatpush1.bf16.xpose.msra.mxu0 0
        %1213 = vmatprep.subr.bf16.mxu0 0
        %1214 = vmatpush1.bf16.xpose.msra.mxu0 0
        %1215 = vmatprep.subr.bf16.mxu0 0
        %1216 = vmatpush1.bf16.xpose.msra.mxu0 0
        %1217 = vmatprep.subr.bf16.mxu0 0
        %1218 = vmatpush1.bf16.xpose.msra.mxu0 0
        %1219 = vmatprep.subr.bf16.mxu0 0
        %1220 = vmatpush1.bf16.xpose.msra.mxu0 0
        %1221 = vmatprep.subr.bf16.mxu0 0
        %1222 = vmatpush1.bf16.xpose.msra.mxu0 0
        %1223 = vmatprep.subr.bf16.mxu0 0
        %1224 = vmatpush1.bf16.xpose.msra.mxu0 0
        %1225 = vmatprep.subr.bf16.mxu0 0
        %1226 = vmatpush1.bf16.xpose.msra.mxu0 0
        %1227 = vmatprep.subr.bf16.mxu0 0
        %1228 = vmatpush1.bf16.xpose.msra.mxu0 0
        %1229 = vmatprep.subr.bf16.mxu0 0
        %1230 = vmatpush1.bf16.xpose.msra.mxu0 0
        %1231 = vmatprep.subr.bf16.mxu0 0
        %1232 = vmatpush1.bf16.xpose.msra.mxu0 0
        %1233 = vmatprep.mubr.bf16.mxu0 0
        %1234 = vmatmul.mubr.bf16.gmra.mrb[0].mxu0 %v1196
        %v1235 = vpop.f32.mrb[0].mxu0
        %v1236 = vadd.f32 %v1121, %v1235
        %v1237 = vpop.f32.mrb[0].mxu0
        %v1238 = vpop.f32.mrb[0].mxu0
        %v1239 = vpop.f32.mrb[0].mxu0
        %1240 = vdwg.mxu0
        %v1241 = vsel %vm1194, %v1236, -inf
        %1242 = vmax.xlane.f32.xlu0 %v1241
        %v1243 = vpop.xlane.xlu0 %1242
        %v1244 = vsub.f32 %v1236, %v1243
        %v1245 = vmul.f32 %v1244, 1.442695
        %v1246 = vpow.pop %v1245
        %v1247 = vsel %vm1194, %v1246, 0.0
        %1248 = vadd.xlane.f32.xlu0 %v1247
        %v1249 = vpop.xlane.xlu0 %1248
        %v1250 = vrcp.pop %v1249
        %v1251 = vmul.f32 %v1246, %v1250
        %v1252 = vpack.c.bf16 %v1251, %v1251
        %1253 = vrot.lane.b32.xlu0 %v1190, 64
        %v1254 = vpop.permute.xlu0 %1253
        %v1256 = vsel %vm1194, %v1252, 0
        %vm1258 = vcmask 1043456
        %v1260 = vsel %vm1258, %v1254, 0
        %1262 = vmatprep.subr.bf16.mxu0 0
        %1263 = vmatpush1.bf16.msra.mxu0 %v1260
        %1264 = vmatprep.subr.bf16.mxu0 0
        %1265 = vmatpush1.bf16.msra.mxu0 0
        %1266 = vmatprep.subr.bf16.mxu0 0
        %1267 = vmatpush1.bf16.msra.mxu0 0
        %1268 = vmatprep.subr.bf16.mxu0 0
        %1269 = vmatpush1.bf16.msra.mxu0 0
        %1270 = vmatprep.subr.bf16.mxu0 0
        %1271 = vmatpush1.bf16.msra.mxu0 0
        %1272 = vmatprep.subr.bf16.mxu0 0
        %1273 = vmatpush1.bf16.msra.mxu0 0
        %1274 = vmatprep.subr.bf16.mxu0 0
        %1275 = vmatpush1.bf16.msra.mxu0 0
        %1276 = vmatprep.subr.bf16.mxu0 0
        %1277 = vmatpush1.bf16.msra.mxu0 0
        %1278 = vmatprep.subr.bf16.mxu0 0
        %1279 = vmatpush1.bf16.msra.mxu0 0
        %1280 = vmatprep.subr.bf16.mxu0 0
        %1281 = vmatpush1.bf16.msra.mxu0 0
        %1282 = vmatprep.subr.bf16.mxu0 0
        %1283 = vmatpush1.bf16.msra.mxu0 0
        %1284 = vmatprep.subr.bf16.mxu0 0
        %1285 = vmatpush1.bf16.msra.mxu0 0
        %1286 = vmatprep.subr.bf16.mxu0 0
        %1287 = vmatpush1.bf16.msra.mxu0 0
        %1288 = vmatprep.subr.bf16.mxu0 0
        %1289 = vmatpush1.bf16.msra.mxu0 0
        %1290 = vmatprep.subr.bf16.mxu0 0
        %1291 = vmatpush1.bf16.msra.mxu0 0
        %1292 = vmatprep.subr.bf16.mxu0 0
        %1293 = vmatpush1.bf16.msra.mxu0 0
        %1294 = vmatprep.mubr.bf16.mxu0 0
        %1295 = vmatmul.mubr.bf16.gmra.mrb[0].mxu0 %v1256
        %v1296 = vpop.f32.mrb[0].mxu0
        %v1297 = vadd.f32 0.0, %v1296
        %v1298 = vpop.f32.mrb[0].mxu0
        %v1299 = vpop.f32.mrb[0].mxu0
        %v1300 = vpop.f32.mrb[0].mxu0
        %1301 = vdwg.mxu0
        %1302 = vrot.lane.b32.xlu0 %v1190, 120
        %v1303 = vpop.permute.xlu0 %1302
        %1304 = vrot.lane.b32.xlu0 %v1190, 88
        %v1305 = vpop.permute.xlu0 %1304
        %v1307 = vsel %vm1194, %v1303, 0
        %v1310 = vsel %vm1194, %v1305, 0
        %1312 = vmatprep.subr.bf16.mxu0 0
        %1313 = vmatpush1.bf16.xpose.msra.mxu0 %v1310
        %1314 = vmatprep.subr.bf16.mxu0 0
        %1315 = vmatpush1.bf16.xpose.msra.mxu0 0
        %1316 = vmatprep.subr.bf16.mxu0 0
        %1317 = vmatpush1.bf16.xpose.msra.mxu0 0
        %1318 = vmatprep.subr.bf16.mxu0 0
        %1319 = vmatpush1.bf16.xpose.msra.mxu0 0
        %1320 = vmatprep.subr.bf16.mxu0 0
        %1321 = vmatpush1.bf16.xpose.msra.mxu0 0
        %1322 = vmatprep.subr.bf16.mxu0 0
        %1323 = vmatpush1.bf16.xpose.msra.mxu0 0
        %1324 = vmatprep.subr.bf16.mxu0 0
        %1325 = vmatpush1.bf16.xpose.msra.mxu0 0
        %1326 = vmatprep.subr.bf16.mxu0 0
        %1327 = vmatpush1.bf16.xpose.msra.mxu0 0
        %1328 = vmatprep.subr.bf16.mxu0 0
        %1329 = vmatpush1.bf16.xpose.msra.mxu0 0
        %1330 = vmatprep.subr.bf16.mxu0 0
        %1331 = vmatpush1.bf16.xpose.msra.mxu0 0
        %1332 = vmatprep.subr.bf16.mxu0 0
        %1333 = vmatpush1.bf16.xpose.msra.mxu0 0
        %1334 = vmatprep.subr.bf16.mxu0 0
        %1335 = vmatpush1.bf16.xpose.msra.mxu0 0
        %1336 = vmatprep.subr.bf16.mxu0 0
        %1337 = vmatpush1.bf16.xpose.msra.mxu0 0
        %1338 = vmatprep.subr.bf16.mxu0 0
        %1339 = vmatpush1.bf16.xpose.msra.mxu0 0
        %1340 = vmatprep.subr.bf16.mxu0 0
        %1341 = vmatpush1.bf16.xpose.msra.mxu0 0
        %1342 = vmatprep.subr.bf16.mxu0 0
        %1343 = vmatpush1.bf16.xpose.msra.mxu0 0
        %1344 = vmatprep.mubr.bf16.mxu0 0
        %1345 = vmatmul.mubr.bf16.gmra.mrb[0].mxu0 %v1307
        %v1346 = vpop.f32.mrb[0].mxu0
        %v1347 = vadd.f32 %v1121, %v1346
        %v1348 = vpop.f32.mrb[0].mxu0
        %v1349 = vpop.f32.mrb[0].mxu0
        %v1350 = vpop.f32.mrb[0].mxu0
        %1351 = vdwg.mxu0
        %v1352 = vsel %vm1194, %v1347, -inf
        %1353 = vmax.xlane.f32.xlu0 %v1352
        %v1354 = vpop.xlane.xlu0 %1353
        %v1355 = vsub.f32 %v1347, %v1354
        %v1356 = vmul.f32 %v1355, 1.442695
        %v1357 = vpow.pop %v1356
        %v1358 = vsel %vm1194, %v1357, 0.0
        %1359 = vadd.xlane.f32.xlu0 %v1358
        %v1360 = vpop.xlane.xlu0 %1359
        %v1361 = vrcp.pop %v1360
        %v1362 = vmul.f32 %v1357, %v1361
        %v1363 = vpack.c.bf16 %v1362, %v1362
        %1364 = vrot.lane.b32.xlu0 %v1190, 56
        %v1365 = vpop.permute.xlu0 %1364
        %v1367 = vsel %vm1194, %v1363, 0
        %v1370 = vsel %vm1258, %v1365, 0
        %1372 = vmatprep.subr.bf16.mxu0 0
        %1373 = vmatpush1.bf16.msra.mxu0 %v1370
        %1374 = vmatprep.subr.bf16.mxu0 0
        %1375 = vmatpush1.bf16.msra.mxu0 0
        %1376 = vmatprep.subr.bf16.mxu0 0
        %1377 = vmatpush1.bf16.msra.mxu0 0
        %1378 = vmatprep.subr.bf16.mxu0 0
        %1379 = vmatpush1.bf16.msra.mxu0 0
        %1380 = vmatprep.subr.bf16.mxu0 0
        %1381 = vmatpush1.bf16.msra.mxu0 0
        %1382 = vmatprep.subr.bf16.mxu0 0
        %1383 = vmatpush1.bf16.msra.mxu0 0
        %1384 = vmatprep.subr.bf16.mxu0 0
        %1385 = vmatpush1.bf16.msra.mxu0 0
        %1386 = vmatprep.subr.bf16.mxu0 0
        %1387 = vmatpush1.bf16.msra.mxu0 0
        %1388 = vmatprep.subr.bf16.mxu0 0
        %1389 = vmatpush1.bf16.msra.mxu0 0
        %1390 = vmatprep.subr.bf16.mxu0 0
        %1391 = vmatpush1.bf16.msra.mxu0 0
        %1392 = vmatprep.subr.bf16.mxu0 0
        %1393 = vmatpush1.bf16.msra.mxu0 0
        %1394 = vmatprep.subr.bf16.mxu0 0
        %1395 = vmatpush1.bf16.msra.mxu0 0
        %1396 = vmatprep.subr.bf16.mxu0 0
        %1397 = vmatpush1.bf16.msra.mxu0 0
        %1398 = vmatprep.subr.bf16.mxu0 0
        %1399 = vmatpush1.bf16.msra.mxu0 0
        %1400 = vmatprep.subr.bf16.mxu0 0
        %1401 = vmatpush1.bf16.msra.mxu0 0
        %1402 = vmatprep.subr.bf16.mxu0 0
        %1403 = vmatpush1.bf16.msra.mxu0 0
        %1404 = vmatprep.mubr.bf16.mxu0 0
        %1405 = vmatmul.mubr.bf16.gmra.mrb[0].mxu0 %v1367
        %v1406 = vpop.f32.mrb[0].mxu0
        %v1407 = vadd.f32 0.0, %v1406
        %v1408 = vpop.f32.mrb[0].mxu0
        %v1409 = vpop.f32.mrb[0].mxu0
        %v1410 = vpop.f32.mrb[0].mxu0
        %1411 = vdwg.mxu0
        %1412 = vrot.lane.b32.xlu0 %v1190, 112
        %v1413 = vpop.permute.xlu0 %1412
        %1414 = vrot.lane.b32.xlu0 %v1190, 80
        %v1415 = vpop.permute.xlu0 %1414
        %v1417 = vsel %vm1194, %v1413, 0
        %v1420 = vsel %vm1194, %v1415, 0
        %1422 = vmatprep.subr.bf16.mxu0 0
        %1423 = vmatpush1.bf16.xpose.msra.mxu0 %v1420
        %1424 = vmatprep.subr.bf16.mxu0 0
        %1425 = vmatpush1.bf16.xpose.msra.mxu0 0
        %1426 = vmatprep.subr.bf16.mxu0 0
        %1427 = vmatpush1.bf16.xpose.msra.mxu0 0
        %1428 = vmatprep.subr.bf16.mxu0 0
        %1429 = vmatpush1.bf16.xpose.msra.mxu0 0
        %1430 = vmatprep.subr.bf16.mxu0 0
        %1431 = vmatpush1.bf16.xpose.msra.mxu0 0
        %1432 = vmatprep.subr.bf16.mxu0 0
        %1433 = vmatpush1.bf16.xpose.msra.mxu0 0
        %1434 = vmatprep.subr.bf16.mxu0 0
        %1435 = vmatpush1.bf16.xpose.msra.mxu0 0
        %1436 = vmatprep.subr.bf16.mxu0 0
        %1437 = vmatpush1.bf16.xpose.msra.mxu0 0
        %1438 = vmatprep.subr.bf16.mxu0 0
        %1439 = vmatpush1.bf16.xpose.msra.mxu0 0
        %1440 = vmatprep.subr.bf16.mxu0 0
        %1441 = vmatpush1.bf16.xpose.msra.mxu0 0
        %1442 = vmatprep.subr.bf16.mxu0 0
        %1443 = vmatpush1.bf16.xpose.msra.mxu0 0
        %1444 = vmatprep.subr.bf16.mxu0 0
        %1445 = vmatpush1.bf16.xpose.msra.mxu0 0
        %1446 = vmatprep.subr.bf16.mxu0 0
        %1447 = vmatpush1.bf16.xpose.msra.mxu0 0
        %1448 = vmatprep.subr.bf16.mxu0 0
        %1449 = vmatpush1.bf16.xpose.msra.mxu0 0
        %1450 = vmatprep.subr.bf16.mxu0 0
        %1451 = vmatpush1.bf16.xpose.msra.mxu0 0
        %1452 = vmatprep.subr.bf16.mxu0 0
        %1453 = vmatpush1.bf16.xpose.msra.mxu0 0
        %1454 = vmatprep.mubr.bf16.mxu0 0
        %1455 = vmatmul.mubr.bf16.gmra.mrb[0].mxu0 %v1417
        %v1456 = vpop.f32.mrb[0].mxu0
        %v1457 = vadd.f32 %v1121, %v1456
        %v1458 = vpop.f32.mrb[0].mxu0
        %v1459 = vpop.f32.mrb[0].mxu0
        %v1460 = vpop.f32.mrb[0].mxu0
        %1461 = vdwg.mxu0
        %v1462 = vsel %vm1194, %v1457, -inf
        %1463 = vmax.xlane.f32.xlu0 %v1462
        %v1464 = vpop.xlane.xlu0 %1463
        %v1465 = vsub.f32 %v1457, %v1464
        %v1466 = vmul.f32 %v1465, 1.442695
        %v1467 = vpow.pop %v1466
        %v1468 = vsel %vm1194, %v1467, 0.0
        %1469 = vadd.xlane.f32.xlu0 %v1468
        %v1470 = vpop.xlane.xlu0 %1469
        %v1471 = vrcp.pop %v1470
        %v1472 = vmul.f32 %v1467, %v1471
        %v1473 = vpack.c.bf16 %v1472, %v1472
        %1474 = vrot.lane.b32.xlu0 %v1190, 48
        %v1475 = vpop.permute.xlu0 %1474
        %v1477 = vsel %vm1194, %v1473, 0
        %v1480 = vsel %vm1258, %v1475, 0
        %1482 = vmatprep.subr.bf16.mxu0 0
        %1483 = vmatpush1.bf16.msra.mxu0 %v1480
        %1484 = vmatprep.subr.bf16.mxu0 0
        %1485 = vmatpush1.bf16.msra.mxu0 0
        %1486 = vmatprep.subr.bf16.mxu0 0
        %1487 = vmatpush1.bf16.msra.mxu0 0
        %1488 = vmatprep.subr.bf16.mxu0 0
        %1489 = vmatpush1.bf16.msra.mxu0 0
        %1490 = vmatprep.subr.bf16.mxu0 0
        %1491 = vmatpush1.bf16.msra.mxu0 0
        %1492 = vmatprep.subr.bf16.mxu0 0
        %1493 = vmatpush1.bf16.msra.mxu0 0
        %1494 = vmatprep.subr.bf16.mxu0 0
        %1495 = vmatpush1.bf16.msra.mxu0 0
        %1496 = vmatprep.subr.bf16.mxu0 0
        %1497 = vmatpush1.bf16.msra.mxu0 0
        %1498 = vmatprep.subr.bf16.mxu0 0
        %1499 = vmatpush1.bf16.msra.mxu0 0
        %1500 = vmatprep.subr.bf16.mxu0 0
        %1501 = vmatpush1.bf16.msra.mxu0 0
        %1502 = vmatprep.subr.bf16.mxu0 0
        %1503 = vmatpush1.bf16.msra.mxu0 0
        %1504 = vmatprep.subr.bf16.mxu0 0
        %1505 = vmatpush1.bf16.msra.mxu0 0
        %1506 = vmatprep.subr.bf16.mxu0 0
        %1507 = vmatpush1.bf16.msra.mxu0 0
        %1508 = vmatprep.subr.bf16.mxu0 0
        %1509 = vmatpush1.bf16.msra.mxu0 0
        %1510 = vmatprep.subr.bf16.mxu0 0
        %1511 = vmatpush1.bf16.msra.mxu0 0
        %1512 = vmatprep.subr.bf16.mxu0 0
        %1513 = vmatpush1.bf16.msra.mxu0 0
        %1514 = vmatprep.mubr.bf16.mxu0 0
        %1515 = vmatmul.mubr.bf16.gmra.mrb[0].mxu0 %v1477
        %v1516 = vpop.f32.mrb[0].mxu0
        %v1517 = vadd.f32 0.0, %v1516
        %v1518 = vpop.f32.mrb[0].mxu0
        %v1519 = vpop.f32.mrb[0].mxu0
        %v1520 = vpop.f32.mrb[0].mxu0
        %1521 = vdwg.mxu0
        %1522 = vrot.lane.b32.xlu0 %v1190, 104
        %v1523 = vpop.permute.xlu0 %1522
        %1524 = vrot.lane.b32.xlu0 %v1190, 72
        %v1525 = vpop.permute.xlu0 %1524
        %v1527 = vsel %vm1194, %v1523, 0
        %v1530 = vsel %vm1194, %v1525, 0
        %1532 = vmatprep.subr.bf16.mxu0 0
        %1533 = vmatpush1.bf16.xpose.msra.mxu0 %v1530
        %1534 = vmatprep.subr.bf16.mxu0 0
        %1535 = vmatpush1.bf16.xpose.msra.mxu0 0
        %1536 = vmatprep.subr.bf16.mxu0 0
        %1537 = vmatpush1.bf16.xpose.msra.mxu0 0
        %1538 = vmatprep.subr.bf16.mxu0 0
        %1539 = vmatpush1.bf16.xpose.msra.mxu0 0
        %1540 = vmatprep.subr.bf16.mxu0 0
        %1541 = vmatpush1.bf16.xpose.msra.mxu0 0
        %1542 = vmatprep.subr.bf16.mxu0 0
        %1543 = vmatpush1.bf16.xpose.msra.mxu0 0
        %1544 = vmatprep.subr.bf16.mxu0 0
        %1545 = vmatpush1.bf16.xpose.msra.mxu0 0
        %1546 = vmatprep.subr.bf16.mxu0 0
        %1547 = vmatpush1.bf16.xpose.msra.mxu0 0
        %1548 = vmatprep.subr.bf16.mxu0 0
        %1549 = vmatpush1.bf16.xpose.msra.mxu0 0
        %1550 = vmatprep.subr.bf16.mxu0 0
        %1551 = vmatpush1.bf16.xpose.msra.mxu0 0
        %1552 = vmatprep.subr.bf16.mxu0 0
        %1553 = vmatpush1.bf16.xpose.msra.mxu0 0
        %1554 = vmatprep.subr.bf16.mxu0 0
        %1555 = vmatpush1.bf16.xpose.msra.mxu0 0
        %1556 = vmatprep.subr.bf16.mxu0 0
        %1557 = vmatpush1.bf16.xpose.msra.mxu0 0
        %1558 = vmatprep.subr.bf16.mxu0 0
        %1559 = vmatpush1.bf16.xpose.msra.mxu0 0
        %1560 = vmatprep.subr.bf16.mxu0 0
        %1561 = vmatpush1.bf16.xpose.msra.mxu0 0
        %1562 = vmatprep.subr.bf16.mxu0 0
        %1563 = vmatpush1.bf16.xpose.msra.mxu0 0
        %1564 = vmatprep.mubr.bf16.mxu0 0
        %1565 = vmatmul.mubr.bf16.gmra.mrb[0].mxu0 %v1527
        %v1566 = vpop.f32.mrb[0].mxu0
        %v1567 = vadd.f32 %v1121, %v1566
        %v1568 = vpop.f32.mrb[0].mxu0
        %v1569 = vpop.f32.mrb[0].mxu0
        %v1570 = vpop.f32.mrb[0].mxu0
        %1571 = vdwg.mxu0
        %v1572 = vsel %vm1194, %v1567, -inf
        %1573 = vmax.xlane.f32.xlu0 %v1572
        %v1574 = vpop.xlane.xlu0 %1573
        %v1575 = vsub.f32 %v1567, %v1574
        %v1576 = vmul.f32 %v1575, 1.442695
        %v1577 = vpow.pop %v1576
        %v1578 = vsel %vm1194, %v1577, 0.0
        %1579 = vadd.xlane.f32.xlu0 %v1578
        %v1580 = vpop.xlane.xlu0 %1579
        %v1581 = vrcp.pop %v1580
        %v1582 = vmul.f32 %v1577, %v1581
        %v1583 = vpack.c.bf16 %v1582, %v1582
        %1584 = vrot.lane.b32.xlu0 %v1190, 40
        %v1585 = vpop.permute.xlu0 %1584
        %v1587 = vsel %vm1194, %v1583, 0
        %v1590 = vsel %vm1258, %v1585, 0
        %1592 = vmatprep.subr.bf16.mxu0 0
        %1593 = vmatpush1.bf16.msra.mxu0 %v1590
        %1594 = vmatprep.subr.bf16.mxu0 0
        %1595 = vmatpush1.bf16.msra.mxu0 0
        %1596 = vmatprep.subr.bf16.mxu0 0
        %1597 = vmatpush1.bf16.msra.mxu0 0
        %1598 = vmatprep.subr.bf16.mxu0 0
        %1599 = vmatpush1.bf16.msra.mxu0 0
        %1600 = vmatprep.subr.bf16.mxu0 0
        %1601 = vmatpush1.bf16.msra.mxu0 0
        %1602 = vmatprep.subr.bf16.mxu0 0
        %1603 = vmatpush1.bf16.msra.mxu0 0
        %1604 = vmatprep.subr.bf16.mxu0 0
        %1605 = vmatpush1.bf16.msra.mxu0 0
        %1606 = vmatprep.subr.bf16.mxu0 0
        %1607 = vmatpush1.bf16.msra.mxu0 0
        %1608 = vmatprep.subr.bf16.mxu0 0
        %1609 = vmatpush1.bf16.msra.mxu0 0
        %1610 = vmatprep.subr.bf16.mxu0 0
        %1611 = vmatpush1.bf16.msra.mxu0 0
        %1612 = vmatprep.subr.bf16.mxu0 0
        %1613 = vmatpush1.bf16.msra.mxu0 0
        %1614 = vmatprep.subr.bf16.mxu0 0
        %1615 = vmatpush1.bf16.msra.mxu0 0
        %1616 = vmatprep.subr.bf16.mxu0 0
        %1617 = vmatpush1.bf16.msra.mxu0 0
        %1618 = vmatprep.subr.bf16.mxu0 0
        %1619 = vmatpush1.bf16.msra.mxu0 0
        %1620 = vmatprep.subr.bf16.mxu0 0
        %1621 = vmatpush1.bf16.msra.mxu0 0
        %1622 = vmatprep.subr.bf16.mxu0 0
        %1623 = vmatpush1.bf16.msra.mxu0 0
        %1624 = vmatprep.mubr.bf16.mxu0 0
        %1625 = vmatmul.mubr.bf16.gmra.mrb[0].mxu0 %v1587
        %v1626 = vpop.f32.mrb[0].mxu0
        %v1627 = vadd.f32 0.0, %v1626
        %v1628 = vpop.f32.mrb[0].mxu0
        %v1629 = vpop.f32.mrb[0].mxu0
        %v1630 = vpop.f32.mrb[0].mxu0
        %1631 = vdwg.mxu0
        %1633 = vrot.lane.b32.xlu0 %v1407, 8
        %v1634 = vpop.permute.xlu0 %1633
        %1637 = vrot.lane.b32.xlu0 %v1517, 16
        %v1638 = vpop.permute.xlu0 %1637
        %1641 = vrot.lane.b32.xlu0 %v1627, 24
        %v1642 = vpop.permute.xlu0 %1641
        %v1644 = vsel %vm1194, %v1297, %v1634
        %vm1645 = vcmask 130048
        %v1646 = vsel %vm1645, %v1644, %v1638
        %vm1647 = vcmask 195584
        %v1648 = vsel %vm1647, %v1646, %v1642
        %v1649 = vpack.c.bf16 %v1648, %v1648
        %v1650 = vld [vmem:[%s1049] sm:$0xf]
        %v1651 = vld [vmem:[%s1049 + $0x4] sm:$0xf]
        %v1652 = vld [vmem:[%s1049 + $0x8] sm:$0xf]
        %v1653 = vld [vmem:[%s1049 + $0xc] sm:$0xf]
        %v1654 = vld [vmem:[%s1052] sm:$0x1]
        %v1656 = vlaneseq
        %v1657 = vshrl.u32 %v1656, 7
        %v1658 = vsub.s32 0, %v1657
        %v1659 = vrot.slane %v1654, %v1658
        %v1665 = vunpack.c.l.b16 %v1650
        %v1666 = vunpack.c.l.b16 %v1651
        %v1667 = vunpack.c.l.b16 %v1652
        %v1668 = vunpack.c.l.b16 %v1653
        %v1669 = vpack.c.b16 %v1666, %v1665
        %v1670 = vpack.c.b16 %v1668, %v1667
        %v1674 = vsel %vm1146, %v1649, 0
        %1676 = vmatprep.subr.bf16.mxu0 0
        %1677 = vmatpush1.bf16.msra.mxu0 %v1669
        %1678 = vmatprep.subr.bf16.mxu0 0
        %1679 = vmatpush1.bf16.msra.mxu0 %v1670
        %1680 = vmatprep.subr.bf16.mxu0 0
        %1681 = vmatpush1.bf16.msra.mxu0 0
        %1682 = vmatprep.subr.bf16.mxu0 0
        %1683 = vmatpush1.bf16.msra.mxu0 0
        %1684 = vmatprep.subr.bf16.mxu0 0
        %1685 = vmatpush1.bf16.msra.mxu0 0
        %1686 = vmatprep.subr.bf16.mxu0 0
        %1687 = vmatpush1.bf16.msra.mxu0 0
        %1688 = vmatprep.subr.bf16.mxu0 0
        %1689 = vmatpush1.bf16.msra.mxu0 0
        %1690 = vmatprep.subr.bf16.mxu0 0
        %1691 = vmatpush1.bf16.msra.mxu0 0
        %1692 = vmatprep.subr.bf16.mxu0 0
        %1693 = vmatpush1.bf16.msra.mxu0 0
        %1694 = vmatprep.subr.bf16.mxu0 0
        %1695 = vmatpush1.bf16.msra.mxu0 0
        %1696 = vmatprep.subr.bf16.mxu0 0
        %1697 = vmatpush1.bf16.msra.mxu0 0
        %1698 = vmatprep.subr.bf16.mxu0 0
        %1699 = vmatpush1.bf16.msra.mxu0 0
        %1700 = vmatprep.subr.bf16.mxu0 0
        %1701 = vmatpush1.bf16.msra.mxu0 0
        %1702 = vmatprep.subr.bf16.mxu0 0
        %1703 = vmatpush1.bf16.msra.mxu0 0
        %1704 = vmatprep.subr.bf16.mxu0 0
        %1705 = vmatpush1.bf16.msra.mxu0 0
        %1706 = vmatprep.subr.bf16.mxu0 0
        %1707 = vmatpush1.bf16.msra.mxu0 0
        %1708 = vmatprep.mubr.bf16.mxu0 0
        %1709 = vmatmul.mubr.bf16.gmra.mrb[0].mxu0 %v1674
        %v1710 = vpop.f32.mrb[0].mxu0
        %v1711 = vadd.f32 %v1659, %v1710
        %v1712 = vpop.f32.mrb[0].mxu0
        %v1713 = vpop.f32.mrb[0].mxu0
        %v1714 = vpop.f32.mrb[0].mxu0
        %1715 = vdwg.mxu0
        %v1716 = vadd.f32 %v1119, %v1711
        %v1717 = vld [vmem:[%s1079] sm:$0x1]
        %v1718 = vld [vmem:[%s1082] sm:$0x1]
        %v1719 = vsel %vm1146, %v1716, 0.0
        %1720 = vadd.xlane.f32.xlu0 %v1719
        %v1721 = vpop.xlane.xlu0 %1720
        %v1722 = vrcp.pop 32.0
        %v1723 = vmul.f32 %v1721, %v1722
        %v1724 = vsub.f32 %v1716, %v1723
        %v1725 = vmul.f32 %v1724, %v1724
        %v1726 = vsel %vm1146, %v1725, 0.0
        %1727 = vadd.xlane.f32.xlu0 %v1726
        %v1728 = vpop.xlane.xlu0 %1727
        %v1729 = vmul.f32 %v1728, %v1722
        %v1730 = vadd.f32 %v1729, 1e-05
        %v1731 = vrsqrt.pop %v1730
        %v1732 = vmul.f32 %v1724, %v1731
        %v1734 = vlaneseq
        %v1735 = vshrl.u32 %v1734, 7
        %v1736 = vsub.s32 0, %v1735
        %v1737 = vrot.slane %v1717, %v1736
        %v1739 = vmul.f32 %v1732, %v1737
        %v1741 = vlaneseq
        %v1742 = vshrl.u32 %v1741, 7
        %v1743 = vsub.s32 0, %v1742
        %v1744 = vrot.slane %v1718, %v1743
        %v1746 = vadd.f32 %v1739, %v1744
        %v1747 = vpack.c.bf16 %v1746, %v1746
        %v1748 = vld [vmem:[%s1057] sm:$0xf]
        %v1749 = vld [vmem:[%s1057 + $0x4] sm:$0xf]
        %v1750 = vld [vmem:[%s1057 + $0x8] sm:$0xf]
        %v1751 = vld [vmem:[%s1057 + $0xc] sm:$0xf]
        %v1752 = vld [vmem:[%s1060] sm:$0x1]
        %v1754 = vlaneseq
        %v1755 = vshrl.u32 %v1754, 7
        %v1756 = vsub.s32 0, %v1755
        %v1757 = vrot.slane %v1752, %v1756
        %v1763 = vunpack.c.l.b16 %v1748
        %v1764 = vunpack.c.l.b16 %v1749
        %v1765 = vunpack.c.l.b16 %v1750
        %v1766 = vunpack.c.l.b16 %v1751
        %v1767 = vpack.c.b16 %v1764, %v1763
        %v1768 = vpack.c.b16 %v1766, %v1765
        %v1772 = vsel %vm1146, %v1747, 0
        %1774 = vmatprep.subr.bf16.mxu0 0
        %1775 = vmatpush1.bf16.msra.mxu0 %v1767
        %1776 = vmatprep.subr.bf16.mxu0 0
        %1777 = vmatpush1.bf16.msra.mxu0 %v1768
        %1778 = vmatprep.subr.bf16.mxu0 0
        %1779 = vmatpush1.bf16.msra.mxu0 0
        %1780 = vmatprep.subr.bf16.mxu0 0
        %1781 = vmatpush1.bf16.msra.mxu0 0
        %1782 = vmatprep.subr.bf16.mxu0 0
        %1783 = vmatpush1.bf16.msra.mxu0 0
        %1784 = vmatprep.subr.bf16.mxu0 0
        %1785 = vmatpush1.bf16.msra.mxu0 0
        %1786 = vmatprep.subr.bf16.mxu0 0
        %1787 = vmatpush1.bf16.msra.mxu0 0
        %1788 = vmatprep.subr.bf16.mxu0 0
        %1789 = vmatpush1.bf16.msra.mxu0 0
        %1790 = vmatprep.subr.bf16.mxu0 0
        %1791 = vmatpush1.bf16.msra.mxu0 0
        %1792 = vmatprep.subr.bf16.mxu0 0
        %1793 = vmatpush1.bf16.msra.mxu0 0
        %1794 = vmatprep.subr.bf16.mxu0 0
        %1795 = vmatpush1.bf16.msra.mxu0 0
        %1796 = vmatprep.subr.bf16.mxu0 0
        %1797 = vmatpush1.bf16.msra.mxu0 0
        %1798 = vmatprep.subr.bf16.mxu0 0
        %1799 = vmatpush1.bf16.msra.mxu0 0
        %1800 = vmatprep.subr.bf16.mxu0 0
        %1801 = vmatpush1.bf16.msra.mxu0 0
        %1802 = vmatprep.subr.bf16.mxu0 0
        %1803 = vmatpush1.bf16.msra.mxu0 0
        %1804 = vmatprep.subr.bf16.mxu0 0
        %1805 = vmatpush1.bf16.msra.mxu0 0
        %1806 = vmatprep.mubr.bf16.mxu0 0
        %1807 = vmatmul.mubr.bf16.gmra.mrb[0].mxu0 %v1772
        %v1808 = vpop.f32.mrb[0].mxu0
        %v1809 = vadd.f32 %v1757, %v1808
        %v1810 = vpop.f32.mrb[0].mxu0
        %v1811 = vpop.f32.mrb[0].mxu0
        %v1812 = vpop.f32.mrb[0].mxu0
        %1813 = vdwg.mxu0
        %v1814 = vpack.c.bf16 %v1120, %v1120
        %v1815 = vld [vmem:[%s1065] sm:$0xf]
        %v1816 = vld [vmem:[%s1065 + $0x4] sm:$0xf]
        %v1817 = vld [vmem:[%s1065 + $0x8] sm:$0xf]
        %v1818 = vld [vmem:[%s1065 + $0xc] sm:$0xf]
        %v1819 = vld [vmem:[%s1068] sm:$0x1]
        %v1821 = vlaneseq
        %v1822 = vshrl.u32 %v1821, 7
        %v1823 = vsub.s32 0, %v1822
        %v1824 = vrot.slane %v1819, %v1823
        %v1830 = vunpack.c.l.b16 %v1815
        %v1831 = vunpack.c.l.b16 %v1816
        %v1832 = vunpack.c.l.b16 %v1817
        %v1833 = vunpack.c.l.b16 %v1818
        %v1834 = vpack.c.b16 %v1831, %v1830
        %v1835 = vpack.c.b16 %v1833, %v1832
        %v1839 = vsel %vm1146, %v1814, 0
        %1841 = vmatprep.subr.bf16.mxu0 0
        %1842 = vmatpush1.bf16.msra.mxu0 %v1834
        %1843 = vmatprep.subr.bf16.mxu0 0
        %1844 = vmatpush1.bf16.msra.mxu0 %v1835
        %1845 = vmatprep.subr.bf16.mxu0 0
        %1846 = vmatpush1.bf16.msra.mxu0 0
        %1847 = vmatprep.subr.bf16.mxu0 0
        %1848 = vmatpush1.bf16.msra.mxu0 0
        %1849 = vmatprep.subr.bf16.mxu0 0
        %1850 = vmatpush1.bf16.msra.mxu0 0
        %1851 = vmatprep.subr.bf16.mxu0 0
        %1852 = vmatpush1.bf16.msra.mxu0 0
        %1853 = vmatprep.subr.bf16.mxu0 0
        %1854 = vmatpush1.bf16.msra.mxu0 0
        %1855 = vmatprep.subr.bf16.mxu0 0
        %1856 = vmatpush1.bf16.msra.mxu0 0
        %1857 = vmatprep.subr.bf16.mxu0 0
        %1858 = vmatpush1.bf16.msra.mxu0 0
        %1859 = vmatprep.subr.bf16.mxu0 0
        %1860 = vmatpush1.bf16.msra.mxu0 0
        %1861 = vmatprep.subr.bf16.mxu0 0
        %1862 = vmatpush1.bf16.msra.mxu0 0
        %1863 = vmatprep.subr.bf16.mxu0 0
        %1864 = vmatpush1.bf16.msra.mxu0 0
        %1865 = vmatprep.subr.bf16.mxu0 0
        %1866 = vmatpush1.bf16.msra.mxu0 0
        %1867 = vmatprep.subr.bf16.mxu0 0
        %1868 = vmatpush1.bf16.msra.mxu0 0
        %1869 = vmatprep.subr.bf16.mxu0 0
        %1870 = vmatpush1.bf16.msra.mxu0 0
        %1871 = vmatprep.subr.bf16.mxu0 0
        %1872 = vmatpush1.bf16.msra.mxu0 0
        %1873 = vmatprep.mubr.bf16.mxu0 0
        %1874 = vmatmul.mubr.bf16.gmra.mrb[0].mxu0 %v1839
        %v1875 = vpop.f32.mrb[0].mxu0
        %v1876 = vadd.f32 %v1824, %v1875
        %v1877 = vpop.f32.mrb[0].mxu0
        %v1878 = vpop.f32.mrb[0].mxu0
        %v1879 = vpop.f32.mrb[0].mxu0
        %1880 = vdwg.mxu0
        %v1881 = vpack.c.bf16 %v1809, %v1809
        %v1882 = vpack.c.bf16 %v1876, %v1876
        %v1884 = vsel %vm1194, %v1881, 0
        %v1887 = vsel %vm1194, %v1882, 0
        %1889 = vmatprep.subr.bf16.mxu0 0
        %1890 = vmatpush1.bf16.xpose.msra.mxu0 %v1887
        %1891 = vmatprep.subr.bf16.mxu0 0
        %1892 = vmatpush1.bf16.xpose.msra.mxu0 0
        %1893 = vmatprep.subr.bf16.mxu0 0
        %1894 = vmatpush1.bf16.xpose.msra.mxu0 0
        %1895 = vmatprep.subr.bf16.mxu0 0
        %1896 = vmatpush1.bf16.xpose.msra.mxu0 0
        %1897 = vmatprep.subr.bf16.mxu0 0
        %1898 = vmatpush1.bf16.xpose.msra.mxu0 0
        %1899 = vmatprep.subr.bf16.mxu0 0
        %1900 = vmatpush1.bf16.xpose.msra.mxu0 0
        %1901 = vmatprep.subr.bf16.mxu0 0
        %1902 = vmatpush1.bf16.xpose.msra.mxu0 0
        %1903 = vmatprep.subr.bf16.mxu0 0
        %1904 = vmatpush1.bf16.xpose.msra.mxu0 0
        %1905 = vmatprep.subr.bf16.mxu0 0
        %1906 = vmatpush1.bf16.xpose.msra.mxu0 0
        %1907 = vmatprep.subr.bf16.mxu0 0
        %1908 = vmatpush1.bf16.xpose.msra.mxu0 0
        %1909 = vmatprep.subr.bf16.mxu0 0
        %1910 = vmatpush1.bf16.xpose.msra.mxu0 0
        %1911 = vmatprep.subr.bf16.mxu0 0
        %1912 = vmatpush1.bf16.xpose.msra.mxu0 0
        %1913 = vmatprep.subr.bf16.mxu0 0
        %1914 = vmatpush1.bf16.xpose.msra.mxu0 0
        %1915 = vmatprep.subr.bf16.mxu0 0
        %1916 = vmatpush1.bf16.xpose.msra.mxu0 0
        %1917 = vmatprep.subr.bf16.mxu0 0
        %1918 = vmatpush1.bf16.xpose.msra.mxu0 0
        %1919 = vmatprep.subr.bf16.mxu0 0
        %1920 = vmatpush1.bf16.xpose.msra.mxu0 0
        %1921 = vmatprep.mubr.bf16.mxu0 0
        %1922 = vmatmul.mubr.bf16.gmra.mrb[0].mxu0 %v1884
        %v1923 = vpop.f32.mrb[0].mxu0
        %v1924 = vadd.f32 0.0, %v1923
        %v1925 = vpop.f32.mrb[0].mxu0
        %v1926 = vpop.f32.mrb[0].mxu0
        %v1927 = vpop.f32.mrb[0].mxu0
        %1928 = vdwg.mxu0
        %v1929 = vsel %vm1194, %v1924, -inf
        %1930 = vmax.xlane.f32.xlu0 %v1929
        %v1931 = vpop.xlane.xlu0 %1930
        %v1932 = vsub.f32 %v1924, %v1931
        %v1933 = vmul.f32 %v1932, 1.442695
        %v1934 = vpow.pop %v1933
        %v1935 = vsel %vm1194, %v1934, 0.0
        %1936 = vadd.xlane.f32.xlu0 %v1935
        %v1937 = vpop.xlane.xlu0 %1936
        %v1938 = vrcp.pop %v1937
        %v1939 = vmul.f32 %v1934, %v1938
        %v1940 = vpack.c.bf16 %v1939, %v1939
        %1942 = vrot.lane.b32.xlu0 %v1882, 96
        %v1943 = vpop.permute.xlu0 %1942
        %v1945 = vsel %vm1194, %v1940, 0
        %v1948 = vsel %vm1258, %v1943, 0
        %1950 = vmatprep.subr.bf16.mxu0 0
        %1951 = vmatpush1.bf16.msra.mxu0 %v1948
        %1952 = vmatprep.subr.bf16.mxu0 0
        %1953 = vmatpush1.bf16.msra.mxu0 0
        %1954 = vmatprep.subr.bf16.mxu0 0
        %1955 = vmatpush1.bf16.msra.mxu0 0
        %1956 = vmatprep.subr.bf16.mxu0 0
        %1957 = vmatpush1.bf16.msra.mxu0 0
        %1958 = vmatprep.subr.bf16.mxu0 0
        %1959 = vmatpush1.bf16.msra.mxu0 0
        %1960 = vmatprep.subr.bf16.mxu0 0
        %1961 = vmatpush1.bf16.msra.mxu0 0
        %1962 = vmatprep.subr.bf16.mxu0 0
        %1963 = vmatpush1.bf16.msra.mxu0 0
        %1964 = vmatprep.subr.bf16.mxu0 0
        %1965 = vmatpush1.bf16.msra.mxu0 0
        %1966 = vmatprep.subr.bf16.mxu0 0
        %1967 = vmatpush1.bf16.msra.mxu0 0
        %1968 = vmatprep.subr.bf16.mxu0 0
        %1969 = vmatpush1.bf16.msra.mxu0 0
        %1970 = vmatprep.subr.bf16.mxu0 0
        %1971 = vmatpush1.bf16.msra.mxu0 0
        %1972 = vmatprep.subr.bf16.mxu0 0
        %1973 = vmatpush1.bf16.msra.mxu0 0
        %1974 = vmatprep.subr.bf16.mxu0 0
        %1975 = vmatpush1.bf16.msra.mxu0 0
        %1976 = vmatprep.subr.bf16.mxu0 0
        %1977 = vmatpush1.bf16.msra.mxu0 0
        %1978 = vmatprep.subr.bf16.mxu0 0
        %1979 = vmatpush1.bf16.msra.mxu0 0
        %1980 = vmatprep.subr.bf16.mxu0 0
        %1981 = vmatpush1.bf16.msra.mxu0 0
        %1982 = vmatprep.mubr.bf16.mxu0 0
        %1983 = vmatmul.mubr.bf16.gmra.mrb[0].mxu0 %v1945
        %v1984 = vpop.f32.mrb[0].mxu0
        %v1985 = vadd.f32 0.0, %v1984
        %v1986 = vpop.f32.mrb[0].mxu0
        %v1987 = vpop.f32.mrb[0].mxu0
        %v1988 = vpop.f32.mrb[0].mxu0
        %1989 = vdwg.mxu0
        %1991 = vrot.lane.b32.xlu0 %v1881, 120
        %v1992 = vpop.permute.xlu0 %1991
        %1993 = vrot.lane.b32.xlu0 %v1882, 120
        %v1994 = vpop.permute.xlu0 %1993
        %v1996 = vsel %vm1194, %v1992, 0
        %v1999 = vsel %vm1194, %v1994, 0
        %2001 = vmatprep.subr.bf16.mxu0 0
        %2002 = vmatpush1.bf16.xpose.msra.mxu0 %v1999
        %2003 = vmatprep.subr.bf16.mxu0 0
        %2004 = vmatpush1.bf16.xpose.msra.mxu0 0
        %2005 = vmatprep.subr.bf16.mxu0 0
        %2006 = vmatpush1.bf16.xpose.msra.mxu0 0
        %2007 = vmatprep.subr.bf16.mxu0 0
        %2008 = vmatpush1.bf16.xpose.msra.mxu0 0
        %2009 = vmatprep.subr.bf16.mxu0 0
        %2010 = vmatpush1.bf16.xpose.msra.mxu0 0
        %2011 = vmatprep.subr.bf16.mxu0 0
        %2012 = vmatpush1.bf16.xpose.msra.mxu0 0
        %2013 = vmatprep.subr.bf16.mxu0 0
        %2014 = vmatpush1.bf16.xpose.msra.mxu0 0
        %2015 = vmatprep.subr.bf16.mxu0 0
        %2016 = vmatpush1.bf16.xpose.msra.mxu0 0
        %2017 = vmatprep.subr.bf16.mxu0 0
        %2018 = vmatpush1.bf16.xpose.msra.mxu0 0
        %2019 = vmatprep.subr.bf16.mxu0 0
        %2020 = vmatpush1.bf16.xpose.msra.mxu0 0
        %2021 = vmatprep.subr.bf16.mxu0 0
        %2022 = vmatpush1.bf16.xpose.msra.mxu0 0
        %2023 = vmatprep.subr.bf16.mxu0 0
        %2024 = vmatpush1.bf16.xpose.msra.mxu0 0
        %2025 = vmatprep.subr.bf16.mxu0 0
        %2026 = vmatpush1.bf16.xpose.msra.mxu0 0
        %2027 = vmatprep.subr.bf16.mxu0 0
        %2028 = vmatpush1.bf16.xpose.msra.mxu0 0
        %2029 = vmatprep.subr.bf16.mxu0 0
        %2030 = vmatpush1.bf16.xpose.msra.mxu0 0
        %2031 = vmatprep.subr.bf16.mxu0 0
        %2032 = vmatpush1.bf16.xpose.msra.mxu0 0
        %2033 = vmatprep.mubr.bf16.mxu0 0
        %2034 = vmatmul.mubr.bf16.gmra.mrb[0].mxu0 %v1996
        %v2035 = vpop.f32.mrb[0].mxu0
        %v2036 = vadd.f32 0.0, %v2035
        %v2037 = vpop.f32.mrb[0].mxu0
        %v2038 = vpop.f32.mrb[0].mxu0
        %v2039 = vpop.f32.mrb[0].mxu0
        %2040 = vdwg.mxu0
        %v2041 = vsel %vm1194, %v2036, -inf
        %2042 = vmax.xlane.f32.xlu0 %v2041
        %v2043 = vpop.xlane.xlu0 %2042
        %v2044 = vsub.f32 %v2036, %v2043
        %v2045 = vmul.f32 %v2044, 1.442695
        %v2046 = vpow.pop %v2045
        %v2047 = vsel %vm1194, %v2046, 0.0
        %2048 = vadd.xlane.f32.xlu0 %v2047
        %v2049 = vpop.xlane.xlu0 %2048
        %v2050 = vrcp.pop %v2049
        %v2051 = vmul.f32 %v2046, %v2050
        %v2052 = vpack.c.bf16 %v2051, %v2051
        %2053 = vrot.lane.b32.xlu0 %v1882, 88
        %v2054 = vpop.permute.xlu0 %2053
        %v2056 = vsel %vm1194, %v2052, 0
        %v2059 = vsel %vm1258, %v2054, 0
        %2061 = vmatprep.subr.bf16.mxu0 0
        %2062 = vmatpush1.bf16.msra.mxu0 %v2059
        %2063 = vmatprep.subr.bf16.mxu0 0
        %2064 = vmatpush1.bf16.msra.mxu0 0
        %2065 = vmatprep.subr.bf16.mxu0 0
        %2066 = vmatpush1.bf16.msra.mxu0 0
        %2067 = vmatprep.subr.bf16.mxu0 0
        %2068 = vmatpush1.bf16.msra.mxu0 0
        %2069 = vmatprep.subr.bf16.mxu0 0
        %2070 = vmatpush1.bf16.msra.mxu0 0
        %2071 = vmatprep.subr.bf16.mxu0 0
        %2072 = vmatpush1.bf16.msra.mxu0 0
        %2073 = vmatprep.subr.bf16.mxu0 0
        %2074 = vmatpush1.bf16.msra.mxu0 0
        %2075 = vmatprep.subr.bf16.mxu0 0
        %2076 = vmatpush1.bf16.msra.mxu0 0
        %2077 = vmatprep.subr.bf16.mxu0 0
        %2078 = vmatpush1.bf16.msra.mxu0 0
        %2079 = vmatprep.subr.bf16.mxu0 0
        %2080 = vmatpush1.bf16.msra.mxu0 0
        %2081 = vmatprep.subr.bf16.mxu0 0
        %2082 = vmatpush1.bf16.msra.mxu0 0
        %2083 = vmatprep.subr.bf16.mxu0 0
        %2084 = vmatpush1.bf16.msra.mxu0 0
        %2085 = vmatprep.subr.bf16.mxu0 0
        %2086 = vmatpush1.bf16.msra.mxu0 0
        %2087 = vmatprep.subr.bf16.mxu0 0
        %2088 = vmatpush1.bf16.msra.mxu0 0
        %2089 = vmatprep.subr.bf16.mxu0 0
        %2090 = vmatpush1.bf16.msra.mxu0 0
        %2091 = vmatprep.subr.bf16.mxu0 0
        %2092 = vmatpush1.bf16.msra.mxu0 0
        %2093 = vmatprep.mubr.bf16.mxu0 0
        %2094 = vmatmul.mubr.bf16.gmra.mrb[0].mxu0 %v2056
        %v2095 = vpop.f32.mrb[0].mxu0
        %v2096 = vadd.f32 0.0, %v2095
        %v2097 = vpop.f32.mrb[0].mxu0
        %v2098 = vpop.f32.mrb[0].mxu0
        %v2099 = vpop.f32.mrb[0].mxu0
        %2100 = vdwg.mxu0
        %2101 = vrot.lane.b32.xlu0 %v1881, 112
        %v2102 = vpop.permute.xlu0 %2101
        %2103 = vrot.lane.b32.xlu0 %v1882, 112
        %v2104 = vpop.permute.xlu0 %2103
        %v2106 = vsel %vm1194, %v2102, 0
        %v2109 = vsel %vm1194, %v2104, 0
        %2111 = vmatprep.subr.bf16.mxu0 0
        %2112 = vmatpush1.bf16.xpose.msra.mxu0 %v2109
        %2113 = vmatprep.subr.bf16.mxu0 0
        %2114 = vmatpush1.bf16.xpose.msra.mxu0 0
        %2115 = vmatprep.subr.bf16.mxu0 0
        %2116 = vmatpush1.bf16.xpose.msra.mxu0 0
        %2117 = vmatprep.subr.bf16.mxu0 0
        %2118 = vmatpush1.bf16.xpose.msra.mxu0 0
        %2119 = vmatprep.subr.bf16.mxu0 0
        %2120 = vmatpush1.bf16.xpose.msra.mxu0 0
        %2121 = vmatprep.subr.bf16.mxu0 0
        %2122 = vmatpush1.bf16.xpose.msra.mxu0 0
        %2123 = vmatprep.subr.bf16.mxu0 0
        %2124 = vmatpush1.bf16.xpose.msra.mxu0 0
        %2125 = vmatprep.subr.bf16.mxu0 0
        %2126 = vmatpush1.bf16.xpose.msra.mxu0 0
        %2127 = vmatprep.subr.bf16.mxu0 0
        %2128 = vmatpush1.bf16.xpose.msra.mxu0 0
        %2129 = vmatprep.subr.bf16.mxu0 0
        %2130 = vmatpush1.bf16.xpose.msra.mxu0 0
        %2131 = vmatprep.subr.bf16.mxu0 0
        %2132 = vmatpush1.bf16.xpose.msra.mxu0 0
        %2133 = vmatprep.subr.bf16.mxu0 0
        %2134 = vmatpush1.bf16.xpose.msra.mxu0 0
        %2135 = vmatprep.subr.bf16.mxu0 0
        %2136 = vmatpush1.bf16.xpose.msra.mxu0 0
        %2137 = vmatprep.subr.bf16.mxu0 0
        %2138 = vmatpush1.bf16.xpose.msra.mxu0 0
        %2139 = vmatprep.subr.bf16.mxu0 0
        %2140 = vmatpush1.bf16.xpose.msra.mxu0 0
        %2141 = vmatprep.subr.bf16.mxu0 0
        %2142 = vmatpush1.bf16.xpose.msra.mxu0 0
        %2143 = vmatprep.mubr.bf16.mxu0 0
        %2144 = vmatmul.mubr.bf16.gmra.mrb[0].mxu0 %v2106
        %v2145 = vpop.f32.mrb[0].mxu0
        %v2146 = vadd.f32 0.0, %v2145
        %v2147 = vpop.f32.mrb[0].mxu0
        %v2148 = vpop.f32.mrb[0].mxu0
        %v2149 = vpop.f32.mrb[0].mxu0
        %2150 = vdwg.mxu0
        %v2151 = vsel %vm1194, %v2146, -inf
        %2152 = vmax.xlane.f32.xlu0 %v2151
        %v2153 = vpop.xlane.xlu0 %2152
        %v2154 = vsub.f32 %v2146, %v2153
        %v2155 = vmul.f32 %v2154, 1.442695
        %v2156 = vpow.pop %v2155
        %v2157 = vsel %vm1194, %v2156, 0.0
        %2158 = vadd.xlane.f32.xlu0 %v2157
        %v2159 = vpop.xlane.xlu0 %2158
        %v2160 = vrcp.pop %v2159
        %v2161 = vmul.f32 %v2156, %v2160
        %v2162 = vpack.c.bf16 %v2161, %v2161
        %2163 = vrot.lane.b32.xlu0 %v1882, 80
        %v2164 = vpop.permute.xlu0 %2163
        %v2166 = vsel %vm1194, %v2162, 0
        %v2169 = vsel %vm1258, %v2164, 0
        %2171 = vmatprep.subr.bf16.mxu0 0
        %2172 = vmatpush1.bf16.msra.mxu0 %v2169
        %2173 = vmatprep.subr.bf16.mxu0 0
        %2174 = vmatpush1.bf16.msra.mxu0 0
        %2175 = vmatprep.subr.bf16.mxu0 0
        %2176 = vmatpush1.bf16.msra.mxu0 0
        %2177 = vmatprep.subr.bf16.mxu0 0
        %2178 = vmatpush1.bf16.msra.mxu0 0
        %2179 = vmatprep.subr.bf16.mxu0 0
        %2180 = vmatpush1.bf16.msra.mxu0 0
        %2181 = vmatprep.subr.bf16.mxu0 0
        %2182 = vmatpush1.bf16.msra.mxu0 0
        %2183 = vmatprep.subr.bf16.mxu0 0
        %2184 = vmatpush1.bf16.msra.mxu0 0
        %2185 = vmatprep.subr.bf16.mxu0 0
        %2186 = vmatpush1.bf16.msra.mxu0 0
        %2187 = vmatprep.subr.bf16.mxu0 0
        %2188 = vmatpush1.bf16.msra.mxu0 0
        %2189 = vmatprep.subr.bf16.mxu0 0
        %2190 = vmatpush1.bf16.msra.mxu0 0
        %2191 = vmatprep.subr.bf16.mxu0 0
        %2192 = vmatpush1.bf16.msra.mxu0 0
        %2193 = vmatprep.subr.bf16.mxu0 0
        %2194 = vmatpush1.bf16.msra.mxu0 0
        %2195 = vmatprep.subr.bf16.mxu0 0
        %2196 = vmatpush1.bf16.msra.mxu0 0
        %2197 = vmatprep.subr.bf16.mxu0 0
        %2198 = vmatpush1.bf16.msra.mxu0 0
        %2199 = vmatprep.subr.bf16.mxu0 0
        %2200 = vmatpush1.bf16.msra.mxu0 0
        %2201 = vmatprep.subr.bf16.mxu0 0
        %2202 = vmatpush1.bf16.msra.mxu0 0
        %2203 = vmatprep.mubr.bf16.mxu0 0
        %2204 = vmatmul.mubr.bf16.gmra.mrb[0].mxu0 %v2166
        %v2205 = vpop.f32.mrb[0].mxu0
        %v2206 = vadd.f32 0.0, %v2205
        %v2207 = vpop.f32.mrb[0].mxu0
        %v2208 = vpop.f32.mrb[0].mxu0
        %v2209 = vpop.f32.mrb[0].mxu0
        %2210 = vdwg.mxu0
        %2211 = vrot.lane.b32.xlu0 %v1881, 104
        %v2212 = vpop.permute.xlu0 %2211
        %2213 = vrot.lane.b32.xlu0 %v1882, 104
        %v2214 = vpop.permute.xlu0 %2213
        %v2216 = vsel %vm1194, %v2212, 0
        %v2219 = vsel %vm1194, %v2214, 0
        %2221 = vmatprep.subr.bf16.mxu0 0
        %2222 = vmatpush1.bf16.xpose.msra.mxu0 %v2219
        %2223 = vmatprep.subr.bf16.mxu0 0
        %2224 = vmatpush1.bf16.xpose.msra.mxu0 0
        %2225 = vmatprep.subr.bf16.mxu0 0
        %2226 = vmatpush1.bf16.xpose.msra.mxu0 0
        %2227 = vmatprep.subr.bf16.mxu0 0
        %2228 = vmatpush1.bf16.xpose.msra.mxu0 0
        %2229 = vmatprep.subr.bf16.mxu0 0
        %2230 = vmatpush1.bf16.xpose.msra.mxu0 0
        %2231 = vmatprep.subr.bf16.mxu0 0
        %2232 = vmatpush1.bf16.xpose.msra.mxu0 0
        %2233 = vmatprep.subr.bf16.mxu0 0
        %2234 = vmatpush1.bf16.xpose.msra.mxu0 0
        %2235 = vmatprep.subr.bf16.mxu0 0
        %2236 = vmatpush1.bf16.xpose.msra.mxu0 0
        %2237 = vmatprep.subr.bf16.mxu0 0
        %2238 = vmatpush1.bf16.xpose.msra.mxu0 0
        %2239 = vmatprep.subr.bf16.mxu0 0
        %2240 = vmatpush1.bf16.xpose.msra.mxu0 0
        %2241 = vmatprep.subr.bf16.mxu0 0
        %2242 = vmatpush1.bf16.xpose.msra.mxu0 0
        %2243 = vmatprep.subr.bf16.mxu0 0
        %2244 = vmatpush1.bf16.xpose.msra.mxu0 0
        %2245 = vmatprep.subr.bf16.mxu0 0
        %2246 = vmatpush1.bf16.xpose.msra.mxu0 0
        %2247 = vmatprep.subr.bf16.mxu0 0
        %2248 = vmatpush1.bf16.xpose.msra.mxu0 0
        %2249 = vmatprep.subr.bf16.mxu0 0
        %2250 = vmatpush1.bf16.xpose.msra.mxu0 0
        %2251 = vmatprep.subr.bf16.mxu0 0
        %2252 = vmatpush1.bf16.xpose.msra.mxu0 0
        %2253 = vmatprep.mubr.bf16.mxu0 0
        %2254 = vmatmul.mubr.bf16.gmra.mrb[0].mxu0 %v2216
        %v2255 = vpop.f32.mrb[0].mxu0
        %v2256 = vadd.f32 0.0, %v2255
        %v2257 = vpop.f32.mrb[0].mxu0
        %v2258 = vpop.f32.mrb[0].mxu0
        %v2259 = vpop.f32.mrb[0].mxu0
        %2260 = vdwg.mxu0
        %v2261 = vsel %vm1194, %v2256, -inf
        %2262 = vmax.xlane.f32.xlu0 %v2261
        %v2263 = vpop.xlane.xlu0 %2262
        %v2264 = vsub.f32 %v2256, %v2263
        %v2265 = vmul.f32 %v2264, 1.442695
        %v2266 = vpow.pop %v2265
        %v2267 = vsel %vm1194, %v2266, 0.0
        %2268 = vadd.xlane.f32.xlu0 %v2267
        %v2269 = vpop.xlane.xlu0 %2268
        %v2270 = vrcp.pop %v2269
        %v2271 = vmul.f32 %v2266, %v2270
        %v2272 = vpack.c.bf16 %v2271, %v2271
        %2273 = vrot.lane.b32.xlu0 %v1882, 72
        %v2274 = vpop.permute.xlu0 %2273
        %v2276 = vsel %vm1194, %v2272, 0
        %v2279 = vsel %vm1258, %v2274, 0
        %2281 = vmatprep.subr.bf16.mxu0 0
        %2282 = vmatpush1.bf16.msra.mxu0 %v2279
        %2283 = vmatprep.subr.bf16.mxu0 0
        %2284 = vmatpush1.bf16.msra.mxu0 0
        %2285 = vmatprep.subr.bf16.mxu0 0
        %2286 = vmatpush1.bf16.msra.mxu0 0
        %2287 = vmatprep.subr.bf16.mxu0 0
        %2288 = vmatpush1.bf16.msra.mxu0 0
        %2289 = vmatprep.subr.bf16.mxu0 0
        %2290 = vmatpush1.bf16.msra.mxu0 0
        %2291 = vmatprep.subr.bf16.mxu0 0
        %2292 = vmatpush1.bf16.msra.mxu0 0
        %2293 = vmatprep.subr.bf16.mxu0 0
        %2294 = vmatpush1.bf16.msra.mxu0 0
        %2295 = vmatprep.subr.bf16.mxu0 0
        %2296 = vmatpush1.bf16.msra.mxu0 0
        %2297 = vmatprep.subr.bf16.mxu0 0
        %2298 = vmatpush1.bf16.msra.mxu0 0
        %2299 = vmatprep.subr.bf16.mxu0 0
        %2300 = vmatpush1.bf16.msra.mxu0 0
        %2301 = vmatprep.subr.bf16.mxu0 0
        %2302 = vmatpush1.bf16.msra.mxu0 0
        %2303 = vmatprep.subr.bf16.mxu0 0
        %2304 = vmatpush1.bf16.msra.mxu0 0
        %2305 = vmatprep.subr.bf16.mxu0 0
        %2306 = vmatpush1.bf16.msra.mxu0 0
        %2307 = vmatprep.subr.bf16.mxu0 0
        %2308 = vmatpush1.bf16.msra.mxu0 0
        %2309 = vmatprep.subr.bf16.mxu0 0
        %2310 = vmatpush1.bf16.msra.mxu0 0
        %2311 = vmatprep.subr.bf16.mxu0 0
        %2312 = vmatpush1.bf16.msra.mxu0 0
        %2313 = vmatprep.mubr.bf16.mxu0 0
        %2314 = vmatmul.mubr.bf16.gmra.mrb[0].mxu0 %v2276
        %v2315 = vpop.f32.mrb[0].mxu0
        %v2316 = vadd.f32 0.0, %v2315
        %v2317 = vpop.f32.mrb[0].mxu0
        %v2318 = vpop.f32.mrb[0].mxu0
        %v2319 = vpop.f32.mrb[0].mxu0
        %2320 = vdwg.mxu0
        %2322 = vrot.lane.b32.xlu0 %v2096, 8
        %v2323 = vpop.permute.xlu0 %2322
        %2326 = vrot.lane.b32.xlu0 %v2206, 16
        %v2327 = vpop.permute.xlu0 %2326
        %2330 = vrot.lane.b32.xlu0 %v2316, 24
        %v2331 = vpop.permute.xlu0 %2330
        %v2333 = vsel %vm1194, %v1985, %v2323
        %v2334 = vsel %vm1645, %v2333, %v2327
        %v2335 = vsel %vm1647, %v2334, %v2331
        %v2336 = vpack.c.bf16 %v2335, %v2335
        %v2337 = vld [vmem:[%s1073] sm:$0xf]
        %v2338 = vld [vmem:[%s1073 + $0x4] sm:$0xf]
        %v2339 = vld [vmem:[%s1073 + $0x8] sm:$0xf]
        %v2340 = vld [vmem:[%s1073 + $0xc] sm:$0xf]
        %v2341 = vld [vmem:[%s1076] sm:$0x1]
        %v2343 = vlaneseq
        %v2344 = vshrl.u32 %v2343, 7
        %v2345 = vsub.s32 0, %v2344
        %v2346 = vrot.slane %v2341, %v2345
        %v2352 = vunpack.c.l.b16 %v2337
        %v2353 = vunpack.c.l.b16 %v2338
        %v2354 = vunpack.c.l.b16 %v2339
        %v2355 = vunpack.c.l.b16 %v2340
        %v2356 = vpack.c.b16 %v2353, %v2352
        %v2357 = vpack.c.b16 %v2355, %v2354
        %v2361 = vsel %vm1146, %v2336, 0
        %2363 = vmatprep.subr.bf16.mxu0 0
        %2364 = vmatpush1.bf16.msra.mxu0 %v2356
        %2365 = vmatprep.subr.bf16.mxu0 0
        %2366 = vmatpush1.bf16.msra.mxu0 %v2357
        %2367 = vmatprep.subr.bf16.mxu0 0
        %2368 = vmatpush1.bf16.msra.mxu0 0
        %2369 = vmatprep.subr.bf16.mxu0 0
        %2370 = vmatpush1.bf16.msra.mxu0 0
        %2371 = vmatprep.subr.bf16.mxu0 0
        %2372 = vmatpush1.bf16.msra.mxu0 0
        %2373 = vmatprep.subr.bf16.mxu0 0
        %2374 = vmatpush1.bf16.msra.mxu0 0
        %2375 = vmatprep.subr.bf16.mxu0 0
        %2376 = vmatpush1.bf16.msra.mxu0 0
        %2377 = vmatprep.subr.bf16.mxu0 0
        %2378 = vmatpush1.bf16.msra.mxu0 0
        %2379 = vmatprep.subr.bf16.mxu0 0
        %2380 = vmatpush1.bf16.msra.mxu0 0
        %2381 = vmatprep.subr.bf16.mxu0 0
        %2382 = vmatpush1.bf16.msra.mxu0 0
        %2383 = vmatprep.subr.bf16.mxu0 0
        %2384 = vmatpush1.bf16.msra.mxu0 0
        %2385 = vmatprep.subr.bf16.mxu0 0
        %2386 = vmatpush1.bf16.msra.mxu0 0
        %2387 = vmatprep.subr.bf16.mxu0 0
        %2388 = vmatpush1.bf16.msra.mxu0 0
        %2389 = vmatprep.subr.bf16.mxu0 0
        %2390 = vmatpush1.bf16.msra.mxu0 0
        %2391 = vmatprep.subr.bf16.mxu0 0
        %2392 = vmatpush1.bf16.msra.mxu0 0
        %2393 = vmatprep.subr.bf16.mxu0 0
        %2394 = vmatpush1.bf16.msra.mxu0 0
        %2395 = vmatprep.mubr.bf16.mxu0 0
        %2396 = vmatmul.mubr.bf16.gmra.mrb[0].mxu0 %v2361
        %v2397 = vpop.f32.mrb[0].mxu0
        %v2398 = vadd.f32 %v2346, %v2397
        %v2399 = vpop.f32.mrb[0].mxu0
        %v2400 = vpop.f32.mrb[0].mxu0
        %v2401 = vpop.f32.mrb[0].mxu0
        %2402 = vdwg.mxu0
        %v2403 = vadd.f32 %v1746, %v2398
        %v2404 = vld [vmem:[%s1085] sm:$0x1]
        %v2405 = vld [vmem:[%s1088] sm:$0x1]
        %v2406 = vsel %vm1146, %v2403, 0.0
        %2407 = vadd.xlane.f32.xlu0 %v2406
        %v2408 = vpop.xlane.xlu0 %2407
        %v2409 = vmul.f32 %v2408, %v1722
        %v2410 = vsub.f32 %v2403, %v2409
        %v2411 = vmul.f32 %v2410, %v2410
        %v2412 = vsel %vm1146, %v2411, 0.0
        %2413 = vadd.xlane.f32.xlu0 %v2412
        %v2414 = vpop.xlane.xlu0 %2413
        %v2415 = vmul.f32 %v2414, %v1722
        %v2416 = vadd.f32 %v2415, 1e-05
        %v2417 = vrsqrt.pop %v2416
        %v2418 = vmul.f32 %v2410, %v2417
        %v2420 = vlaneseq
        %v2421 = vshrl.u32 %v2420, 7
        %v2422 = vsub.s32 0, %v2421
        %v2423 = vrot.slane %v2404, %v2422
        %v2425 = vmul.f32 %v2418, %v2423
        %v2427 = vlaneseq
        %v2428 = vshrl.u32 %v2427, 7
        %v2429 = vsub.s32 0, %v2428
        %v2430 = vrot.slane %v2405, %v2429
        %v2432 = vadd.f32 %v2425, %v2430
        %v2433 = vpack.c.bf16 %v2432, %v2432
        %v2434 = vld [vmem:[%s1099] sm:$0xf]
        %v2435 = vld [vmem:[%s1099 + $0x4] sm:$0xf]
        %v2436 = vld [vmem:[%s1099 + $0x8] sm:$0xf]
        %v2437 = vld [vmem:[%s1099 + $0xc] sm:$0xf]
        %v2438 = vld [vmem:[%s1102] sm:$0x1]
        %v2440 = vlaneseq
        %v2441 = vshrl.u32 %v2440, 7
        %v2442 = vsub.s32 0, %v2441
        %v2443 = vrot.slane %v2438, %v2442
        %v2449 = vunpack.c.l.b16 %v2434
        %v2450 = vunpack.c.l.b16 %v2435
        %v2451 = vunpack.c.l.b16 %v2436
        %v2452 = vunpack.c.l.b16 %v2437
        %v2453 = vpack.c.b16 %v2450, %v2449
        %v2454 = vpack.c.b16 %v2452, %v2451
        %v2458 = vsel %vm1146, %v2433, 0
        %2460 = vmatprep.subr.bf16.mxu0 0
        %2461 = vmatpush1.bf16.msra.mxu0 %v2453
        %2462 = vmatprep.subr.bf16.mxu0 0
        %2463 = vmatpush1.bf16.msra.mxu0 %v2454
        %2464 = vmatprep.subr.bf16.mxu0 0
        %2465 = vmatpush1.bf16.msra.mxu0 0
        %2466 = vmatprep.subr.bf16.mxu0 0
        %2467 = vmatpush1.bf16.msra.mxu0 0
        %2468 = vmatprep.subr.bf16.mxu0 0
        %2469 = vmatpush1.bf16.msra.mxu0 0
        %2470 = vmatprep.subr.bf16.mxu0 0
        %2471 = vmatpush1.bf16.msra.mxu0 0
        %2472 = vmatprep.subr.bf16.mxu0 0
        %2473 = vmatpush1.bf16.msra.mxu0 0
        %2474 = vmatprep.subr.bf16.mxu0 0
        %2475 = vmatpush1.bf16.msra.mxu0 0
        %2476 = vmatprep.subr.bf16.mxu0 0
        %2477 = vmatpush1.bf16.msra.mxu0 0
        %2478 = vmatprep.subr.bf16.mxu0 0
        %2479 = vmatpush1.bf16.msra.mxu0 0
        %2480 = vmatprep.subr.bf16.mxu0 0
        %2481 = vmatpush1.bf16.msra.mxu0 0
        %2482 = vmatprep.subr.bf16.mxu0 0
        %2483 = vmatpush1.bf16.msra.mxu0 0
        %2484 = vmatprep.subr.bf16.mxu0 0
        %2485 = vmatpush1.bf16.msra.mxu0 0
        %2486 = vmatprep.subr.bf16.mxu0 0
        %2487 = vmatpush1.bf16.msra.mxu0 0
        %2488 = vmatprep.subr.bf16.mxu0 0
        %2489 = vmatpush1.bf16.msra.mxu0 0
        %2490 = vmatprep.subr.bf16.mxu0 0
        %2491 = vmatpush1.bf16.msra.mxu0 0
        %2492 = vmatprep.mubr.bf16.mxu0 0
        %2493 = vmatmul.mubr.bf16.gmra.mrb[0].mxu0 %v2458
        %v2494 = vpop.f32.mrb[0].mxu0
        %v2495 = vadd.f32 %v2443, %v2494
        %v2496 = vpop.f32.mrb[0].mxu0
        %v2497 = vpop.f32.mrb[0].mxu0
        %v2498 = vpop.f32.mrb[0].mxu0
        %2499 = vdwg.mxu0
        %v2500 = vmax.f32 %v2495, 0.0
        %v2501 = vpack.c.bf16 %v2500, %v2500
        %v2502 = vld [vmem:[%s1107] sm:$0xf]
        %v2503 = vld [vmem:[%s1107 + $0x4] sm:$0xf]
        %v2504 = vld [vmem:[%s1107 + $0x8] sm:$0xf]
        %v2505 = vld [vmem:[%s1107 + $0xc] sm:$0xf]
        %v2506 = vld [vmem:[%s1110] sm:$0x1]
        %v2508 = vlaneseq
        %v2509 = vshrl.u32 %v2508, 7
        %v2510 = vsub.s32 0, %v2509
        %v2511 = vrot.slane %v2506, %v2510
        %v2517 = vunpack.c.l.b16 %v2502
        %v2518 = vunpack.c.l.b16 %v2503
        %v2519 = vunpack.c.l.b16 %v2504
        %v2520 = vunpack.c.l.b16 %v2505
        %v2521 = vpack.c.b16 %v2518, %v2517
        %v2522 = vpack.c.b16 %v2520, %v2519
        %v2526 = vsel %vm1146, %v2501, 0
        %2528 = vmatprep.subr.bf16.mxu0 0
        %2529 = vmatpush1.bf16.msra.mxu0 %v2521
        %2530 = vmatprep.subr.bf16.mxu0 0
        %2531 = vmatpush1.bf16.msra.mxu0 %v2522
        %2532 = vmatprep.subr.bf16.mxu0 0
        %2533 = vmatpush1.bf16.msra.mxu0 0
        %2534 = vmatprep.subr.bf16.mxu0 0
        %2535 = vmatpush1.bf16.msra.mxu0 0
        %2536 = vmatprep.subr.bf16.mxu0 0
        %2537 = vmatpush1.bf16.msra.mxu0 0
        %2538 = vmatprep.subr.bf16.mxu0 0
        %2539 = vmatpush1.bf16.msra.mxu0 0
        %2540 = vmatprep.subr.bf16.mxu0 0
        %2541 = vmatpush1.bf16.msra.mxu0 0
        %2542 = vmatprep.subr.bf16.mxu0 0
        %2543 = vmatpush1.bf16.msra.mxu0 0
        %2544 = vmatprep.subr.bf16.mxu0 0
        %2545 = vmatpush1.bf16.msra.mxu0 0
        %2546 = vmatprep.subr.bf16.mxu0 0
        %2547 = vmatpush1.bf16.msra.mxu0 0
        %2548 = vmatprep.subr.bf16.mxu0 0
        %2549 = vmatpush1.bf16.msra.mxu0 0
        %2550 = vmatprep.subr.bf16.mxu0 0
        %2551 = vmatpush1.bf16.msra.mxu0 0
        %2552 = vmatprep.subr.bf16.mxu0 0
        %2553 = vmatpush1.bf16.msra.mxu0 0
        %2554 = vmatprep.subr.bf16.mxu0 0
        %2555 = vmatpush1.bf16.msra.mxu0 0
        %2556 = vmatprep.subr.bf16.mxu0 0
        %2557 = vmatpush1.bf16.msra.mxu0 0
        %2558 = vmatprep.subr.bf16.mxu0 0
        %2559 = vmatpush1.bf16.msra.mxu0 0
        %2560 = vmatprep.mubr.bf16.mxu0 0
        %2561 = vmatmul.mubr.bf16.gmra.mrb[0].mxu0 %v2526
        %v2562 = vpop.f32.mrb[0].mxu0
        %v2563 = vadd.f32 %v2511, %v2562
        %v2564 = vpop.f32.mrb[0].mxu0
        %v2565 = vpop.f32.mrb[0].mxu0
        %v2566 = vpop.f32.mrb[0].mxu0
        %2567 = vdwg.mxu0
        %v2568 = vadd.f32 %v2432, %v2563
        %v2569 = vld [vmem:[%s1091] sm:$0x1]
        %v2570 = vld [vmem:[%s1094] sm:$0x1]
        %v2571 = vsel %vm1146, %v2568, 0.0
        %2572 = vadd.xlane.f32.xlu0 %v2571
        %v2573 = vpop.xlane.xlu0 %2572
        %v2574 = vmul.f32 %v2573, %v1722
        %v2575 = vsub.f32 %v2568, %v2574
        %v2576 = vmul.f32 %v2575, %v2575
        %v2577 = vsel %vm1146, %v2576, 0.0
        %2578 = vadd.xlane.f32.xlu0 %v2577
        %v2579 = vpop.xlane.xlu0 %2578
        %v2580 = vmul.f32 %v2579, %v1722
        %v2581 = vadd.f32 %v2580, 1e-05
        %v2582 = vrsqrt.pop %v2581
        %v2583 = vmul.f32 %v2575, %v2582
        %v2585 = vlaneseq
        %v2586 = vshrl.u32 %v2585, 7
        %v2587 = vsub.s32 0, %v2586
        %v2588 = vrot.slane %v2569, %v2587
        %v2590 = vmul.f32 %v2583, %v2588
        %v2592 = vlaneseq
        %v2593 = vshrl.u32 %v2592, 7
        %v2594 = vsub.s32 0, %v2593
        %v2595 = vrot.slane %v2570, %v2594
        %v2597 = vadd.f32 %v2590, %v2595
        %2598 = vst.msk [vmem:[#allocation2] sm:$0xff] %vm1146, %v2597
        %p2599 = scmp.eq.s32.totalorder %s44, 1
        // Predicated region
        $region125: #{decoder_forward.1} parent=119 // pred_check
          %p2600 = pneg %p2599
        $region126: #{decoder_forward.1} parent=119 // pred_check_branch
          %2602 = sbr.rel (%p2600) target = $region128
        $region127: #{decoder_forward.1} parent=119 // pred_region
          %v2603 = vpack.c.bf16 %v2597, %v2597
          %v2604 = vld [vmem:[%s23] sm:$0xf]
          %v2605 = vld [vmem:[%s23 + $0x4] sm:$0xf]
          %v2606 = vld [vmem:[%s23 + $0x8] sm:$0xf]
          %v2607 = vld [vmem:[%s23 + $0xc] sm:$0xf]
          %v2608 = vld [vmem:[%s24] sm:$0x1]
          %v2610 = vlaneseq
          %v2611 = vshrl.u32 %v2610, 7
          %v2612 = vsub.s32 0, %v2611
          %v2613 = vrot.slane %v2608, %v2612
          %v2619 = vunpack.c.l.b16 %v2604
          %v2620 = vunpack.c.l.b16 %v2605
          %v2621 = vunpack.c.l.b16 %v2606
          %v2622 = vunpack.c.l.b16 %v2607
          %v2623 = vpack.c.b16 %v2620, %v2619
          %v2624 = vpack.c.b16 %v2622, %v2621
          %v2628 = vsel %vm1146, %v2603, 0
          %2630 = vmatprep.subr.bf16.mxu0 0
          %2631 = vmatpush1.bf16.msra.mxu0 %v2623
          %2632 = vmatprep.subr.bf16.mxu0 0
          %2633 = vmatpush1.bf16.msra.mxu0 %v2624
          %2634 = vmatprep.subr.bf16.mxu0 0
          %2635 = vmatpush1.bf16.msra.mxu0 0
          %2636 = vmatprep.subr.bf16.mxu0 0
          %2637 = vmatpush1.bf16.msra.mxu0 0
          %2638 = vmatprep.subr.bf16.mxu0 0
          %2639 = vmatpush1.bf16.msra.mxu0 0
          %2640 = vmatprep.subr.bf16.mxu0 0
          %2641 = vmatpush1.bf16.msra.mxu0 0
          %2642 = vmatprep.subr.bf16.mxu0 0
          %2643 = vmatpush1.bf16.msra.mxu0 0
          %2644 = vmatprep.subr.bf16.mxu0 0
          %2645 = vmatpush1.bf16.msra.mxu0 0
          %2646 = vmatprep.subr.bf16.mxu0 0
          %2647 = vmatpush1.bf16.msra.mxu0 0
          %2648 = vmatprep.subr.bf16.mxu0 0
          %2649 = vmatpush1.bf16.msra.mxu0 0
          %2650 = vmatprep.subr.bf16.mxu0 0
          %2651 = vmatpush1.bf16.msra.mxu0 0
          %2652 = vmatprep.subr.bf16.mxu0 0
          %2653 = vmatpush1.bf16.msra.mxu0 0
          %2654 = vmatprep.subr.bf16.mxu0 0
          %2655 = vmatpush1.bf16.msra.mxu0 0
          %2656 = vmatprep.subr.bf16.mxu0 0
          %2657 = vmatpush1.bf16.msra.mxu0 0
          %2658 = vmatprep.subr.bf16.mxu0 0
          %2659 = vmatpush1.bf16.msra.mxu0 0
          %2660 = vmatprep.subr.bf16.mxu0 0
          %2661 = vmatpush1.bf16.msra.mxu0 0
          %2662 = vmatprep.mubr.bf16.mxu0 0
          %2663 = vmatmul.mubr.bf16.gmra.mrb[0].mxu0 %v2628
          %v2664 = vpop.f32.mrb[0].mxu0
          %v2665 = vadd.f32 %v2613, %v2664
          %v2666 = vpop.f32.mrb[0].mxu0
          %v2667 = vpop.f32.mrb[0].mxu0
          %v2668 = vpop.f32.mrb[0].mxu0
          %2669 = vdwg.mxu0
          %2670 = vst [vmem:[%s1028] sm:$0xff] %v2665
        $region128: #{decoder_forward.1} parent=119 // pred_fallthru
          _
        %s2671 = sand.u32 %s694, 1
        %s2672 = scalar_lea.sflag [#allocation4], %s2671
        %s2673 = sand.u32 %s694, 1
        %s2674 = smul.addr %s2673, 8
        %s2675 = scalar_lea.vmem [#allocation3], %s2674
        // Predicated region
        $region129: #{decoder_forward.1} parent=119 // pred_check
          %p2676 = pneg %p704
        $region130: #{decoder_forward.1} parent=119 // pred_check_branch
          %2678 = sbr.rel (%p2676) target = $region132
        $region131: #{decoder_forward.1} parent=119 // pred_region
          %s2680 = ssub.s32 128, 128
          %2681 = vsyncadd %s2672, %s2680
          %s2682 = smul.addr %s43, 128
          %s2683 = scalar_lea.hbm %s25, %s2682
          %s2685 = sshll.u32 %s2675, 4
          %s2686 = int_to_ptr.vmem [resolvable:$true] %s2685
          %2688 = dma.vmem_to_hbm [thread:$0]  %s2686, 128, %s2683, %s2672
        $region132: #{decoder_forward.1} parent=119 // pred_fallthru
          _
      $region120: #{decoder_forward.1} parent=5 // pred_fallthru
        _
      %p2689 = scmp.le.s32.totalorder 2, %s34
      // Predicated region
      $region133: #{decoder_forward.1} parent=5 // pred_check
        %p2690 = pneg %p2689
      $region134: #{decoder_forward.1} parent=5 // pred_check_branch
        %2692 = sbr.rel (%p2690) target = $region136
      $region135: #{decoder_forward.1} parent=5 // pred_region
        %s2693 = ssub.s32 %s34, 2
        // Predicated region
        $region137: #{decoder_forward.1} parent=135 // pred_check
          %p2694 = pneg %p710
        $region138: #{decoder_forward.1} parent=135 // pred_check_branch
          %2696 = sbr.rel (%p2694) target = $region140
        $region139: #{decoder_forward.1} parent=135 // pred_region
          %s2697 = sand.u32 %s695, 1
          %s2698 = scalar_lea.sflag [#allocation4], %s2697
          %s2699 = sand.u32 %s695, 1
          %s2700 = smul.addr %s2699, 8
          %s2701 = scalar_lea.vmem [#allocation3], %s2700
          %2702 = dma.done %s2698, 128
        $region140: #{decoder_forward.1} parent=135 // pred_fallthru
          _
      $region136: #{decoder_forward.1} parent=5 // pred_fallthru
        _
    $region6: #{decoder_forward.1} parent=1 // loop_footer
      %s38 = sadd.s32 1, %s34
    $region7: #{decoder_forward.1} parent=1 // loop_footer_branch
      %33 = sbr.rel target = $region3
    $region8: #{decoder_forward.1} parent=1 // loop_exit
      _
    %2703 = vsyncpa [#allocation4], 1
    %s2704 = scalar_lea.sflag [#allocation4], 1
    %2705 = vsyncpa %s2704, 1

</llo_original>
